<compile_context>
chip_gen: v5e
topology: v5e:2x2
jax: 0.10.0
libtpu: 0.0.40
codegen_flags: <defaults>
</compile_context>

<pallas_src>
import math

import jax
import jax.numpy as jnp
from jax.experimental import pallas as pl
from jax.experimental.pallas import tpu as pltpu

LEAKY_SLOPE = 0.01          # nn.LeakyReLU default
BN_EPS = 1e-5               # nn.BatchNorm2d default
LANE = 128                  # TPU lane width
CONV_DTYPE = jnp.bfloat16   # MXU operand dtype (accumulation stays f32)


# --------------------------------------------------------------------------
# Kernels
# --------------------------------------------------------------------------
def _conv3x3_bn_lrelu(act, w_ref, g_ref, be_ref, o_ref, pad_ref, patch_ref):
    """Shared body: 3x3 'SAME' conv (im2col, one MXU matmul) + BN + LeakyReLU.

    act:       (M, Ci) conv-operand-dtype activations, rows ordered (n, h, w).
    w_ref:     (9*Ci, TC) reshaped HWIO weights for this out-channel block.
    g/be_ref:  (1, TC) BN affine params (f32).
    o_ref:     (M, TC) output block.
    pad_ref:   (N, Hp+2, Wp+2, Ci) VMEM scratch (zero-padded activations).
    patch_ref: (M, 9*Ci) VMEM scratch (im2col patch matrix).
    """
    n, hp2, wp2, ci = pad_ref.shape
    hp, wp = hp2 - 2, wp2 - 2
    m = n * hp * wp

    # ---- spatial zero-pad: write only the 1-pixel border, interior is fully
    # ---- overwritten on the next line (no full-buffer memset).
    zrow = jnp.zeros((n, 1, wp2, ci), pad_ref.dtype)
    pad_ref[:, 0:1, :, :] = zrow
    pad_ref[:, hp + 1:hp + 2, :, :] = zrow
    zcol = jnp.zeros((n, hp, 1, ci), pad_ref.dtype)
    pad_ref[:, 1:hp + 1, 0:1, :] = zcol
    pad_ref[:, 1:hp + 1, wp + 1:wp + 2, :] = zcol
    pad_ref[:, 1:hp + 1, 1:wp + 1, :] = act.reshape(n, hp, wp, ci)

    # ---- im2col: build the (M, 9*Ci) patch matrix once, then ONE MXU matmul.
    # The lane dim (Ci = 128) is dense, and the H-shifted taps are tile-aligned
    # slices; only the dx-shifted taps pay a sublane-offset copy.
    for k in range(9):
        dy, dx = divmod(k, 3)
        patch_ref[:, k * ci:(k + 1) * ci] = (
            pad_ref[:, dy:dy + hp, dx:dx + wp, :].reshape(m, ci))

    # bf16 operands, f32 accumulation on the MXU.
    acc = jnp.dot(patch_ref[...], w_ref[...],
                  preferred_element_type=jnp.float32)        # (M, TC) f32

    # Conv bias intentionally omitted: training-mode BN subtracts the
    # per-channel batch mean immediately after, so it cancels exactly.

    # ---- BatchNorm2d (training mode, biased variance), fused one-pass stats.
    inv_m = 1.0 / m
    s1 = jnp.sum(acc, axis=0, keepdims=True)
    s2 = jnp.sum(acc * acc, axis=0, keepdims=True)
    mean = s1 * inv_m
    var = jnp.maximum(s2 * inv_m - mean * mean, 0.0)
    scale = g_ref[...] * jax.lax.rsqrt(var + BN_EPS)
    y = (acc - mean) * scale + be_ref[...]

    # ---- LeakyReLU (single VPU max, f32).
    y = jnp.maximum(y, LEAKY_SLOPE * y)
    o_ref[...] = y.astype(o_ref.dtype)


def _pool_conv_bn_lrelu_kernel(x_ref, w_ref, g_ref, be_ref, o_ref,
                               pad_ref, patch_ref):
    # MaxPool2d(2,2): the 4 window slabs were pre-split onto the leading dim
    # (pure layout glue in the wrapper); the reduction runs here in f32.
    pooled = jnp.maximum(jnp.maximum(x_ref[0], x_ref[1]),
                         jnp.maximum(x_ref[2], x_ref[3]))     # (M, Ci) f32
    _conv3x3_bn_lrelu(pooled.astype(pad_ref.dtype),
                      w_ref, g_ref, be_ref, o_ref, pad_ref, patch_ref)


def _conv_bn_lrelu_kernel(x_ref, w_ref, g_ref, be_ref, o_ref,
                          pad_ref, patch_ref):
    _conv3x3_bn_lrelu(x_ref[...], w_ref, g_ref, be_ref, o_ref,
                      pad_ref, patch_ref)


# --------------------------------------------------------------------------
# Wrapper
# --------------------------------------------------------------------------
def _round_up(x, m):
    return (x + m - 1) // m * m


def _nbytes(shape, dtype):
    return math.prod(shape) * jnp.dtype(dtype).itemsize


def _vmem_limit(*byte_counts):
    # Double-buffered pipeline blocks + scratch, plus generous headroom for
    # compiler temporaries; keep comfortably under the smallest physical VMEM
    # across generations (v7x: 64 MiB per TensorCore).
    return int(min(2 * sum(byte_counts) + (16 << 20), 60 << 20))


def _prep_weight(w_hwio, ci_p, co_p):
    """HWIO (3,3,Ci,Co) -> channel-padded (9*Ci_p, Co_p) bf16 matrix."""
    kh, kw, ci, co = w_hwio.shape
    w = jnp.pad(w_hwio, ((0, 0), (0, 0), (0, ci_p - ci), (0, co_p - co)))
    return w.reshape(kh * kw * ci_p, co_p).astype(CONV_DTYPE)


def _prep_bn(gamma, beta, co_p):
    co = gamma.shape[0]
    g = jnp.pad(gamma, (0, co_p - co), constant_values=1.0).reshape(1, co_p)
    b = jnp.pad(beta, (0, co_p - co)).reshape(1, co_p)
    return g.astype(jnp.float32), b.astype(jnp.float32)


def down_forward(x_nchw, params):
    """Down.forward: (N, Cin, H, W) f32 -> (N, Cout, H//2, W//2) f32."""
    N, Cin, H, W = x_nchw.shape
    Hp, Wp = H // 2, W // 2
    M = N * Hp * Wp
    w1, b1, g1, be1, w2, b2, g2, be2 = params     # conv weights in HWIO
    del b1, b2  # conv biases cancel exactly against training-mode BN
    Cout = w1.shape[-1]

    Ci_p = _round_up(Cin, LANE)
    Co_p = _round_up(Cout, LANE)
    TC = LANE                                     # out-channel block width
    n_blk = Co_p // TC

    # ---- layout glue: NCHW -> NHWC, zero-pad channels to a lane multiple,
    # ---- split the 2x2 pool windows onto a leading dim of 4, flatten (n,h,w).
    x = jnp.transpose(x_nchw, (0, 2, 3, 1))
    x = jnp.pad(x, ((0, 0), (0, 0), (0, 0), (0, Ci_p - Cin)))
    x = x.reshape(N, Hp, 2, Wp, 2, Ci_p).transpose(2, 4, 0, 1, 3, 5)
    x = x.reshape(4, M, Ci_p)                     # f32, lane-dense last dim

    w1m = _prep_weight(w1, Ci_p, Co_p)            # (9*Ci_p, Co_p) bf16
    w2m = _prep_weight(w2, Co_p, Co_p)            # (9*Co_p, Co_p) bf16
    g1p, be1p = _prep_bn(g1, be1, Co_p)
    g2p, be2p = _prep_bn(g2, be2, Co_p)

    def stage(kernel, x_in, wm, gp, bp, ci, out_dtype):
        in_bytes = (_nbytes(x_in.shape, x_in.dtype)
                    + _nbytes((9 * ci, TC), CONV_DTYPE)
                    + 2 * _nbytes((1, TC), jnp.float32))
        out_bytes = _nbytes((M, TC), out_dtype)
        scr_bytes = (_nbytes((N, Hp + 2, Wp + 2, ci), CONV_DTYPE)
                     + _nbytes((M, 9 * ci), CONV_DTYPE))
        return pl.pallas_call(
            kernel,
            out_shape=jax.ShapeDtypeStruct((M, Co_p), out_dtype),
            grid_spec=pltpu.PrefetchScalarGridSpec(
                num_scalar_prefetch=0,
                grid=(n_blk,),                    # independent out-channel blocks
                in_specs=[
                    pl.BlockSpec(x_in.shape, lambda j: (0,) * x_in.ndim),
                    pl.BlockSpec((9 * ci, TC), lambda j: (0, j)),
                    pl.BlockSpec((1, TC), lambda j: (0, j)),
                    pl.BlockSpec((1, TC), lambda j: (0, j)),
                ],
                out_specs=pl.BlockSpec((M, TC), lambda j: (0, j)),
                scratch_shapes=[
                    pltpu.VMEM((N, Hp + 2, Wp + 2, ci), CONV_DTYPE),  # padded act
                    pltpu.VMEM((M, 9 * ci), CONV_DTYPE),              # im2col patch
                ],
            ),
            compiler_params=pltpu.CompilerParams(
                dimension_semantics=("parallel",),   # per-channel BN => blocks independent
                vmem_limit_bytes=_vmem_limit(in_bytes, out_bytes, scr_bytes),
            ),
        )(x_in, wm, gp, bp)

    # Stage 1: MaxPool + Conv1 + BN1 + LeakyReLU  (bf16 intermediate activations)
    y1 = stage(_pool_conv_bn_lrelu_kernel, x, w1m, g1p, be1p, Ci_p, CONV_DTYPE)
    # Stage 2: Conv2 + BN2 + LeakyReLU            (f32 final output)
    y2 = stage(_conv_bn_lrelu_kernel, y1, w2m, g2p, be2p, Co_p, jnp.float32)

    out = y2.reshape(N, Hp, Wp, Co_p)[..., :Cout]  # drop channel padding
    return jnp.transpose(out, (0, 3, 1, 2))        # back to NCHW


# --------------------------------------------------------------------------
# Pure-JAX reference (same math; conv precision selectable)
# --------------------------------------------------------------------------
def down_reference(x_nchw, params, conv_dtype=jnp.float32):
    w1, b1, g1, be1, w2, b2, g2, be2 = params
    x = jnp.transpose(x_nchw, (0, 2, 3, 1))                        # NHWC
    N, H, W, Cin = x.shape
    x = x.reshape(N, H // 2, 2, W // 2, 2, Cin).max(axis=(2, 4))   # maxpool 2x2

    def conv_bn_lrelu(x, w, b, g, be):
        y = jax.lax.conv_general_dilated(
            x.astype(conv_dtype), w.astype(conv_dtype),
            window_strides=(1, 1), padding="SAME",
            dimension_numbers=("NHWC", "HWIO", "NHWC"),
            preferred_element_type=jnp.float32)
        y = y + b                                  # kept here; cancels under BN
        mean = y.mean(axis=(0, 1, 2), keepdims=True)
        var = ((y - mean) ** 2).mean(axis=(0, 1, 2), keepdims=True)
        y = (y - mean) * g * jax.lax.rsqrt(var + BN_EPS) + be
        return jnp.where(y > 0, y, LEAKY_SLOPE * y)

    y = conv_bn_lrelu(x, w1, b1, g1, be1)
    if conv_dtype != jnp.float32:
        y = y.astype(conv_dtype).astype(jnp.float32)   # mirror bf16 intermediate
    y = conv_bn_lrelu(y, w2, b2, g2, be2)
    return jnp.transpose(y, (0, 3, 1, 2))


# --------------------------------------------------------------------------
if __name__ == "__main__":
    key = jax.random.PRNGKey(0)
    N, Cin, Cout, H, W = 2, 4, 8, 16, 16
    ks = jax.random.split(key, 9)

    x = jax.random.normal(ks[0], (N, Cin, H, W), jnp.float32)

    # PyTorch conv weight layout is (out, in, kh, kw); generate then move to HWIO.
    w1_oihw = 0.1 * jax.random.normal(ks[1], (Cout, Cin, 3, 3), jnp.float32)
    b1 = 0.1 * jax.random.normal(ks[2], (Cout,), jnp.float32)
    g1 = 1.0 + 0.1 * jax.random.normal(ks[3], (Cout,), jnp.float32)
    be1 = 0.1 * jax.random.normal(ks[4], (Cout,), jnp.float32)
    w2_oihw = 0.1 * jax.random.normal(ks[5], (Cout, Cout, 3, 3), jnp.float32)
    b2 = 0.1 * jax.random.normal(ks[6], (Cout,), jnp.float32)
    g2 = 1.0 + 0.1 * jax.random.normal(ks[7], (Cout,), jnp.float32)
    be2 = 0.1 * jax.random.normal(ks[8], (Cout,), jnp.float32)

    w1 = jnp.transpose(w1_oihw, (2, 3, 1, 0))   # HWIO
    w2 = jnp.transpose(w2_oihw, (2, 3, 1, 0))   # HWIO
    params = (w1, b1, g1, be1, w2, b2, g2, be2)

    out = jax.block_until_ready(jax.jit(down_forward)(x, params))
    assert out.shape == (N, Cout, H // 2, W // 2), out.shape

    # Precision-mirrored reference (bf16 conv operands, f32 accumulation/BN):
    # the same math the kernel performs -> tight tolerance.
    ref_mirror = down_reference(x, params, conv_dtype=CONV_DTYPE)
    if not jnp.allclose(out, ref_mirror, rtol=1e-2, atol=1e-2):
        max_err = float(jnp.max(jnp.abs(out - ref_mirror)))
        raise AssertionError(
            f"mismatch vs precision-mirrored reference, max abs err = {max_err}")

    # Full-f32 reference: loose sanity check that module semantics are kept.
    ref_f32 = down_reference(x, params, conv_dtype=jnp.float32)
    if not jnp.allclose(out, ref_f32, rtol=1e-1, atol=1e-1):
        max_err = float(jnp.max(jnp.abs(out - ref_f32)))
        raise AssertionError(f"mismatch vs f32 reference, max abs err = {max_err}")

    print("KERNEL_OK")
</pallas_src>

<mosaic_0001>
module attributes {stable_mosaic.version = 11 : i64} {
  func.func @_conv_bn_lrelu_kernel(%arg0: i32, %arg1: memref<128x128xbf16, #tpu.memory_space<vmem>>, %arg2: memref<1152x128xbf16, #tpu.memory_space<vmem>>, %arg3: memref<1x128xf32, #tpu.memory_space<vmem>>, %arg4: memref<1x128xf32, #tpu.memory_space<vmem>>, %arg5: memref<128x128xf32, #tpu.memory_space<vmem>>, %arg6: memref<2x10x10x128xbf16, #tpu.memory_space<vmem>>, %arg7: memref<128x1152xbf16, #tpu.memory_space<vmem>>) attributes {dimension_semantics = [#tpu.dimension_semantics<parallel>], iteration_bounds = array<i64: 1>, scalar_prefetch = 0 : i64, scratch_operands = 2 : i64, tpu.core_type = #tpu.core_type<tc>, window_params = [{pipeline_mode = #tpu.pipeline_mode<synchronous>, transform_indices = @transform_0, window_bounds = array<i64: 128, 128>}, {transform_indices = @transform_1, window_bounds = array<i64: 1152, 128>}, {transform_indices = @transform_2, window_bounds = array<i64: 1, 128>}, {transform_indices = @transform_3, window_bounds = array<i64: 1, 128>}, {transform_indices = @transform_4, window_bounds = array<i64: 128, 128>}]} {
    %c0 = arith.constant 0 : index
    %c0_0 = arith.constant 0 : index
    %0 = vector.load %arg1[%c0, %c0_0] : memref<128x128xbf16, #tpu.memory_space<vmem>>, vector<128x128xbf16>
    %cst = arith.constant 0.000000e+00 : bf16
    %1 = vector.broadcast %cst : bf16 to vector<2x1x10x128xbf16>
    %c0_1 = arith.constant 0 : index
    %c0_2 = arith.constant 0 : index
    %c0_3 = arith.constant 0 : index
    %c0_4 = arith.constant 0 : index
    %2 = vector.load %arg6[%c0_1, %c0_2, %c0_3, %c0_4] : memref<2x10x10x128xbf16, #tpu.memory_space<vmem>>, vector<2x1x10x128xbf16>
    tpu.vector_store %arg6[%c0_1, %c0_2, %c0_3, %c0_4], %1 {strides = array<i32>} : memref<2x10x10x128xbf16, #tpu.memory_space<vmem>>, vector<2x1x10x128xbf16>,
    %c0_5 = arith.constant 0 : index
    %c9 = arith.constant 9 : index
    %c0_6 = arith.constant 0 : index
    %c0_7 = arith.constant 0 : index
    %3 = vector.load %arg6[%c0_5, %c9, %c0_6, %c0_7] : memref<2x10x10x128xbf16, #tpu.memory_space<vmem>>, vector<2x1x10x128xbf16>
    tpu.vector_store %arg6[%c0_5, %c9, %c0_6, %c0_7], %1 {strides = array<i32>} : memref<2x10x10x128xbf16, #tpu.memory_space<vmem>>, vector<2x1x10x128xbf16>,
    %cst_8 = arith.constant 0.000000e+00 : bf16
    %4 = vector.broadcast %cst_8 : bf16 to vector<2x8x1x128xbf16>
    %c0_9 = arith.constant 0 : index
    %c1 = arith.constant 1 : index
    %c0_10 = arith.constant 0 : index
    %c0_11 = arith.constant 0 : index
    %5 = vector.load %arg6[%c0_9, %c1, %c0_10, %c0_11] : memref<2x10x10x128xbf16, #tpu.memory_space<vmem>>, vector<2x8x1x128xbf16>
    tpu.vector_store %arg6[%c0_9, %c1, %c0_10, %c0_11], %4 {strides = array<i32>} : memref<2x10x10x128xbf16, #tpu.memory_space<vmem>>, vector<2x8x1x128xbf16>,
    %c0_12 = arith.constant 0 : index
    %c1_13 = arith.constant 1 : index
    %c9_14 = arith.constant 9 : index
    %c0_15 = arith.constant 0 : index
    %6 = vector.load %arg6[%c0_12, %c1_13, %c9_14, %c0_15] : memref<2x10x10x128xbf16, #tpu.memory_space<vmem>>, vector<2x8x1x128xbf16>
    tpu.vector_store %arg6[%c0_12, %c1_13, %c9_14, %c0_15], %4 {strides = array<i32>} : memref<2x10x10x128xbf16, #tpu.memory_space<vmem>>, vector<2x8x1x128xbf16>,
    %7 = vector.shape_cast %0 : vector<128x128xbf16> to vector<2x8x8x128xbf16>
    %c0_16 = arith.constant 0 : index
    %c1_17 = arith.constant 1 : index
    %c1_18 = arith.constant 1 : index
    %c0_19 = arith.constant 0 : index
    %8 = vector.load %arg6[%c0_16, %c1_17, %c1_18, %c0_19] : memref<2x10x10x128xbf16, #tpu.memory_space<vmem>>, vector<2x8x8x128xbf16>
    tpu.vector_store %arg6[%c0_16, %c1_17, %c1_18, %c0_19], %7 {strides = array<i32>} : memref<2x10x10x128xbf16, #tpu.memory_space<vmem>>, vector<2x8x8x128xbf16>,
    %c0_20 = arith.constant 0 : index
    %c0_21 = arith.constant 0 : index
    %c0_22 = arith.constant 0 : index
    %c0_23 = arith.constant 0 : index
    %9 = vector.load %arg6[%c0_20, %c0_21, %c0_22, %c0_23] : memref<2x10x10x128xbf16, #tpu.memory_space<vmem>>, vector<2x8x8x128xbf16>
    %10 = vector.shape_cast %9 : vector<2x8x8x128xbf16> to vector<128x128xbf16>
    %c0_24 = arith.constant 0 : index
    %c0_25 = arith.constant 0 : index
    %11 = vector.load %arg7[%c0_24, %c0_25] : memref<128x1152xbf16, #tpu.memory_space<vmem>>, vector<128x128xbf16>
    tpu.vector_store %arg7[%c0_24, %c0_25], %10 {strides = array<i32>} : memref<128x1152xbf16, #tpu.memory_space<vmem>>, vector<128x128xbf16>,
    %c0_26 = arith.constant 0 : index
    %c0_27 = arith.constant 0 : index
    %c1_28 = arith.constant 1 : index
    %c0_29 = arith.constant 0 : index
    %12 = vector.load %arg6[%c0_26, %c0_27, %c1_28, %c0_29] : memref<2x10x10x128xbf16, #tpu.memory_space<vmem>>, vector<2x8x8x128xbf16>
    %13 = vector.shape_cast %12 : vector<2x8x8x128xbf16> to vector<128x128xbf16>
    %c0_30 = arith.constant 0 : index
    %c128 = arith.constant 128 : index
    %14 = vector.load %arg7[%c0_30, %c128] : memref<128x1152xbf16, #tpu.memory_space<vmem>>, vector<128x128xbf16>
    tpu.vector_store %arg7[%c0_30, %c128], %13 {strides = array<i32>} : memref<128x1152xbf16, #tpu.memory_space<vmem>>, vector<128x128xbf16>,
    %c0_31 = arith.constant 0 : index
    %c0_32 = arith.constant 0 : index
    %c2 = arith.constant 2 : index
    %c0_33 = arith.constant 0 : index
    %15 = vector.load %arg6[%c0_31, %c0_32, %c2, %c0_33] : memref<2x10x10x128xbf16, #tpu.memory_space<vmem>>, vector<2x8x8x128xbf16>
    %16 = vector.shape_cast %15 : vector<2x8x8x128xbf16> to vector<128x128xbf16>
    %c0_34 = arith.constant 0 : index
    %c256 = arith.constant 256 : index
    %17 = vector.load %arg7[%c0_34, %c256] : memref<128x1152xbf16, #tpu.memory_space<vmem>>, vector<128x128xbf16>
    tpu.vector_store %arg7[%c0_34, %c256], %16 {strides = array<i32>} : memref<128x1152xbf16, #tpu.memory_space<vmem>>, vector<128x128xbf16>,
    %c0_35 = arith.constant 0 : index
    %c1_36 = arith.constant 1 : index
    %c0_37 = arith.constant 0 : index
    %c0_38 = arith.constant 0 : index
    %18 = vector.load %arg6[%c0_35, %c1_36, %c0_37, %c0_38] : memref<2x10x10x128xbf16, #tpu.memory_space<vmem>>, vector<2x8x8x128xbf16>
    %19 = vector.shape_cast %18 : vector<2x8x8x128xbf16> to vector<128x128xbf16>
    %c0_39 = arith.constant 0 : index
    %c384 = arith.constant 384 : index
    %20 = vector.load %arg7[%c0_39, %c384] : memref<128x1152xbf16, #tpu.memory_space<vmem>>, vector<128x128xbf16>
    tpu.vector_store %arg7[%c0_39, %c384], %19 {strides = array<i32>} : memref<128x1152xbf16, #tpu.memory_space<vmem>>, vector<128x128xbf16>,
    %c0_40 = arith.constant 0 : index
    %c1_41 = arith.constant 1 : index
    %c1_42 = arith.constant 1 : index
    %c0_43 = arith.constant 0 : index
    %21 = vector.load %arg6[%c0_40, %c1_41, %c1_42, %c0_43] : memref<2x10x10x128xbf16, #tpu.memory_space<vmem>>, vector<2x8x8x128xbf16>
    %22 = vector.shape_cast %21 : vector<2x8x8x128xbf16> to vector<128x128xbf16>
    %c0_44 = arith.constant 0 : index
    %c512 = arith.constant 512 : index
    %23 = vector.load %arg7[%c0_44, %c512] : memref<128x1152xbf16, #tpu.memory_space<vmem>>, vector<128x128xbf16>
    tpu.vector_store %arg7[%c0_44, %c512], %22 {strides = array<i32>} : memref<128x1152xbf16, #tpu.memory_space<vmem>>, vector<128x128xbf16>,
    %c0_45 = arith.constant 0 : index
    %c1_46 = arith.constant 1 : index
    %c2_47 = arith.constant 2 : index
    %c0_48 = arith.constant 0 : index
    %24 = vector.load %arg6[%c0_45, %c1_46, %c2_47, %c0_48] : memref<2x10x10x128xbf16, #tpu.memory_space<vmem>>, vector<2x8x8x128xbf16>
    %25 = vector.shape_cast %24 : vector<2x8x8x128xbf16> to vector<128x128xbf16>
    %c0_49 = arith.constant 0 : index
    %c640 = arith.constant 640 : index
    %26 = vector.load %arg7[%c0_49, %c640] : memref<128x1152xbf16, #tpu.memory_space<vmem>>, vector<128x128xbf16>
    tpu.vector_store %arg7[%c0_49, %c640], %25 {strides = array<i32>} : memref<128x1152xbf16, #tpu.memory_space<vmem>>, vector<128x128xbf16>,
    %c0_50 = arith.constant 0 : index
    %c2_51 = arith.constant 2 : index
    %c0_52 = arith.constant 0 : index
    %c0_53 = arith.constant 0 : index
    %27 = vector.load %arg6[%c0_50, %c2_51, %c0_52, %c0_53] : memref<2x10x10x128xbf16, #tpu.memory_space<vmem>>, vector<2x8x8x128xbf16>
    %28 = vector.shape_cast %27 : vector<2x8x8x128xbf16> to vector<128x128xbf16>
    %c0_54 = arith.constant 0 : index
    %c768 = arith.constant 768 : index
    %29 = vector.load %arg7[%c0_54, %c768] : memref<128x1152xbf16, #tpu.memory_space<vmem>>, vector<128x128xbf16>
    tpu.vector_store %arg7[%c0_54, %c768], %28 {strides = array<i32>} : memref<128x1152xbf16, #tpu.memory_space<vmem>>, vector<128x128xbf16>,
    %c0_55 = arith.constant 0 : index
    %c2_56 = arith.constant 2 : index
    %c1_57 = arith.constant 1 : index
    %c0_58 = arith.constant 0 : index
    %30 = vector.load %arg6[%c0_55, %c2_56, %c1_57, %c0_58] : memref<2x10x10x128xbf16, #tpu.memory_space<vmem>>, vector<2x8x8x128xbf16>
    %31 = vector.shape_cast %30 : vector<2x8x8x128xbf16> to vector<128x128xbf16>
    %c0_59 = arith.constant 0 : index
    %c896 = arith.constant 896 : index
    %32 = vector.load %arg7[%c0_59, %c896] : memref<128x1152xbf16, #tpu.memory_space<vmem>>, vector<128x128xbf16>
    tpu.vector_store %arg7[%c0_59, %c896], %31 {strides = array<i32>} : memref<128x1152xbf16, #tpu.memory_space<vmem>>, vector<128x128xbf16>,
    %c0_60 = arith.constant 0 : index
    %c2_61 = arith.constant 2 : index
    %c2_62 = arith.constant 2 : index
    %c0_63 = arith.constant 0 : index
    %33 = vector.load %arg6[%c0_60, %c2_61, %c2_62, %c0_63] : memref<2x10x10x128xbf16, #tpu.memory_space<vmem>>, vector<2x8x8x128xbf16>
    %34 = vector.shape_cast %33 : vector<2x8x8x128xbf16> to vector<128x128xbf16>
    %c0_64 = arith.constant 0 : index
    %c1024 = arith.constant 1024 : index
    %35 = vector.load %arg7[%c0_64, %c1024] : memref<128x1152xbf16, #tpu.memory_space<vmem>>, vector<128x128xbf16>
    tpu.vector_store %arg7[%c0_64, %c1024], %34 {strides = array<i32>} : memref<128x1152xbf16, #tpu.memory_space<vmem>>, vector<128x128xbf16>,
    %c0_65 = arith.constant 0 : index
    %c0_66 = arith.constant 0 : index
    %36 = vector.load %arg7[%c0_65, %c0_66] : memref<128x1152xbf16, #tpu.memory_space<vmem>>, vector<128x1152xbf16>
    %c0_67 = arith.constant 0 : index
    %c0_68 = arith.constant 0 : index
    %37 = vector.load %arg2[%c0_67, %c0_68] : memref<1152x128xbf16, #tpu.memory_space<vmem>>, vector<1152x128xbf16>
    %cst_69 = arith.constant dense<0.000000e+00> : vector<128x128xf32>
    %38 = tpu.matmul %36, %37, %cst_69 {dimension_numbers = #tpu.dot_dimension_numbers<[1], [0], [0], [1], [0, 0, 1, 1], [], []>} : vector<128x1152xbf16>, vector<1152x128xbf16>, vector<128x128xf32> -> vector<128x128xf32>
    %cst_70 = arith.constant dense<0.000000e+00> : vector<128xf32>
    %39 = vector.multi_reduction <add>, %38, %cst_70 [0] : vector<128x128xf32> to vector<128xf32>
    %40 = vector.shape_cast %39 : vector<128xf32> to vector<1x128xf32>
    %41 = arith.mulf %38, %38 : vector<128x128xf32>
    %cst_71 = arith.constant dense<0.000000e+00> : vector<128xf32>
    %42 = vector.multi_reduction <add>, %41, %cst_71 [0] : vector<128x128xf32> to vector<128xf32>
    %43 = vector.shape_cast %42 : vector<128xf32> to vector<1x128xf32>
    %cst_72 = arith.constant 7.812500e-03 : f32
    %44 = vector.broadcast %cst_72 : f32 to vector<1x128xf32>
    %45 = arith.mulf %40, %44 : vector<1x128xf32>
    %cst_73 = arith.constant 7.812500e-03 : f32
    %46 = vector.broadcast %cst_73 : f32 to vector<1x128xf32>
    %47 = arith.mulf %43, %46 : vector<1x128xf32>
    %48 = arith.mulf %45, %45 : vector<1x128xf32>
    %49 = arith.subf %47, %48 : vector<1x128xf32>
    %cst_74 = arith.constant 0.000000e+00 : f32
    %50 = vector.broadcast %cst_74 : f32 to vector<1x128xf32>
    %51 = arith.maximumf %49, %50 : vector<1x128xf32>
    %c0_75 = arith.constant 0 : index
    %c0_76 = arith.constant 0 : index
    %52 = vector.load %arg3[%c0_75, %c0_76] : memref<1x128xf32, #tpu.memory_space<vmem>>, vector<1x128xf32>
    %cst_77 = arith.constant 9.99999974E-6 : f32
    %53 = vector.broadcast %cst_77 : f32 to vector<1x128xf32>
    %54 = arith.addf %51, %53 : vector<1x128xf32>
    %55 = math.rsqrt %54 : vector<1x128xf32>
    %56 = arith.mulf %52, %55 : vector<1x128xf32>
    %57 = vector.broadcast %45 : vector<1x128xf32> to vector<128x128xf32>
    %58 = arith.subf %38, %57 : vector<128x128xf32>
    %59 = vector.broadcast %56 : vector<1x128xf32> to vector<128x128xf32>
    %60 = arith.mulf %58, %59 : vector<128x128xf32>
    %c0_78 = arith.constant 0 : index
    %c0_79 = arith.constant 0 : index
    %61 = vector.load %arg4[%c0_78, %c0_79] : memref<1x128xf32, #tpu.memory_space<vmem>>, vector<1x128xf32>
    %62 = vector.broadcast %61 : vector<1x128xf32> to vector<128x128xf32>
    %63 = arith.addf %60, %62 : vector<128x128xf32>
    %cst_80 = arith.constant 0.00999999977 : f32
    %64 = vector.broadcast %cst_80 : f32 to vector<128x128xf32>
    %65 = arith.mulf %64, %63 : vector<128x128xf32>
    %66 = arith.maximumf %63, %65 : vector<128x128xf32>
    %c0_81 = arith.constant 0 : index
    %c0_82 = arith.constant 0 : index
    %67 = vector.load %arg5[%c0_81, %c0_82] : memref<128x128xf32, #tpu.memory_space<vmem>>, vector<128x128xf32>
    tpu.vector_store %arg5[%c0_81, %c0_82], %66 {strides = array<i32>} : memref<128x128xf32, #tpu.memory_space<vmem>>, vector<128x128xf32>,
    return
  }
  func.func @transform_0(%arg0: i32) -> (i32, i32) {
    %c0_i32 = arith.constant 0 : i32
    %c0_i32_0 = arith.constant 0 : i32
    %c0_i32_1 = arith.constant 0 : i32
    return %c0_i32, %c0_i32_0 : i32, i32
  }
  func.func @transform_1(%arg0: i32) -> (i32, i32) {
    %c0_i32 = arith.constant 0 : i32
    %c0_i32_0 = arith.constant 0 : i32
    return %c0_i32, %arg0 : i32, i32
  }
  func.func @transform_2(%arg0: i32) -> (i32, i32) {
    %c0_i32 = arith.constant 0 : i32
    %c0_i32_0 = arith.constant 0 : i32
    return %c0_i32, %arg0 : i32, i32
  }
  func.func @transform_3(%arg0: i32) -> (i32, i32) {
    %c0_i32 = arith.constant 0 : i32
    %c0_i32_0 = arith.constant 0 : i32
    return %c0_i32, %arg0 : i32, i32
  }
  func.func @transform_4(%arg0: i32) -> (i32, i32) {
    %c0_i32 = arith.constant 0 : i32
    %c0_i32_0 = arith.constant 0 : i32
    return %c0_i32, %arg0 : i32, i32
  }
}

module attributes {stable_mosaic.version = 11 : i64} {
  func.func @_pool_conv_bn_lrelu_kernel(%arg0: i32, %arg1: memref<4x128x128xf32, #tpu.memory_space<vmem>>, %arg2: memref<1152x128xbf16, #tpu.memory_space<vmem>>, %arg3: memref<1x128xf32, #tpu.memory_space<vmem>>, %arg4: memref<1x128xf32, #tpu.memory_space<vmem>>, %arg5: memref<128x128xbf16, #tpu.memory_space<vmem>>, %arg6: memref<2x10x10x128xbf16, #tpu.memory_space<vmem>>, %arg7: memref<128x1152xbf16, #tpu.memory_space<vmem>>) attributes {dimension_semantics = [#tpu.dimension_semantics<parallel>], iteration_bounds = array<i64: 1>, scalar_prefetch = 0 : i64, scratch_operands = 2 : i64, tpu.core_type = #tpu.core_type<tc>, window_params = [{pipeline_mode = #tpu.pipeline_mode<synchronous>, transform_indices = @transform_0, window_bounds = array<i64: 4, 128, 128>}, {transform_indices = @transform_1, window_bounds = array<i64: 1152, 128>}, {transform_indices = @transform_2, window_bounds = array<i64: 1, 128>}, {transform_indices = @transform_3, window_bounds = array<i64: 1, 128>}, {transform_indices = @transform_4, window_bounds = array<i64: 128, 128>}]} {
    %c0 = arith.constant 0 : index
    %c0_0 = arith.constant 0 : index
    %c0_1 = arith.constant 0 : index
    %0 = vector.load %arg1[%c0, %c0_0, %c0_1] : memref<4x128x128xf32, #tpu.memory_space<vmem>>, vector<1x128x128xf32>
    %1 = vector.shape_cast %0 : vector<1x128x128xf32> to vector<128x128xf32>
    %c1 = arith.constant 1 : index
    %c0_2 = arith.constant 0 : index
    %c0_3 = arith.constant 0 : index
    %2 = vector.load %arg1[%c1, %c0_2, %c0_3] : memref<4x128x128xf32, #tpu.memory_space<vmem>>, vector<1x128x128xf32>
    %3 = vector.shape_cast %2 : vector<1x128x128xf32> to vector<128x128xf32>
    %4 = arith.maximumf %1, %3 : vector<128x128xf32>
    %c2 = arith.constant 2 : index
    %c0_4 = arith.constant 0 : index
    %c0_5 = arith.constant 0 : index
    %5 = vector.load %arg1[%c2, %c0_4, %c0_5] : memref<4x128x128xf32, #tpu.memory_space<vmem>>, vector<1x128x128xf32>
    %6 = vector.shape_cast %5 : vector<1x128x128xf32> to vector<128x128xf32>
    %c3 = arith.constant 3 : index
    %c0_6 = arith.constant 0 : index
    %c0_7 = arith.constant 0 : index
    %7 = vector.load %arg1[%c3, %c0_6, %c0_7] : memref<4x128x128xf32, #tpu.memory_space<vmem>>, vector<1x128x128xf32>
    %8 = vector.shape_cast %7 : vector<1x128x128xf32> to vector<128x128xf32>
    %9 = arith.maximumf %6, %8 : vector<128x128xf32>
    %10 = arith.maximumf %4, %9 : vector<128x128xf32>
    %11 = arith.truncf %10 : vector<128x128xf32> to vector<128x128xbf16>
    %cst = arith.constant 0.000000e+00 : bf16
    %12 = vector.broadcast %cst : bf16 to vector<2x1x10x128xbf16>
    %c0_8 = arith.constant 0 : index
    %c0_9 = arith.constant 0 : index
    %c0_10 = arith.constant 0 : index
    %c0_11 = arith.constant 0 : index
    %13 = vector.load %arg6[%c0_8, %c0_9, %c0_10, %c0_11] : memref<2x10x10x128xbf16, #tpu.memory_space<vmem>>, vector<2x1x10x128xbf16>
    tpu.vector_store %arg6[%c0_8, %c0_9, %c0_10, %c0_11], %12 {strides = array<i32>} : memref<2x10x10x128xbf16, #tpu.memory_space<vmem>>, vector<2x1x10x128xbf16>,
    %c0_12 = arith.constant 0 : index
    %c9 = arith.constant 9 : index
    %c0_13 = arith.constant 0 : index
    %c0_14 = arith.constant 0 : index
    %14 = vector.load %arg6[%c0_12, %c9, %c0_13, %c0_14] : memref<2x10x10x128xbf16, #tpu.memory_space<vmem>>, vector<2x1x10x128xbf16>
    tpu.vector_store %arg6[%c0_12, %c9, %c0_13, %c0_14], %12 {strides = array<i32>} : memref<2x10x10x128xbf16, #tpu.memory_space<vmem>>, vector<2x1x10x128xbf16>,
    %cst_15 = arith.constant 0.000000e+00 : bf16
    %15 = vector.broadcast %cst_15 : bf16 to vector<2x8x1x128xbf16>
    %c0_16 = arith.constant 0 : index
    %c1_17 = arith.constant 1 : index
    %c0_18 = arith.constant 0 : index
    %c0_19 = arith.constant 0 : index
    %16 = vector.load %arg6[%c0_16, %c1_17, %c0_18, %c0_19] : memref<2x10x10x128xbf16, #tpu.memory_space<vmem>>, vector<2x8x1x128xbf16>
    tpu.vector_store %arg6[%c0_16, %c1_17, %c0_18, %c0_19], %15 {strides = array<i32>} : memref<2x10x10x128xbf16, #tpu.memory_space<vmem>>, vector<2x8x1x128xbf16>,
    %c0_20 = arith.constant 0 : index
    %c1_21 = arith.constant 1 : index
    %c9_22 = arith.constant 9 : index
    %c0_23 = arith.constant 0 : index
    %17 = vector.load %arg6[%c0_20, %c1_21, %c9_22, %c0_23] : memref<2x10x10x128xbf16, #tpu.memory_space<vmem>>, vector<2x8x1x128xbf16>
    tpu.vector_store %arg6[%c0_20, %c1_21, %c9_22, %c0_23], %15 {strides = array<i32>} : memref<2x10x10x128xbf16, #tpu.memory_space<vmem>>, vector<2x8x1x128xbf16>,
    %18 = vector.shape_cast %11 : vector<128x128xbf16> to vector<2x8x8x128xbf16>
    %c0_24 = arith.constant 0 : index
    %c1_25 = arith.constant 1 : index
    %c1_26 = arith.constant 1 : index
    %c0_27 = arith.constant 0 : index
    %19 = vector.load %arg6[%c0_24, %c1_25, %c1_26, %c0_27] : memref<2x10x10x128xbf16, #tpu.memory_space<vmem>>, vector<2x8x8x128xbf16>
    tpu.vector_store %arg6[%c0_24, %c1_25, %c1_26, %c0_27], %18 {strides = array<i32>} : memref<2x10x10x128xbf16, #tpu.memory_space<vmem>>, vector<2x8x8x128xbf16>,
    %c0_28 = arith.constant 0 : index
    %c0_29 = arith.constant 0 : index
    %c0_30 = arith.constant 0 : index
    %c0_31 = arith.constant 0 : index
    %20 = vector.load %arg6[%c0_28, %c0_29, %c0_30, %c0_31] : memref<2x10x10x128xbf16, #tpu.memory_space<vmem>>, vector<2x8x8x128xbf16>
    %21 = vector.shape_cast %20 : vector<2x8x8x128xbf16> to vector<128x128xbf16>
    %c0_32 = arith.constant 0 : index
    %c0_33 = arith.constant 0 : index
    %22 = vector.load %arg7[%c0_32, %c0_33] : memref<128x1152xbf16, #tpu.memory_space<vmem>>, vector<128x128xbf16>
    tpu.vector_store %arg7[%c0_32, %c0_33], %21 {strides = array<i32>} : memref<128x1152xbf16, #tpu.memory_space<vmem>>, vector<128x128xbf16>,
    %c0_34 = arith.constant 0 : index
    %c0_35 = arith.constant 0 : index
    %c1_36 = arith.constant 1 : index
    %c0_37 = arith.constant 0 : index
    %23 = vector.load %arg6[%c0_34, %c0_35, %c1_36, %c0_37] : memref<2x10x10x128xbf16, #tpu.memory_space<vmem>>, vector<2x8x8x128xbf16>
    %24 = vector.shape_cast %23 : vector<2x8x8x128xbf16> to vector<128x128xbf16>
    %c0_38 = arith.constant 0 : index
    %c128 = arith.constant 128 : index
    %25 = vector.load %arg7[%c0_38, %c128] : memref<128x1152xbf16, #tpu.memory_space<vmem>>, vector<128x128xbf16>
    tpu.vector_store %arg7[%c0_38, %c128], %24 {strides = array<i32>} : memref<128x1152xbf16, #tpu.memory_space<vmem>>, vector<128x128xbf16>,
    %c0_39 = arith.constant 0 : index
    %c0_40 = arith.constant 0 : index
    %c2_41 = arith.constant 2 : index
    %c0_42 = arith.constant 0 : index
    %26 = vector.load %arg6[%c0_39, %c0_40, %c2_41, %c0_42] : memref<2x10x10x128xbf16, #tpu.memory_space<vmem>>, vector<2x8x8x128xbf16>
    %27 = vector.shape_cast %26 : vector<2x8x8x128xbf16> to vector<128x128xbf16>
    %c0_43 = arith.constant 0 : index
    %c256 = arith.constant 256 : index
    %28 = vector.load %arg7[%c0_43, %c256] : memref<128x1152xbf16, #tpu.memory_space<vmem>>, vector<128x128xbf16>
    tpu.vector_store %arg7[%c0_43, %c256], %27 {strides = array<i32>} : memref<128x1152xbf16, #tpu.memory_space<vmem>>, vector<128x128xbf16>,
    %c0_44 = arith.constant 0 : index
    %c1_45 = arith.constant 1 : index
    %c0_46 = arith.constant 0 : index
    %c0_47 = arith.constant 0 : index
    %29 = vector.load %arg6[%c0_44, %c1_45, %c0_46, %c0_47] : memref<2x10x10x128xbf16, #tpu.memory_space<vmem>>, vector<2x8x8x128xbf16>
    %30 = vector.shape_cast %29 : vector<2x8x8x128xbf16> to vector<128x128xbf16>
    %c0_48 = arith.constant 0 : index
    %c384 = arith.constant 384 : index
    %31 = vector.load %arg7[%c0_48, %c384] : memref<128x1152xbf16, #tpu.memory_space<vmem>>, vector<128x128xbf16>
    tpu.vector_store %arg7[%c0_48, %c384], %30 {strides = array<i32>} : memref<128x1152xbf16, #tpu.memory_space<vmem>>, vector<128x128xbf16>,
    %c0_49 = arith.constant 0 : index
    %c1_50 = arith.constant 1 : index
    %c1_51 = arith.constant 1 : index
    %c0_52 = arith.constant 0 : index
    %32 = vector.load %arg6[%c0_49, %c1_50, %c1_51, %c0_52] : memref<2x10x10x128xbf16, #tpu.memory_space<vmem>>, vector<2x8x8x128xbf16>
    %33 = vector.shape_cast %32 : vector<2x8x8x128xbf16> to vector<128x128xbf16>
    %c0_53 = arith.constant 0 : index
    %c512 = arith.constant 512 : index
    %34 = vector.load %arg7[%c0_53, %c512] : memref<128x1152xbf16, #tpu.memory_space<vmem>>, vector<128x128xbf16>
    tpu.vector_store %arg7[%c0_53, %c512], %33 {strides = array<i32>} : memref<128x1152xbf16, #tpu.memory_space<vmem>>, vector<128x128xbf16>,
    %c0_54 = arith.constant 0 : index
    %c1_55 = arith.constant 1 : index
    %c2_56 = arith.constant 2 : index
    %c0_57 = arith.constant 0 : index
    %35 = vector.load %arg6[%c0_54, %c1_55, %c2_56, %c0_57] : memref<2x10x10x128xbf16, #tpu.memory_space<vmem>>, vector<2x8x8x128xbf16>
    %36 = vector.shape_cast %35 : vector<2x8x8x128xbf16> to vector<128x128xbf16>
    %c0_58 = arith.constant 0 : index
    %c640 = arith.constant 640 : index
    %37 = vector.load %arg7[%c0_58, %c640] : memref<128x1152xbf16, #tpu.memory_space<vmem>>, vector<128x128xbf16>
    tpu.vector_store %arg7[%c0_58, %c640], %36 {strides = array<i32>} : memref<128x1152xbf16, #tpu.memory_space<vmem>>, vector<128x128xbf16>,
    %c0_59 = arith.constant 0 : index
    %c2_60 = arith.constant 2 : index
    %c0_61 = arith.constant 0 : index
    %c0_62 = arith.constant 0 : index
    %38 = vector.load %arg6[%c0_59, %c2_60, %c0_61, %c0_62] : memref<2x10x10x128xbf16, #tpu.memory_space<vmem>>, vector<2x8x8x128xbf16>
    %39 = vector.shape_cast %38 : vector<2x8x8x128xbf16> to vector<128x128xbf16>
    %c0_63 = arith.constant 0 : index
    %c768 = arith.constant 768 : index
    %40 = vector.load %arg7[%c0_63, %c768] : memref<128x1152xbf16, #tpu.memory_space<vmem>>, vector<128x128xbf16>
    tpu.vector_store %arg7[%c0_63, %c768], %39 {strides = array<i32>} : memref<128x1152xbf16, #tpu.memory_space<vmem>>, vector<128x128xbf16>,
    %c0_64 = arith.constant 0 : index
    %c2_65 = arith.constant 2 : index
    %c1_66 = arith.constant 1 : index
    %c0_67 = arith.constant 0 : index
    %41 = vector.load %arg6[%c0_64, %c2_65, %c1_66, %c0_67] : memref<2x10x10x128xbf16, #tpu.memory_space<vmem>>, vector<2x8x8x128xbf16>
    %42 = vector.shape_cast %41 : vector<2x8x8x128xbf16> to vector<128x128xbf16>
    %c0_68 = arith.constant 0 : index
    %c896 = arith.constant 896 : index
    %43 = vector.load %arg7[%c0_68, %c896] : memref<128x1152xbf16, #tpu.memory_space<vmem>>, vector<128x128xbf16>
    tpu.vector_store %arg7[%c0_68, %c896], %42 {strides = array<i32>} : memref<128x1152xbf16, #tpu.memory_space<vmem>>, vector<128x128xbf16>,
    %c0_69 = arith.constant 0 : index
    %c2_70 = arith.constant 2 : index
    %c2_71 = arith.constant 2 : index
    %c0_72 = arith.constant 0 : index
    %44 = vector.load %arg6[%c0_69, %c2_70, %c2_71, %c0_72] : memref<2x10x10x128xbf16, #tpu.memory_space<vmem>>, vector<2x8x8x128xbf16>
    %45 = vector.shape_cast %44 : vector<2x8x8x128xbf16> to vector<128x128xbf16>
    %c0_73 = arith.constant 0 : index
    %c1024 = arith.constant 1024 : index
    %46 = vector.load %arg7[%c0_73, %c1024] : memref<128x1152xbf16, #tpu.memory_space<vmem>>, vector<128x128xbf16>
    tpu.vector_store %arg7[%c0_73, %c1024], %45 {strides = array<i32>} : memref<128x1152xbf16, #tpu.memory_space<vmem>>, vector<128x128xbf16>,
    %c0_74 = arith.constant 0 : index
    %c0_75 = arith.constant 0 : index
    %47 = vector.load %arg7[%c0_74, %c0_75] : memref<128x1152xbf16, #tpu.memory_space<vmem>>, vector<128x1152xbf16>
    %c0_76 = arith.constant 0 : index
    %c0_77 = arith.constant 0 : index
    %48 = vector.load %arg2[%c0_76, %c0_77] : memref<1152x128xbf16, #tpu.memory_space<vmem>>, vector<1152x128xbf16>
    %cst_78 = arith.constant dense<0.000000e+00> : vector<128x128xf32>
    %49 = tpu.matmul %47, %48, %cst_78 {dimension_numbers = #tpu.dot_dimension_numbers<[1], [0], [0], [1], [0, 0, 1, 1], [], []>} : vector<128x1152xbf16>, vector<1152x128xbf16>, vector<128x128xf32> -> vector<128x128xf32>
    %cst_79 = arith.constant dense<0.000000e+00> : vector<128xf32>
    %50 = vector.multi_reduction <add>, %49, %cst_79 [0] : vector<128x128xf32> to vector<128xf32>
    %51 = vector.shape_cast %50 : vector<128xf32> to vector<1x128xf32>
    %52 = arith.mulf %49, %49 : vector<128x128xf32>
    %cst_80 = arith.constant dense<0.000000e+00> : vector<128xf32>
    %53 = vector.multi_reduction <add>, %52, %cst_80 [0] : vector<128x128xf32> to vector<128xf32>
    %54 = vector.shape_cast %53 : vector<128xf32> to vector<1x128xf32>
    %cst_81 = arith.constant 7.812500e-03 : f32
    %55 = vector.broadcast %cst_81 : f32 to vector<1x128xf32>
    %56 = arith.mulf %51, %55 : vector<1x128xf32>
    %cst_82 = arith.constant 7.812500e-03 : f32
    %57 = vector.broadcast %cst_82 : f32 to vector<1x128xf32>
    %58 = arith.mulf %54, %57 : vector<1x128xf32>
    %59 = arith.mulf %56, %56 : vector<1x128xf32>
    %60 = arith.subf %58, %59 : vector<1x128xf32>
    %cst_83 = arith.constant 0.000000e+00 : f32
    %61 = vector.broadcast %cst_83 : f32 to vector<1x128xf32>
    %62 = arith.maximumf %60, %61 : vector<1x128xf32>
    %c0_84 = arith.constant 0 : index
    %c0_85 = arith.constant 0 : index
    %63 = vector.load %arg3[%c0_84, %c0_85] : memref<1x128xf32, #tpu.memory_space<vmem>>, vector<1x128xf32>
    %cst_86 = arith.constant 9.99999974E-6 : f32
    %64 = vector.broadcast %cst_86 : f32 to vector<1x128xf32>
    %65 = arith.addf %62, %64 : vector<1x128xf32>
    %66 = math.rsqrt %65 : vector<1x128xf32>
    %67 = arith.mulf %63, %66 : vector<1x128xf32>
    %68 = vector.broadcast %56 : vector<1x128xf32> to vector<128x128xf32>
    %69 = arith.subf %49, %68 : vector<128x128xf32>
    %70 = vector.broadcast %67 : vector<1x128xf32> to vector<128x128xf32>
    %71 = arith.mulf %69, %70 : vector<128x128xf32>
    %c0_87 = arith.constant 0 : index
    %c0_88 = arith.constant 0 : index
    %72 = vector.load %arg4[%c0_87, %c0_88] : memref<1x128xf32, #tpu.memory_space<vmem>>, vector<1x128xf32>
    %73 = vector.broadcast %72 : vector<1x128xf32> to vector<128x128xf32>
    %74 = arith.addf %71, %73 : vector<128x128xf32>
    %cst_89 = arith.constant 0.00999999977 : f32
    %75 = vector.broadcast %cst_89 : f32 to vector<128x128xf32>
    %76 = arith.mulf %75, %74 : vector<128x128xf32>
    %77 = arith.maximumf %74, %76 : vector<128x128xf32>
    %78 = arith.truncf %77 : vector<128x128xf32> to vector<128x128xbf16>
    %c0_90 = arith.constant 0 : index
    %c0_91 = arith.constant 0 : index
    %79 = vector.load %arg5[%c0_90, %c0_91] : memref<128x128xbf16, #tpu.memory_space<vmem>>, vector<128x128xbf16>
    tpu.vector_store %arg5[%c0_90, %c0_91], %78 {strides = array<i32>} : memref<128x128xbf16, #tpu.memory_space<vmem>>, vector<128x128xbf16>,
    return
  }
  func.func @transform_0(%arg0: i32) -> (i32, i32, i32) {
    %c0_i32 = arith.constant 0 : i32
    %c0_i32_0 = arith.constant 0 : i32
    %c0_i32_1 = arith.constant 0 : i32
    %c0_i32_2 = arith.constant 0 : i32
    return %c0_i32, %c0_i32_0, %c0_i32_1 : i32, i32, i32
  }
  func.func @transform_1(%arg0: i32) -> (i32, i32) {
    %c0_i32 = arith.constant 0 : i32
    %c0_i32_0 = arith.constant 0 : i32
    return %c0_i32, %arg0 : i32, i32
  }
  func.func @transform_2(%arg0: i32) -> (i32, i32) {
    %c0_i32 = arith.constant 0 : i32
    %c0_i32_0 = arith.constant 0 : i32
    return %c0_i32, %arg0 : i32, i32
  }
  func.func @transform_3(%arg0: i32) -> (i32, i32) {
    %c0_i32 = arith.constant 0 : i32
    %c0_i32_0 = arith.constant 0 : i32
    return %c0_i32, %arg0 : i32, i32
  }
  func.func @transform_4(%arg0: i32) -> (i32, i32) {
    %c0_i32 = arith.constant 0 : i32
    %c0_i32_0 = arith.constant 0 : i32
    return %c0_i32, %arg0 : i32, i32
  }
}

</mosaic_0001>

<llo_original>
// kernel: down_forward.3
$region0: #{down_forward.3}
  #allocation0 [shape = 'u32[]', space=smem, size = 0x4, offset = 0x4, fixed_abs, tag = 'smem constant byte address 0x4 - core index']
  #allocation1 [shape = 'u32[72,128]{1,0:T(1,128)}', space=vmem, size = 0x9000, scoped, tag = 'internal scratch']
  #allocation2 [shape = 'bf16[2,10,10,128]{3,2,1,0:T(8,128)(2,1)}', space=vmem, size = 0x14000, scoped, tag = 'scratch operand']
  #allocation3 [shape = 'bf16[128,1152]{1,0:T(8,128)(2,1)}', space=vmem, size = 0x48000, scoped, tag = 'scratch operand']
  %s0 = inlined_call_operand.vmem [shape: bf16[128,128], index: 0, kind: input, shape index: {}]
  %s1 = inlined_call_operand.vmem [shape: bf16[1152,128], index: 1, kind: input, shape index: {}]
  %s2 = inlined_call_operand.vmem [shape: f32[1,128], index: 2, kind: input, shape index: {}]
  %s3 = inlined_call_operand.vmem [shape: f32[1,128], index: 3, kind: input, shape index: {}]
  %s4 = inlined_call_operand.vmem [shape: f32[128,128], index: 4, kind: output, shape index: {}]
  %s5 = sld [smem:[#allocation0]]
  $region26: #{down_forward.3} parent=0
    _
  %s7 = ssub.s32 1, %s5
  %s8 = scalar_select 0, %s7, %s5
  // Predicated region
  $region2: #{down_forward.3} parent=0 // pred_check
    _
  $region3: #{down_forward.3} parent=0 // pred_check_branch
    %10 = sbr.rel (0) target = $region5
  $region4: #{down_forward.3} parent=0 // pred_region
    _
  $region5: #{down_forward.3} parent=0 // pred_fallthru
    _
  // Predicated region
  $region6: #{down_forward.3} parent=0 // pred_check
    _
  $region7: #{down_forward.3} parent=0 // pred_check_branch
    %12 = sbr.rel (0) target = $region9
  $region8: #{down_forward.3} parent=0 // pred_region
    _
  $region9: #{down_forward.3} parent=0 // pred_fallthru
    _
  // Predicated region
  $region10: #{down_forward.3} parent=0 // pred_check
    _
  $region11: #{down_forward.3} parent=0 // pred_check_branch
    %14 = sbr.rel (0) target = $region13
  $region12: #{down_forward.3} parent=0 // pred_region
    _
  $region13: #{down_forward.3} parent=0 // pred_fallthru
    _
  // Predicated region
  $region14: #{down_forward.3} parent=0 // pred_check
    _
  $region15: #{down_forward.3} parent=0 // pred_check_branch
    %16 = sbr.rel (0) target = $region17
  $region16: #{down_forward.3} parent=0 // pred_region
    _
  $region17: #{down_forward.3} parent=0 // pred_fallthru
    _
  %v18 = vld [vmem:[%s0] sm:$0xf]
  %v19 = vld [vmem:[%s0 + $0x4] sm:$0xf]
  %v20 = vld [vmem:[%s0 + $0x8] sm:$0xf]
  %v21 = vld [vmem:[%s0 + $0xc] sm:$0xf]
  %v22 = vld [vmem:[%s0 + $0x10] sm:$0xf]
  %v23 = vld [vmem:[%s0 + $0x14] sm:$0xf]
  %v24 = vld [vmem:[%s0 + $0x18] sm:$0xf]
  %v25 = vld [vmem:[%s0 + $0x1c] sm:$0xf]
  %v26 = vld [vmem:[%s0 + $0x20] sm:$0xf]
  %v27 = vld [vmem:[%s0 + $0x24] sm:$0xf]
  %v28 = vld [vmem:[%s0 + $0x28] sm:$0xf]
  %v29 = vld [vmem:[%s0 + $0x2c] sm:$0xf]
  %v30 = vld [vmem:[%s0 + $0x30] sm:$0xf]
  %v31 = vld [vmem:[%s0 + $0x34] sm:$0xf]
  %v32 = vld [vmem:[%s0 + $0x38] sm:$0xf]
  %v33 = vld [vmem:[%s0 + $0x3c] sm:$0xf]
  %34 = vst [vmem:[#allocation2] sm:$0xf] 0
  %35 = vst [vmem:[#allocation2 + $0x4] sm:$0x1] 0
  %36 = vst [vmem:[#allocation2 + $0x50] sm:$0xf] 0
  %37 = vst [vmem:[#allocation2 + $0x54] sm:$0x1] 0
  %s38 = scalar_lea.vmem [#allocation2], 72
  %39 = vst [vmem:[%s38] sm:$0xf] 0
  %40 = vst [vmem:[%s38 + $0x4] sm:$0x1] 0
  %41 = vst [vmem:[%s38 + $0x50] sm:$0xf] 0
  %42 = vst [vmem:[%s38 + $0x54] sm:$0x1] 0
  %s43 = scalar_lea.vmem [#allocation2], 8
  %vm44 = vcmask 1040384
  %vm45 = vsmask.f32 256
  %vm46 = vmand %vm44, %vm45
  %v47 = vld [vmem:[%s43] sm:$0x1]
  %v48 = vsel %vm46, 0, %v47
  %49 = vst [vmem:[%s43] sm:$0x1] %v48
  %v50 = vld [vmem:[%s43 + $0x8] sm:$0x1]
  %v51 = vsel %vm46, 0, %v50
  %52 = vst [vmem:[%s43 + $0x8] sm:$0x1] %v51
  %v53 = vld [vmem:[%s43 + $0x10] sm:$0x1]
  %v54 = vsel %vm46, 0, %v53
  %55 = vst [vmem:[%s43 + $0x10] sm:$0x1] %v54
  %v56 = vld [vmem:[%s43 + $0x18] sm:$0x1]
  %v57 = vsel %vm46, 0, %v56
  %58 = vst [vmem:[%s43 + $0x18] sm:$0x1] %v57
  %v59 = vld [vmem:[%s43 + $0x20] sm:$0x1]
  %v60 = vsel %vm46, 0, %v59
  %61 = vst [vmem:[%s43 + $0x20] sm:$0x1] %v60
  %v62 = vld [vmem:[%s43 + $0x28] sm:$0x1]
  %v63 = vsel %vm46, 0, %v62
  %64 = vst [vmem:[%s43 + $0x28] sm:$0x1] %v63
  %v65 = vld [vmem:[%s43 + $0x30] sm:$0x1]
  %v66 = vsel %vm46, 0, %v65
  %67 = vst [vmem:[%s43 + $0x30] sm:$0x1] %v66
  %v68 = vld [vmem:[%s43 + $0x38] sm:$0x1]
  %v69 = vsel %vm46, 0, %v68
  %70 = vst [vmem:[%s43 + $0x38] sm:$0x1] %v69
  %v71 = vld [vmem:[%s43 + $0x50] sm:$0x1]
  %v72 = vsel %vm46, 0, %v71
  %73 = vst [vmem:[%s43 + $0x50] sm:$0x1] %v72
  %v74 = vld [vmem:[%s43 + $0x58] sm:$0x1]
  %v75 = vsel %vm46, 0, %v74
  %76 = vst [vmem:[%s43 + $0x58] sm:$0x1] %v75
  %v77 = vld [vmem:[%s43 + $0x60] sm:$0x1]
  %v78 = vsel %vm46, 0, %v77
  %79 = vst [vmem:[%s43 + $0x60] sm:$0x1] %v78
  %v80 = vld [vmem:[%s43 + $0x68] sm:$0x1]
  %v81 = vsel %vm46, 0, %v80
  %82 = vst [vmem:[%s43 + $0x68] sm:$0x1] %v81
  %v83 = vld [vmem:[%s43 + $0x70] sm:$0x1]
  %v84 = vsel %vm46, 0, %v83
  %85 = vst [vmem:[%s43 + $0x70] sm:$0x1] %v84
  %v86 = vld [vmem:[%s43 + $0x78] sm:$0x1]
  %v87 = vsel %vm46, 0, %v86
  %88 = vst [vmem:[%s43 + $0x78] sm:$0x1] %v87
  %v89 = vld [vmem:[%s43 + $0x80] sm:$0x1]
  %v90 = vsel %vm46, 0, %v89
  %91 = vst [vmem:[%s43 + $0x80] sm:$0x1] %v90
  %v92 = vld [vmem:[%s43 + $0x88] sm:$0x1]
  %v93 = vsel %vm46, 0, %v92
  %94 = vst [vmem:[%s43 + $0x88] sm:$0x1] %v93
  %vm95 = vsmask.f32 7938
  %vm96 = vmand %vm44, %vm95
  %v97 = vld [vmem:[%s43 + $0x4] sm:$0x1]
  %v98 = vsel %vm96, 0, %v97
  %99 = vst [vmem:[%s43 + $0x4] sm:$0x1] %v98
  %v100 = vld [vmem:[%s43 + $0xc] sm:$0x1]
  %v101 = vsel %vm96, 0, %v100
  %102 = vst [vmem:[%s43 + $0xc] sm:$0x1] %v101
  %v103 = vld [vmem:[%s43 + $0x14] sm:$0x1]
  %v104 = vsel %vm96, 0, %v103
  %105 = vst [vmem:[%s43 + $0x14] sm:$0x1] %v104
  %v106 = vld [vmem:[%s43 + $0x1c] sm:$0x1]
  %v107 = vsel %vm96, 0, %v106
  %108 = vst [vmem:[%s43 + $0x1c] sm:$0x1] %v107
  %v109 = vld [vmem:[%s43 + $0x24] sm:$0x1]
  %v110 = vsel %vm96, 0, %v109
  %111 = vst [vmem:[%s43 + $0x24] sm:$0x1] %v110
  %v112 = vld [vmem:[%s43 + $0x2c] sm:$0x1]
  %v113 = vsel %vm96, 0, %v112
  %114 = vst [vmem:[%s43 + $0x2c] sm:$0x1] %v113
  %v115 = vld [vmem:[%s43 + $0x34] sm:$0x1]
  %v116 = vsel %vm96, 0, %v115
  %117 = vst [vmem:[%s43 + $0x34] sm:$0x1] %v116
  %v118 = vld [vmem:[%s43 + $0x3c] sm:$0x1]
  %v119 = vsel %vm96, 0, %v118
  %120 = vst [vmem:[%s43 + $0x3c] sm:$0x1] %v119
  %v121 = vld [vmem:[%s43 + $0x54] sm:$0x1]
  %v122 = vsel %vm96, 0, %v121
  %123 = vst [vmem:[%s43 + $0x54] sm:$0x1] %v122
  %v124 = vld [vmem:[%s43 + $0x5c] sm:$0x1]
  %v125 = vsel %vm96, 0, %v124
  %126 = vst [vmem:[%s43 + $0x5c] sm:$0x1] %v125
  %v127 = vld [vmem:[%s43 + $0x64] sm:$0x1]
  %v128 = vsel %vm96, 0, %v127
  %129 = vst [vmem:[%s43 + $0x64] sm:$0x1] %v128
  %v130 = vld [vmem:[%s43 + $0x6c] sm:$0x1]
  %v131 = vsel %vm96, 0, %v130
  %132 = vst [vmem:[%s43 + $0x6c] sm:$0x1] %v131
  %v133 = vld [vmem:[%s43 + $0x74] sm:$0x1]
  %v134 = vsel %vm96, 0, %v133
  %135 = vst [vmem:[%s43 + $0x74] sm:$0x1] %v134
  %v136 = vld [vmem:[%s43 + $0x7c] sm:$0x1]
  %v137 = vsel %vm96, 0, %v136
  %138 = vst [vmem:[%s43 + $0x7c] sm:$0x1] %v137
  %v139 = vld [vmem:[%s43 + $0x84] sm:$0x1]
  %v140 = vsel %vm96, 0, %v139
  %141 = vst [vmem:[%s43 + $0x84] sm:$0x1] %v140
  %v142 = vld [vmem:[%s43 + $0x8c] sm:$0x1]
  %v143 = vsel %vm96, 0, %v142
  %144 = vst [vmem:[%s43 + $0x8c] sm:$0x1] %v143
  %v146 = vshrl.u32 %v18, 16
  %v148 = vrot.slane %v146, 7
  %v149 = vshll.u32 %v18, 16
  %v151 = vor.u32 %v148, %v149
  %v152 = vrot.slane %v148, 4
  %v154 = vshrl.u32 %v19, 16
  %v156 = vrot.slane %v154, 7
  %v157 = vshll.u32 %v19, 16
  %v159 = vor.u32 %v156, %v157
  %v160 = vrot.slane %v156, 4
  %v162 = vshrl.u32 %v20, 16
  %v164 = vrot.slane %v162, 7
  %v165 = vshll.u32 %v20, 16
  %v167 = vor.u32 %v164, %v165
  %v168 = vrot.slane %v164, 4
  %v170 = vshrl.u32 %v21, 16
  %v172 = vrot.slane %v170, 7
  %v173 = vshll.u32 %v21, 16
  %v175 = vor.u32 %v172, %v173
  %v176 = vrot.slane %v172, 4
  %v178 = vshrl.u32 %v22, 16
  %v180 = vrot.slane %v178, 7
  %v181 = vshll.u32 %v22, 16
  %v183 = vor.u32 %v180, %v181
  %v184 = vrot.slane %v180, 4
  %v186 = vshrl.u32 %v23, 16
  %v188 = vrot.slane %v186, 7
  %v189 = vshll.u32 %v23, 16
  %v191 = vor.u32 %v188, %v189
  %v192 = vrot.slane %v188, 4
  %v194 = vshrl.u32 %v24, 16
  %v196 = vrot.slane %v194, 7
  %v197 = vshll.u32 %v24, 16
  %v199 = vor.u32 %v196, %v197
  %v200 = vrot.slane %v196, 4
  %v202 = vshrl.u32 %v25, 16
  %v204 = vrot.slane %v202, 7
  %v205 = vshll.u32 %v25, 16
  %v207 = vor.u32 %v204, %v205
  %v208 = vrot.slane %v204, 4
  %v210 = vshrl.u32 %v26, 16
  %v212 = vrot.slane %v210, 7
  %v213 = vshll.u32 %v26, 16
  %v215 = vor.u32 %v212, %v213
  %v216 = vrot.slane %v212, 4
  %v218 = vshrl.u32 %v27, 16
  %v220 = vrot.slane %v218, 7
  %v221 = vshll.u32 %v27, 16
  %v223 = vor.u32 %v220, %v221
  %v224 = vrot.slane %v220, 4
  %v226 = vshrl.u32 %v28, 16
  %v228 = vrot.slane %v226, 7
  %v229 = vshll.u32 %v28, 16
  %v231 = vor.u32 %v228, %v229
  %v232 = vrot.slane %v228, 4
  %v234 = vshrl.u32 %v29, 16
  %v236 = vrot.slane %v234, 7
  %v237 = vshll.u32 %v29, 16
  %v239 = vor.u32 %v236, %v237
  %v240 = vrot.slane %v236, 4
  %v242 = vshrl.u32 %v30, 16
  %v244 = vrot.slane %v242, 7
  %v245 = vshll.u32 %v30, 16
  %v247 = vor.u32 %v244, %v245
  %v248 = vrot.slane %v244, 4
  %v250 = vshrl.u32 %v31, 16
  %v252 = vrot.slane %v250, 7
  %v253 = vshll.u32 %v31, 16
  %v255 = vor.u32 %v252, %v253
  %v256 = vrot.slane %v252, 4
  %v258 = vshrl.u32 %v32, 16
  %v260 = vrot.slane %v258, 7
  %v261 = vshll.u32 %v32, 16
  %v263 = vor.u32 %v260, %v261
  %v264 = vrot.slane %v260, 4
  %v266 = vshrl.u32 %v33, 16
  %v268 = vrot.slane %v266, 7
  %v269 = vshll.u32 %v33, 16
  %v271 = vor.u32 %v268, %v269
  %v272 = vrot.slane %v268, 4
  %vm305 = vcmask 1043456
  %vm306 = vmand %vm305, %vm95
  %v307 = vld [vmem:[%s43] sm:$0xf]
  %v308 = vsel %vm306, %v151, %v307
  %309 = vst [vmem:[%s43] sm:$0xf] %v308
  %v310 = vld [vmem:[%s43 + $0x4] sm:$0x1]
  %v311 = vsel %vm46, %v152, %v310
  %312 = vst [vmem:[%s43 + $0x4] sm:$0x1] %v311
  %v313 = vld [vmem:[%s43 + $0x8] sm:$0xf]
  %v314 = vsel %vm306, %v159, %v313
  %315 = vst [vmem:[%s43 + $0x8] sm:$0xf] %v314
  %v316 = vld [vmem:[%s43 + $0xc] sm:$0x1]
  %v317 = vsel %vm46, %v160, %v316
  %318 = vst [vmem:[%s43 + $0xc] sm:$0x1] %v317
  %v319 = vld [vmem:[%s43 + $0x10] sm:$0xf]
  %v320 = vsel %vm306, %v167, %v319
  %321 = vst [vmem:[%s43 + $0x10] sm:$0xf] %v320
  %v322 = vld [vmem:[%s43 + $0x14] sm:$0x1]
  %v323 = vsel %vm46, %v168, %v322
  %324 = vst [vmem:[%s43 + $0x14] sm:$0x1] %v323
  %v325 = vld [vmem:[%s43 + $0x18] sm:$0xf]
  %v326 = vsel %vm306, %v175, %v325
  %327 = vst [vmem:[%s43 + $0x18] sm:$0xf] %v326
  %v328 = vld [vmem:[%s43 + $0x1c] sm:$0x1]
  %v329 = vsel %vm46, %v176, %v328
  %330 = vst [vmem:[%s43 + $0x1c] sm:$0x1] %v329
  %v331 = vld [vmem:[%s43 + $0x20] sm:$0xf]
  %v332 = vsel %vm306, %v183, %v331
  %333 = vst [vmem:[%s43 + $0x20] sm:$0xf] %v332
  %v334 = vld [vmem:[%s43 + $0x24] sm:$0x1]
  %v335 = vsel %vm46, %v184, %v334
  %336 = vst [vmem:[%s43 + $0x24] sm:$0x1] %v335
  %v337 = vld [vmem:[%s43 + $0x28] sm:$0xf]
  %v338 = vsel %vm306, %v191, %v337
  %339 = vst [vmem:[%s43 + $0x28] sm:$0xf] %v338
  %v340 = vld [vmem:[%s43 + $0x2c] sm:$0x1]
  %v341 = vsel %vm46, %v192, %v340
  %342 = vst [vmem:[%s43 + $0x2c] sm:$0x1] %v341
  %v343 = vld [vmem:[%s43 + $0x30] sm:$0xf]
  %v344 = vsel %vm306, %v199, %v343
  %345 = vst [vmem:[%s43 + $0x30] sm:$0xf] %v344
  %v346 = vld [vmem:[%s43 + $0x34] sm:$0x1]
  %v347 = vsel %vm46, %v200, %v346
  %348 = vst [vmem:[%s43 + $0x34] sm:$0x1] %v347
  %v349 = vld [vmem:[%s43 + $0x38] sm:$0xf]
  %v350 = vsel %vm306, %v207, %v349
  %351 = vst [vmem:[%s43 + $0x38] sm:$0xf] %v350
  %v352 = vld [vmem:[%s43 + $0x3c] sm:$0x1]
  %v353 = vsel %vm46, %v208, %v352
  %354 = vst [vmem:[%s43 + $0x3c] sm:$0x1] %v353
  %v355 = vld [vmem:[%s43 + $0x50] sm:$0xf]
  %v356 = vsel %vm306, %v215, %v355
  %357 = vst [vmem:[%s43 + $0x50] sm:$0xf] %v356
  %v358 = vld [vmem:[%s43 + $0x54] sm:$0x1]
  %v359 = vsel %vm46, %v216, %v358
  %360 = vst [vmem:[%s43 + $0x54] sm:$0x1] %v359
  %v361 = vld [vmem:[%s43 + $0x58] sm:$0xf]
  %v362 = vsel %vm306, %v223, %v361
  %363 = vst [vmem:[%s43 + $0x58] sm:$0xf] %v362
  %v364 = vld [vmem:[%s43 + $0x5c] sm:$0x1]
  %v365 = vsel %vm46, %v224, %v364
  %366 = vst [vmem:[%s43 + $0x5c] sm:$0x1] %v365
  %v367 = vld [vmem:[%s43 + $0x60] sm:$0xf]
  %v368 = vsel %vm306, %v231, %v367
  %369 = vst [vmem:[%s43 + $0x60] sm:$0xf] %v368
  %v370 = vld [vmem:[%s43 + $0x64] sm:$0x1]
  %v371 = vsel %vm46, %v232, %v370
  %372 = vst [vmem:[%s43 + $0x64] sm:$0x1] %v371
  %v373 = vld [vmem:[%s43 + $0x68] sm:$0xf]
  %v374 = vsel %vm306, %v239, %v373
  %375 = vst [vmem:[%s43 + $0x68] sm:$0xf] %v374
  %v376 = vld [vmem:[%s43 + $0x6c] sm:$0x1]
  %v377 = vsel %vm46, %v240, %v376
  %378 = vst [vmem:[%s43 + $0x6c] sm:$0x1] %v377
  %v379 = vld [vmem:[%s43 + $0x70] sm:$0xf]
  %v380 = vsel %vm306, %v247, %v379
  %381 = vst [vmem:[%s43 + $0x70] sm:$0xf] %v380
  %v382 = vld [vmem:[%s43 + $0x74] sm:$0x1]
  %v383 = vsel %vm46, %v248, %v382
  %384 = vst [vmem:[%s43 + $0x74] sm:$0x1] %v383
  %v385 = vld [vmem:[%s43 + $0x78] sm:$0xf]
  %v386 = vsel %vm306, %v255, %v385
  %387 = vst [vmem:[%s43 + $0x78] sm:$0xf] %v386
  %v388 = vld [vmem:[%s43 + $0x7c] sm:$0x1]
  %v389 = vsel %vm46, %v256, %v388
  %390 = vst [vmem:[%s43 + $0x7c] sm:$0x1] %v389
  %v391 = vld [vmem:[%s43 + $0x80] sm:$0xf]
  %v392 = vsel %vm306, %v263, %v391
  %393 = vst [vmem:[%s43 + $0x80] sm:$0xf] %v392
  %v394 = vld [vmem:[%s43 + $0x84] sm:$0x1]
  %v395 = vsel %vm46, %v264, %v394
  %396 = vst [vmem:[%s43 + $0x84] sm:$0x1] %v395
  %v397 = vld [vmem:[%s43 + $0x88] sm:$0xf]
  %v398 = vsel %vm306, %v271, %v397
  %399 = vst [vmem:[%s43 + $0x88] sm:$0xf] %v398
  %v400 = vld [vmem:[%s43 + $0x8c] sm:$0x1]
  %v401 = vsel %vm46, %v272, %v400
  %402 = vst [vmem:[%s43 + $0x8c] sm:$0x1] %v401
  %v403 = vld [vmem:[#allocation2] sm:$0xf]
  %v404 = vld [vmem:[#allocation2 + $0x8] sm:$0xf]
  %v405 = vld [vmem:[#allocation2 + $0x10] sm:$0xf]
  %v406 = vld [vmem:[#allocation2 + $0x18] sm:$0xf]
  %v407 = vld [vmem:[#allocation2 + $0x20] sm:$0xf]
  %v408 = vld [vmem:[#allocation2 + $0x28] sm:$0xf]
  %v409 = vld [vmem:[#allocation2 + $0x30] sm:$0xf]
  %v410 = vld [vmem:[#allocation2 + $0x38] sm:$0xf]
  %v411 = vld [vmem:[#allocation2 + $0x50] sm:$0xf]
  %v412 = vld [vmem:[#allocation2 + $0x58] sm:$0xf]
  %v413 = vld [vmem:[#allocation2 + $0x60] sm:$0xf]
  %v414 = vld [vmem:[#allocation2 + $0x68] sm:$0xf]
  %v415 = vld [vmem:[#allocation2 + $0x70] sm:$0xf]
  %v416 = vld [vmem:[#allocation2 + $0x78] sm:$0xf]
  %v417 = vld [vmem:[#allocation2 + $0x80] sm:$0xf]
  %v418 = vld [vmem:[#allocation2 + $0x88] sm:$0xf]
  %419 = vst [vmem:[#allocation3] sm:$0xf] %v403
  %420 = vst [vmem:[#allocation3 + $0x24] sm:$0xf] %v404
  %421 = vst [vmem:[#allocation3 + $0x48] sm:$0xf] %v405
  %422 = vst [vmem:[#allocation3 + $0x6c] sm:$0xf] %v406
  %423 = vst [vmem:[#allocation3 + $0x90] sm:$0xf] %v407
  %424 = vst [vmem:[#allocation3 + $0xb4] sm:$0xf] %v408
  %425 = vst [vmem:[#allocation3 + $0xd8] sm:$0xf] %v409
  %426 = vst [vmem:[#allocation3 + $0xfc] sm:$0xf] %v410
  %427 = vst [vmem:[#allocation3 + $0x120] sm:$0xf] %v411
  %428 = vst [vmem:[#allocation3 + $0x144] sm:$0xf] %v412
  %429 = vst [vmem:[#allocation3 + $0x168] sm:$0xf] %v413
  %430 = vst [vmem:[#allocation3 + $0x18c] sm:$0xf] %v414
  %431 = vst [vmem:[#allocation3 + $0x1b0] sm:$0xf] %v415
  %432 = vst [vmem:[#allocation3 + $0x1d4] sm:$0xf] %v416
  %433 = vst [vmem:[#allocation3 + $0x1f8] sm:$0xf] %v417
  %434 = vst [vmem:[#allocation3 + $0x21c] sm:$0xf] %v418
  %v435 = vld [vmem:[#allocation2] sm:$0xf]
  %v436 = vld [vmem:[#allocation2 + $0x4] sm:$0x1]
  %v437 = vld [vmem:[#allocation2 + $0x8] sm:$0xf]
  %v438 = vld [vmem:[#allocation2 + $0xc] sm:$0x1]
  %v439 = vld [vmem:[#allocation2 + $0x10] sm:$0xf]
  %v440 = vld [vmem:[#allocation2 + $0x14] sm:$0x1]
  %v441 = vld [vmem:[#allocation2 + $0x18] sm:$0xf]
  %v442 = vld [vmem:[#allocation2 + $0x1c] sm:$0x1]
  %v443 = vld [vmem:[#allocation2 + $0x20] sm:$0xf]
  %v444 = vld [vmem:[#allocation2 + $0x24] sm:$0x1]
  %v445 = vld [vmem:[#allocation2 + $0x28] sm:$0xf]
  %v446 = vld [vmem:[#allocation2 + $0x2c] sm:$0x1]
  %v447 = vld [vmem:[#allocation2 + $0x30] sm:$0xf]
  %v448 = vld [vmem:[#allocation2 + $0x34] sm:$0x1]
  %v449 = vld [vmem:[#allocation2 + $0x38] sm:$0xf]
  %v450 = vld [vmem:[#allocation2 + $0x3c] sm:$0x1]
  %v451 = vld [vmem:[#allocation2 + $0x50] sm:$0xf]
  %v452 = vld [vmem:[#allocation2 + $0x54] sm:$0x1]
  %v453 = vld [vmem:[#allocation2 + $0x58] sm:$0xf]
  %v454 = vld [vmem:[#allocation2 + $0x5c] sm:$0x1]
  %v455 = vld [vmem:[#allocation2 + $0x60] sm:$0xf]
  %v456 = vld [vmem:[#allocation2 + $0x64] sm:$0x1]
  %v457 = vld [vmem:[#allocation2 + $0x68] sm:$0xf]
  %v458 = vld [vmem:[#allocation2 + $0x6c] sm:$0x1]
  %v459 = vld [vmem:[#allocation2 + $0x70] sm:$0xf]
  %v460 = vld [vmem:[#allocation2 + $0x74] sm:$0x1]
  %v461 = vld [vmem:[#allocation2 + $0x78] sm:$0xf]
  %v462 = vld [vmem:[#allocation2 + $0x7c] sm:$0x1]
  %v463 = vld [vmem:[#allocation2 + $0x80] sm:$0xf]
  %v464 = vld [vmem:[#allocation2 + $0x84] sm:$0x1]
  %v465 = vld [vmem:[#allocation2 + $0x88] sm:$0xf]
  %v466 = vld [vmem:[#allocation2 + $0x8c] sm:$0x1]
  %vm467 = vsmask.f32 3328
  %vm468 = vsmask.f32 7440
  %vm469 = vmor %vm467, %vm468
  %v471 = vshrl.u32 %v435, 16
  %v473 = vrot.slane %v471, 4
  %v474 = vshll.u32 %v435, 16
  %v476 = vrot.slane %v474, 5
  %v477 = vor.u32 %v473, %v476
  %v478 = vrot.slane %v477, 4
  %v480 = vshll.u32 %v436, 16
  %v482 = vrot.slane %v480, 5
  %v483 = vsel %vm469, %v478, %v482
  %v485 = vshrl.u32 %v437, 16
  %v487 = vrot.slane %v485, 4
  %v488 = vshll.u32 %v437, 16
  %v490 = vrot.slane %v488, 5
  %v491 = vor.u32 %v487, %v490
  %v492 = vrot.slane %v491, 4
  %v494 = vshll.u32 %v438, 16
  %v496 = vrot.slane %v494, 5
  %v497 = vsel %vm469, %v492, %v496
  %v499 = vshrl.u32 %v439, 16
  %v501 = vrot.slane %v499, 4
  %v502 = vshll.u32 %v439, 16
  %v504 = vrot.slane %v502, 5
  %v505 = vor.u32 %v501, %v504
  %v506 = vrot.slane %v505, 4
  %v508 = vshll.u32 %v440, 16
  %v510 = vrot.slane %v508, 5
  %v511 = vsel %vm469, %v506, %v510
  %v513 = vshrl.u32 %v441, 16
  %v515 = vrot.slane %v513, 4
  %v516 = vshll.u32 %v441, 16
  %v518 = vrot.slane %v516, 5
  %v519 = vor.u32 %v515, %v518
  %v520 = vrot.slane %v519, 4
  %v522 = vshll.u32 %v442, 16
  %v524 = vrot.slane %v522, 5
  %v525 = vsel %vm469, %v520, %v524
  %v527 = vshrl.u32 %v443, 16
  %v529 = vrot.slane %v527, 4
  %v530 = vshll.u32 %v443, 16
  %v532 = vrot.slane %v530, 5
  %v533 = vor.u32 %v529, %v532
  %v534 = vrot.slane %v533, 4
  %v536 = vshll.u32 %v444, 16
  %v538 = vrot.slane %v536, 5
  %v539 = vsel %vm469, %v534, %v538
  %v541 = vshrl.u32 %v445, 16
  %v543 = vrot.slane %v541, 4
  %v544 = vshll.u32 %v445, 16
  %v546 = vrot.slane %v544, 5
  %v547 = vor.u32 %v543, %v546
  %v548 = vrot.slane %v547, 4
  %v550 = vshll.u32 %v446, 16
  %v552 = vrot.slane %v550, 5
  %v553 = vsel %vm469, %v548, %v552
  %v555 = vshrl.u32 %v447, 16
  %v557 = vrot.slane %v555, 4
  %v558 = vshll.u32 %v447, 16
  %v560 = vrot.slane %v558, 5
  %v561 = vor.u32 %v557, %v560
  %v562 = vrot.slane %v561, 4
  %v564 = vshll.u32 %v448, 16
  %v566 = vrot.slane %v564, 5
  %v567 = vsel %vm469, %v562, %v566
  %v569 = vshrl.u32 %v449, 16
  %v571 = vrot.slane %v569, 4
  %v572 = vshll.u32 %v449, 16
  %v574 = vrot.slane %v572, 5
  %v575 = vor.u32 %v571, %v574
  %v576 = vrot.slane %v575, 4
  %v578 = vshll.u32 %v450, 16
  %v580 = vrot.slane %v578, 5
  %v581 = vsel %vm469, %v576, %v580
  %v583 = vshrl.u32 %v451, 16
  %v585 = vrot.slane %v583, 4
  %v586 = vshll.u32 %v451, 16
  %v588 = vrot.slane %v586, 5
  %v589 = vor.u32 %v585, %v588
  %v590 = vrot.slane %v589, 4
  %v592 = vshll.u32 %v452, 16
  %v594 = vrot.slane %v592, 5
  %v595 = vsel %vm469, %v590, %v594
  %v597 = vshrl.u32 %v453, 16
  %v599 = vrot.slane %v597, 4
  %v600 = vshll.u32 %v453, 16
  %v602 = vrot.slane %v600, 5
  %v603 = vor.u32 %v599, %v602
  %v604 = vrot.slane %v603, 4
  %v606 = vshll.u32 %v454, 16
  %v608 = vrot.slane %v606, 5
  %v609 = vsel %vm469, %v604, %v608
  %v611 = vshrl.u32 %v455, 16
  %v613 = vrot.slane %v611, 4
  %v614 = vshll.u32 %v455, 16
  %v616 = vrot.slane %v614, 5
  %v617 = vor.u32 %v613, %v616
  %v618 = vrot.slane %v617, 4
  %v620 = vshll.u32 %v456, 16
  %v622 = vrot.slane %v620, 5
  %v623 = vsel %vm469, %v618, %v622
  %v625 = vshrl.u32 %v457, 16
  %v627 = vrot.slane %v625, 4
  %v628 = vshll.u32 %v457, 16
  %v630 = vrot.slane %v628, 5
  %v631 = vor.u32 %v627, %v630
  %v632 = vrot.slane %v631, 4
  %v634 = vshll.u32 %v458, 16
  %v636 = vrot.slane %v634, 5
  %v637 = vsel %vm469, %v632, %v636
  %v639 = vshrl.u32 %v459, 16
  %v641 = vrot.slane %v639, 4
  %v642 = vshll.u32 %v459, 16
  %v644 = vrot.slane %v642, 5
  %v645 = vor.u32 %v641, %v644
  %v646 = vrot.slane %v645, 4
  %v648 = vshll.u32 %v460, 16
  %v650 = vrot.slane %v648, 5
  %v651 = vsel %vm469, %v646, %v650
  %v653 = vshrl.u32 %v461, 16
  %v655 = vrot.slane %v653, 4
  %v656 = vshll.u32 %v461, 16
  %v658 = vrot.slane %v656, 5
  %v659 = vor.u32 %v655, %v658
  %v660 = vrot.slane %v659, 4
  %v662 = vshll.u32 %v462, 16
  %v664 = vrot.slane %v662, 5
  %v665 = vsel %vm469, %v660, %v664
  %v667 = vshrl.u32 %v463, 16
  %v669 = vrot.slane %v667, 4
  %v670 = vshll.u32 %v463, 16
  %v672 = vrot.slane %v670, 5
  %v673 = vor.u32 %v669, %v672
  %v674 = vrot.slane %v673, 4
  %v676 = vshll.u32 %v464, 16
  %v678 = vrot.slane %v676, 5
  %v679 = vsel %vm469, %v674, %v678
  %v681 = vshrl.u32 %v465, 16
  %v683 = vrot.slane %v681, 4
  %v684 = vshll.u32 %v465, 16
  %v686 = vrot.slane %v684, 5
  %v687 = vor.u32 %v683, %v686
  %v688 = vrot.slane %v687, 4
  %v690 = vshll.u32 %v466, 16
  %v692 = vrot.slane %v690, 5
  %v693 = vsel %vm469, %v688, %v692
  %710 = vst [vmem:[#allocation3 + $0x4] sm:$0xf] %v483
  %711 = vst [vmem:[#allocation3 + $0x28] sm:$0xf] %v497
  %712 = vst [vmem:[#allocation3 + $0x4c] sm:$0xf] %v511
  %713 = vst [vmem:[#allocation3 + $0x70] sm:$0xf] %v525
  %714 = vst [vmem:[#allocation3 + $0x94] sm:$0xf] %v539
  %715 = vst [vmem:[#allocation3 + $0xb8] sm:$0xf] %v553
  %716 = vst [vmem:[#allocation3 + $0xdc] sm:$0xf] %v567
  %717 = vst [vmem:[#allocation3 + $0x100] sm:$0xf] %v581
  %718 = vst [vmem:[#allocation3 + $0x124] sm:$0xf] %v595
  %719 = vst [vmem:[#allocation3 + $0x148] sm:$0xf] %v609
  %720 = vst [vmem:[#allocation3 + $0x16c] sm:$0xf] %v623
  %721 = vst [vmem:[#allocation3 + $0x190] sm:$0xf] %v637
  %722 = vst [vmem:[#allocation3 + $0x1b4] sm:$0xf] %v651
  %723 = vst [vmem:[#allocation3 + $0x1d8] sm:$0xf] %v665
  %724 = vst [vmem:[#allocation3 + $0x1fc] sm:$0xf] %v679
  %725 = vst [vmem:[#allocation3 + $0x220] sm:$0xf] %v693
  %v726 = vld [vmem:[#allocation2] sm:$0xe]
  %v727 = vld [vmem:[#allocation2 + $0x4] sm:$0x1]
  %v728 = vld [vmem:[#allocation2 + $0x8] sm:$0xe]
  %v729 = vld [vmem:[#allocation2 + $0xc] sm:$0x1]
  %v730 = vld [vmem:[#allocation2 + $0x10] sm:$0xe]
  %v731 = vld [vmem:[#allocation2 + $0x14] sm:$0x1]
  %v732 = vld [vmem:[#allocation2 + $0x18] sm:$0xe]
  %v733 = vld [vmem:[#allocation2 + $0x1c] sm:$0x1]
  %v734 = vld [vmem:[#allocation2 + $0x20] sm:$0xe]
  %v735 = vld [vmem:[#allocation2 + $0x24] sm:$0x1]
  %v736 = vld [vmem:[#allocation2 + $0x28] sm:$0xe]
  %v737 = vld [vmem:[#allocation2 + $0x2c] sm:$0x1]
  %v738 = vld [vmem:[#allocation2 + $0x30] sm:$0xe]
  %v739 = vld [vmem:[#allocation2 + $0x34] sm:$0x1]
  %v740 = vld [vmem:[#allocation2 + $0x38] sm:$0xe]
  %v741 = vld [vmem:[#allocation2 + $0x3c] sm:$0x1]
  %v742 = vld [vmem:[#allocation2 + $0x50] sm:$0xe]
  %v743 = vld [vmem:[#allocation2 + $0x54] sm:$0x1]
  %v744 = vld [vmem:[#allocation2 + $0x58] sm:$0xe]
  %v745 = vld [vmem:[#allocation2 + $0x5c] sm:$0x1]
  %v746 = vld [vmem:[#allocation2 + $0x60] sm:$0xe]
  %v747 = vld [vmem:[#allocation2 + $0x64] sm:$0x1]
  %v748 = vld [vmem:[#allocation2 + $0x68] sm:$0xe]
  %v749 = vld [vmem:[#allocation2 + $0x6c] sm:$0x1]
  %v750 = vld [vmem:[#allocation2 + $0x70] sm:$0xe]
  %v751 = vld [vmem:[#allocation2 + $0x74] sm:$0x1]
  %v752 = vld [vmem:[#allocation2 + $0x78] sm:$0xe]
  %v753 = vld [vmem:[#allocation2 + $0x7c] sm:$0x1]
  %v754 = vld [vmem:[#allocation2 + $0x80] sm:$0xe]
  %v755 = vld [vmem:[#allocation2 + $0x84] sm:$0x1]
  %v756 = vld [vmem:[#allocation2 + $0x88] sm:$0xe]
  %v757 = vld [vmem:[#allocation2 + $0x8c] sm:$0x1]
  %vm790 = vcmask 1042432
  %vm791 = vcmask 1046532
  %vm792 = vmor %vm790, %vm791
  %v793 = vrot.slane %v726, 5
  %v794 = vrot.slane %v793, 4
  %v795 = vrot.slane %v727, 5
  %v796 = vsel %vm792, %v794, %v795
  %v797 = vrot.slane %v728, 5
  %v798 = vrot.slane %v797, 4
  %v799 = vrot.slane %v729, 5
  %v800 = vsel %vm792, %v798, %v799
  %v801 = vrot.slane %v730, 5
  %v802 = vrot.slane %v801, 4
  %v803 = vrot.slane %v731, 5
  %v804 = vsel %vm792, %v802, %v803
  %v805 = vrot.slane %v732, 5
  %v806 = vrot.slane %v805, 4
  %v807 = vrot.slane %v733, 5
  %v808 = vsel %vm792, %v806, %v807
  %v809 = vrot.slane %v734, 5
  %v810 = vrot.slane %v809, 4
  %v811 = vrot.slane %v735, 5
  %v812 = vsel %vm792, %v810, %v811
  %v813 = vrot.slane %v736, 5
  %v814 = vrot.slane %v813, 4
  %v815 = vrot.slane %v737, 5
  %v816 = vsel %vm792, %v814, %v815
  %v817 = vrot.slane %v738, 5
  %v818 = vrot.slane %v817, 4
  %v819 = vrot.slane %v739, 5
  %v820 = vsel %vm792, %v818, %v819
  %v821 = vrot.slane %v740, 5
  %v822 = vrot.slane %v821, 4
  %v823 = vrot.slane %v741, 5
  %v824 = vsel %vm792, %v822, %v823
  %v825 = vrot.slane %v742, 5
  %v826 = vrot.slane %v825, 4
  %v827 = vrot.slane %v743, 5
  %v828 = vsel %vm792, %v826, %v827
  %v829 = vrot.slane %v744, 5
  %v830 = vrot.slane %v829, 4
  %v831 = vrot.slane %v745, 5
  %v832 = vsel %vm792, %v830, %v831
  %v833 = vrot.slane %v746, 5
  %v834 = vrot.slane %v833, 4
  %v835 = vrot.slane %v747, 5
  %v836 = vsel %vm792, %v834, %v835
  %v837 = vrot.slane %v748, 5
  %v838 = vrot.slane %v837, 4
  %v839 = vrot.slane %v749, 5
  %v840 = vsel %vm792, %v838, %v839
  %v841 = vrot.slane %v750, 5
  %v842 = vrot.slane %v841, 4
  %v843 = vrot.slane %v751, 5
  %v844 = vsel %vm792, %v842, %v843
  %v845 = vrot.slane %v752, 5
  %v846 = vrot.slane %v845, 4
  %v847 = vrot.slane %v753, 5
  %v848 = vsel %vm792, %v846, %v847
  %v849 = vrot.slane %v754, 5
  %v850 = vrot.slane %v849, 4
  %v851 = vrot.slane %v755, 5
  %v852 = vsel %vm792, %v850, %v851
  %v853 = vrot.slane %v756, 5
  %v854 = vrot.slane %v853, 4
  %v855 = vrot.slane %v757, 5
  %v856 = vsel %vm792, %v854, %v855
  %873 = vst [vmem:[#allocation3 + $0x8] sm:$0xf] %v796
  %874 = vst [vmem:[#allocation3 + $0x2c] sm:$0xf] %v800
  %875 = vst [vmem:[#allocation3 + $0x50] sm:$0xf] %v804
  %876 = vst [vmem:[#allocation3 + $0x74] sm:$0xf] %v808
  %877 = vst [vmem:[#allocation3 + $0x98] sm:$0xf] %v812
  %878 = vst [vmem:[#allocation3 + $0xbc] sm:$0xf] %v816
  %879 = vst [vmem:[#allocation3 + $0xe0] sm:$0xf] %v820
  %880 = vst [vmem:[#allocation3 + $0x104] sm:$0xf] %v824
  %881 = vst [vmem:[#allocation3 + $0x128] sm:$0xf] %v828
  %882 = vst [vmem:[#allocation3 + $0x14c] sm:$0xf] %v832
  %883 = vst [vmem:[#allocation3 + $0x170] sm:$0xf] %v836
  %884 = vst [vmem:[#allocation3 + $0x194] sm:$0xf] %v840
  %885 = vst [vmem:[#allocation3 + $0x1b8] sm:$0xf] %v844
  %886 = vst [vmem:[#allocation3 + $0x1dc] sm:$0xf] %v848
  %887 = vst [vmem:[#allocation3 + $0x200] sm:$0xf] %v852
  %888 = vst [vmem:[#allocation3 + $0x224] sm:$0xf] %v856
  %v889 = vld [vmem:[%s43] sm:$0xf]
  %v890 = vld [vmem:[%s43 + $0x8] sm:$0xf]
  %v891 = vld [vmem:[%s43 + $0x10] sm:$0xf]
  %v892 = vld [vmem:[%s43 + $0x18] sm:$0xf]
  %v893 = vld [vmem:[%s43 + $0x20] sm:$0xf]
  %v894 = vld [vmem:[%s43 + $0x28] sm:$0xf]
  %v895 = vld [vmem:[%s43 + $0x30] sm:$0xf]
  %v896 = vld [vmem:[%s43 + $0x38] sm:$0xf]
  %v897 = vld [vmem:[%s43 + $0x50] sm:$0xf]
  %v898 = vld [vmem:[%s43 + $0x58] sm:$0xf]
  %v899 = vld [vmem:[%s43 + $0x60] sm:$0xf]
  %v900 = vld [vmem:[%s43 + $0x68] sm:$0xf]
  %v901 = vld [vmem:[%s43 + $0x70] sm:$0xf]
  %v902 = vld [vmem:[%s43 + $0x78] sm:$0xf]
  %v903 = vld [vmem:[%s43 + $0x80] sm:$0xf]
  %v904 = vld [vmem:[%s43 + $0x88] sm:$0xf]
  %905 = vst [vmem:[#allocation3 + $0xc] sm:$0xf] %v889
  %906 = vst [vmem:[#allocation3 + $0x30] sm:$0xf] %v890
  %907 = vst [vmem:[#allocation3 + $0x54] sm:$0xf] %v891
  %908 = vst [vmem:[#allocation3 + $0x78] sm:$0xf] %v892
  %909 = vst [vmem:[#allocation3 + $0x9c] sm:$0xf] %v893
  %910 = vst [vmem:[#allocation3 + $0xc0] sm:$0xf] %v894
  %911 = vst [vmem:[#allocation3 + $0xe4] sm:$0xf] %v895
  %912 = vst [vmem:[#allocation3 + $0x108] sm:$0xf] %v896
  %913 = vst [vmem:[#allocation3 + $0x12c] sm:$0xf] %v897
  %914 = vst [vmem:[#allocation3 + $0x150] sm:$0xf] %v898
  %915 = vst [vmem:[#allocation3 + $0x174] sm:$0xf] %v899
  %916 = vst [vmem:[#allocation3 + $0x198] sm:$0xf] %v900
  %917 = vst [vmem:[#allocation3 + $0x1bc] sm:$0xf] %v901
  %918 = vst [vmem:[#allocation3 + $0x1e0] sm:$0xf] %v902
  %919 = vst [vmem:[#allocation3 + $0x204] sm:$0xf] %v903
  %920 = vst [vmem:[#allocation3 + $0x228] sm:$0xf] %v904
  %v921 = vld [vmem:[%s43] sm:$0xf]
  %v922 = vld [vmem:[%s43 + $0x4] sm:$0x1]
  %v923 = vld [vmem:[%s43 + $0x8] sm:$0xf]
  %v924 = vld [vmem:[%s43 + $0xc] sm:$0x1]
  %v925 = vld [vmem:[%s43 + $0x10] sm:$0xf]
  %v926 = vld [vmem:[%s43 + $0x14] sm:$0x1]
  %v927 = vld [vmem:[%s43 + $0x18] sm:$0xf]
  %v928 = vld [vmem:[%s43 + $0x1c] sm:$0x1]
  %v929 = vld [vmem:[%s43 + $0x20] sm:$0xf]
  %v930 = vld [vmem:[%s43 + $0x24] sm:$0x1]
  %v931 = vld [vmem:[%s43 + $0x28] sm:$0xf]
  %v932 = vld [vmem:[%s43 + $0x2c] sm:$0x1]
  %v933 = vld [vmem:[%s43 + $0x30] sm:$0xf]
  %v934 = vld [vmem:[%s43 + $0x34] sm:$0x1]
  %v935 = vld [vmem:[%s43 + $0x38] sm:$0xf]
  %v936 = vld [vmem:[%s43 + $0x3c] sm:$0x1]
  %v937 = vld [vmem:[%s43 + $0x50] sm:$0xf]
  %v938 = vld [vmem:[%s43 + $0x54] sm:$0x1]
  %v939 = vld [vmem:[%s43 + $0x58] sm:$0xf]
  %v940 = vld [vmem:[%s43 + $0x5c] sm:$0x1]
  %v941 = vld [vmem:[%s43 + $0x60] sm:$0xf]
  %v942 = vld [vmem:[%s43 + $0x64] sm:$0x1]
  %v943 = vld [vmem:[%s43 + $0x68] sm:$0xf]
  %v944 = vld [vmem:[%s43 + $0x6c] sm:$0x1]
  %v945 = vld [vmem:[%s43 + $0x70] sm:$0xf]
  %v946 = vld [vmem:[%s43 + $0x74] sm:$0x1]
  %v947 = vld [vmem:[%s43 + $0x78] sm:$0xf]
  %v948 = vld [vmem:[%s43 + $0x7c] sm:$0x1]
  %v949 = vld [vmem:[%s43 + $0x80] sm:$0xf]
  %v950 = vld [vmem:[%s43 + $0x84] sm:$0x1]
  %v951 = vld [vmem:[%s43 + $0x88] sm:$0xf]
  %v952 = vld [vmem:[%s43 + $0x8c] sm:$0x1]
  %v954 = vshrl.u32 %v921, 16
  %v956 = vrot.slane %v954, 4
  %v957 = vshll.u32 %v921, 16
  %v959 = vrot.slane %v957, 5
  %v960 = vor.u32 %v956, %v959
  %v961 = vrot.slane %v960, 4
  %v963 = vshll.u32 %v922, 16
  %v965 = vrot.slane %v963, 5
  %v966 = vsel %vm469, %v961, %v965
  %v968 = vshrl.u32 %v923, 16
  %v970 = vrot.slane %v968, 4
  %v971 = vshll.u32 %v923, 16
  %v973 = vrot.slane %v971, 5
  %v974 = vor.u32 %v970, %v973
  %v975 = vrot.slane %v974, 4
  %v977 = vshll.u32 %v924, 16
  %v979 = vrot.slane %v977, 5
  %v980 = vsel %vm469, %v975, %v979
  %v982 = vshrl.u32 %v925, 16
  %v984 = vrot.slane %v982, 4
  %v985 = vshll.u32 %v925, 16
  %v987 = vrot.slane %v985, 5
  %v988 = vor.u32 %v984, %v987
  %v989 = vrot.slane %v988, 4
  %v991 = vshll.u32 %v926, 16
  %v993 = vrot.slane %v991, 5
  %v994 = vsel %vm469, %v989, %v993
  %v996 = vshrl.u32 %v927, 16
  %v998 = vrot.slane %v996, 4
  %v999 = vshll.u32 %v927, 16
  %v1001 = vrot.slane %v999, 5
  %v1002 = vor.u32 %v998, %v1001
  %v1003 = vrot.slane %v1002, 4
  %v1005 = vshll.u32 %v928, 16
  %v1007 = vrot.slane %v1005, 5
  %v1008 = vsel %vm469, %v1003, %v1007
  %v1010 = vshrl.u32 %v929, 16
  %v1012 = vrot.slane %v1010, 4
  %v1013 = vshll.u32 %v929, 16
  %v1015 = vrot.slane %v1013, 5
  %v1016 = vor.u32 %v1012, %v1015
  %v1017 = vrot.slane %v1016, 4
  %v1019 = vshll.u32 %v930, 16
  %v1021 = vrot.slane %v1019, 5
  %v1022 = vsel %vm469, %v1017, %v1021
  %v1024 = vshrl.u32 %v931, 16
  %v1026 = vrot.slane %v1024, 4
  %v1027 = vshll.u32 %v931, 16
  %v1029 = vrot.slane %v1027, 5
  %v1030 = vor.u32 %v1026, %v1029
  %v1031 = vrot.slane %v1030, 4
  %v1033 = vshll.u32 %v932, 16
  %v1035 = vrot.slane %v1033, 5
  %v1036 = vsel %vm469, %v1031, %v1035
  %v1038 = vshrl.u32 %v933, 16
  %v1040 = vrot.slane %v1038, 4
  %v1041 = vshll.u32 %v933, 16
  %v1043 = vrot.slane %v1041, 5
  %v1044 = vor.u32 %v1040, %v1043
  %v1045 = vrot.slane %v1044, 4
  %v1047 = vshll.u32 %v934, 16
  %v1049 = vrot.slane %v1047, 5
  %v1050 = vsel %vm469, %v1045, %v1049
  %v1052 = vshrl.u32 %v935, 16
  %v1054 = vrot.slane %v1052, 4
  %v1055 = vshll.u32 %v935, 16
  %v1057 = vrot.slane %v1055, 5
  %v1058 = vor.u32 %v1054, %v1057
  %v1059 = vrot.slane %v1058, 4
  %v1061 = vshll.u32 %v936, 16
  %v1063 = vrot.slane %v1061, 5
  %v1064 = vsel %vm469, %v1059, %v1063
  %v1066 = vshrl.u32 %v937, 16
  %v1068 = vrot.slane %v1066, 4
  %v1069 = vshll.u32 %v937, 16
  %v1071 = vrot.slane %v1069, 5
  %v1072 = vor.u32 %v1068, %v1071
  %v1073 = vrot.slane %v1072, 4
  %v1075 = vshll.u32 %v938, 16
  %v1077 = vrot.slane %v1075, 5
  %v1078 = vsel %vm469, %v1073, %v1077
  %v1080 = vshrl.u32 %v939, 16
  %v1082 = vrot.slane %v1080, 4
  %v1083 = vshll.u32 %v939, 16
  %v1085 = vrot.slane %v1083, 5
  %v1086 = vor.u32 %v1082, %v1085
  %v1087 = vrot.slane %v1086, 4
  %v1089 = vshll.u32 %v940, 16
  %v1091 = vrot.slane %v1089, 5
  %v1092 = vsel %vm469, %v1087, %v1091
  %v1094 = vshrl.u32 %v941, 16
  %v1096 = vrot.slane %v1094, 4
  %v1097 = vshll.u32 %v941, 16
  %v1099 = vrot.slane %v1097, 5
  %v1100 = vor.u32 %v1096, %v1099
  %v1101 = vrot.slane %v1100, 4
  %v1103 = vshll.u32 %v942, 16
  %v1105 = vrot.slane %v1103, 5
  %v1106 = vsel %vm469, %v1101, %v1105
  %v1108 = vshrl.u32 %v943, 16
  %v1110 = vrot.slane %v1108, 4
  %v1111 = vshll.u32 %v943, 16
  %v1113 = vrot.slane %v1111, 5
  %v1114 = vor.u32 %v1110, %v1113
  %v1115 = vrot.slane %v1114, 4
  %v1117 = vshll.u32 %v944, 16
  %v1119 = vrot.slane %v1117, 5
  %v1120 = vsel %vm469, %v1115, %v1119
  %v1122 = vshrl.u32 %v945, 16
  %v1124 = vrot.slane %v1122, 4
  %v1125 = vshll.u32 %v945, 16
  %v1127 = vrot.slane %v1125, 5
  %v1128 = vor.u32 %v1124, %v1127
  %v1129 = vrot.slane %v1128, 4
  %v1131 = vshll.u32 %v946, 16
  %v1133 = vrot.slane %v1131, 5
  %v1134 = vsel %vm469, %v1129, %v1133
  %v1136 = vshrl.u32 %v947, 16
  %v1138 = vrot.slane %v1136, 4
  %v1139 = vshll.u32 %v947, 16
  %v1141 = vrot.slane %v1139, 5
  %v1142 = vor.u32 %v1138, %v1141
  %v1143 = vrot.slane %v1142, 4
  %v1145 = vshll.u32 %v948, 16
  %v1147 = vrot.slane %v1145, 5
  %v1148 = vsel %vm469, %v1143, %v1147
  %v1150 = vshrl.u32 %v949, 16
  %v1152 = vrot.slane %v1150, 4
  %v1153 = vshll.u32 %v949, 16
  %v1155 = vrot.slane %v1153, 5
  %v1156 = vor.u32 %v1152, %v1155
  %v1157 = vrot.slane %v1156, 4
  %v1159 = vshll.u32 %v950, 16
  %v1161 = vrot.slane %v1159, 5
  %v1162 = vsel %vm469, %v1157, %v1161
  %v1164 = vshrl.u32 %v951, 16
  %v1166 = vrot.slane %v1164, 4
  %v1167 = vshll.u32 %v951, 16
  %v1169 = vrot.slane %v1167, 5
  %v1170 = vor.u32 %v1166, %v1169
  %v1171 = vrot.slane %v1170, 4
  %v1173 = vshll.u32 %v952, 16
  %v1175 = vrot.slane %v1173, 5
  %v1176 = vsel %vm469, %v1171, %v1175
  %1193 = vst [vmem:[#allocation3 + $0x10] sm:$0xf] %v966
  %1194 = vst [vmem:[#allocation3 + $0x34] sm:$0xf] %v980
  %1195 = vst [vmem:[#allocation3 + $0x58] sm:$0xf] %v994
  %1196 = vst [vmem:[#allocation3 + $0x7c] sm:$0xf] %v1008
  %1197 = vst [vmem:[#allocation3 + $0xa0] sm:$0xf] %v1022
  %1198 = vst [vmem:[#allocation3 + $0xc4] sm:$0xf] %v1036
  %1199 = vst [vmem:[#allocation3 + $0xe8] sm:$0xf] %v1050
  %1200 = vst [vmem:[#allocation3 + $0x10c] sm:$0xf] %v1064
  %1201 = vst [vmem:[#allocation3 + $0x130] sm:$0xf] %v1078
  %1202 = vst [vmem:[#allocation3 + $0x154] sm:$0xf] %v1092
  %1203 = vst [vmem:[#allocation3 + $0x178] sm:$0xf] %v1106
  %1204 = vst [vmem:[#allocation3 + $0x19c] sm:$0xf] %v1120
  %1205 = vst [vmem:[#allocation3 + $0x1c0] sm:$0xf] %v1134
  %1206 = vst [vmem:[#allocation3 + $0x1e4] sm:$0xf] %v1148
  %1207 = vst [vmem:[#allocation3 + $0x208] sm:$0xf] %v1162
  %1208 = vst [vmem:[#allocation3 + $0x22c] sm:$0xf] %v1176
  %v1209 = vld [vmem:[%s43] sm:$0xe]
  %v1210 = vld [vmem:[%s43 + $0x4] sm:$0x1]
  %v1211 = vld [vmem:[%s43 + $0x8] sm:$0xe]
  %v1212 = vld [vmem:[%s43 + $0xc] sm:$0x1]
  %v1213 = vld [vmem:[%s43 + $0x10] sm:$0xe]
  %v1214 = vld [vmem:[%s43 + $0x14] sm:$0x1]
  %v1215 = vld [vmem:[%s43 + $0x18] sm:$0xe]
  %v1216 = vld [vmem:[%s43 + $0x1c] sm:$0x1]
  %v1217 = vld [vmem:[%s43 + $0x20] sm:$0xe]
  %v1218 = vld [vmem:[%s43 + $0x24] sm:$0x1]
  %v1219 = vld [vmem:[%s43 + $0x28] sm:$0xe]
  %v1220 = vld [vmem:[%s43 + $0x2c] sm:$0x1]
  %v1221 = vld [vmem:[%s43 + $0x30] sm:$0xe]
  %v1222 = vld [vmem:[%s43 + $0x34] sm:$0x1]
  %v1223 = vld [vmem:[%s43 + $0x38] sm:$0xe]
  %v1224 = vld [vmem:[%s43 + $0x3c] sm:$0x1]
  %v1225 = vld [vmem:[%s43 + $0x50] sm:$0xe]
  %v1226 = vld [vmem:[%s43 + $0x54] sm:$0x1]
  %v1227 = vld [vmem:[%s43 + $0x58] sm:$0xe]
  %v1228 = vld [vmem:[%s43 + $0x5c] sm:$0x1]
  %v1229 = vld [vmem:[%s43 + $0x60] sm:$0xe]
  %v1230 = vld [vmem:[%s43 + $0x64] sm:$0x1]
  %v1231 = vld [vmem:[%s43 + $0x68] sm:$0xe]
  %v1232 = vld [vmem:[%s43 + $0x6c] sm:$0x1]
  %v1233 = vld [vmem:[%s43 + $0x70] sm:$0xe]
  %v1234 = vld [vmem:[%s43 + $0x74] sm:$0x1]
  %v1235 = vld [vmem:[%s43 + $0x78] sm:$0xe]
  %v1236 = vld [vmem:[%s43 + $0x7c] sm:$0x1]
  %v1237 = vld [vmem:[%s43 + $0x80] sm:$0xe]
  %v1238 = vld [vmem:[%s43 + $0x84] sm:$0x1]
  %v1239 = vld [vmem:[%s43 + $0x88] sm:$0xe]
  %v1240 = vld [vmem:[%s43 + $0x8c] sm:$0x1]
  %v1273 = vrot.slane %v1209, 5
  %v1274 = vrot.slane %v1273, 4
  %v1275 = vrot.slane %v1210, 5
  %v1276 = vsel %vm792, %v1274, %v1275
  %v1277 = vrot.slane %v1211, 5
  %v1278 = vrot.slane %v1277, 4
  %v1279 = vrot.slane %v1212, 5
  %v1280 = vsel %vm792, %v1278, %v1279
  %v1281 = vrot.slane %v1213, 5
  %v1282 = vrot.slane %v1281, 4
  %v1283 = vrot.slane %v1214, 5
  %v1284 = vsel %vm792, %v1282, %v1283
  %v1285 = vrot.slane %v1215, 5
  %v1286 = vrot.slane %v1285, 4
  %v1287 = vrot.slane %v1216, 5
  %v1288 = vsel %vm792, %v1286, %v1287
  %v1289 = vrot.slane %v1217, 5
  %v1290 = vrot.slane %v1289, 4
  %v1291 = vrot.slane %v1218, 5
  %v1292 = vsel %vm792, %v1290, %v1291
  %v1293 = vrot.slane %v1219, 5
  %v1294 = vrot.slane %v1293, 4
  %v1295 = vrot.slane %v1220, 5
  %v1296 = vsel %vm792, %v1294, %v1295
  %v1297 = vrot.slane %v1221, 5
  %v1298 = vrot.slane %v1297, 4
  %v1299 = vrot.slane %v1222, 5
  %v1300 = vsel %vm792, %v1298, %v1299
  %v1301 = vrot.slane %v1223, 5
  %v1302 = vrot.slane %v1301, 4
  %v1303 = vrot.slane %v1224, 5
  %v1304 = vsel %vm792, %v1302, %v1303
  %v1305 = vrot.slane %v1225, 5
  %v1306 = vrot.slane %v1305, 4
  %v1307 = vrot.slane %v1226, 5
  %v1308 = vsel %vm792, %v1306, %v1307
  %v1309 = vrot.slane %v1227, 5
  %v1310 = vrot.slane %v1309, 4
  %v1311 = vrot.slane %v1228, 5
  %v1312 = vsel %vm792, %v1310, %v1311
  %v1313 = vrot.slane %v1229, 5
  %v1314 = vrot.slane %v1313, 4
  %v1315 = vrot.slane %v1230, 5
  %v1316 = vsel %vm792, %v1314, %v1315
  %v1317 = vrot.slane %v1231, 5
  %v1318 = vrot.slane %v1317, 4
  %v1319 = vrot.slane %v1232, 5
  %v1320 = vsel %vm792, %v1318, %v1319
  %v1321 = vrot.slane %v1233, 5
  %v1322 = vrot.slane %v1321, 4
  %v1323 = vrot.slane %v1234, 5
  %v1324 = vsel %vm792, %v1322, %v1323
  %v1325 = vrot.slane %v1235, 5
  %v1326 = vrot.slane %v1325, 4
  %v1327 = vrot.slane %v1236, 5
  %v1328 = vsel %vm792, %v1326, %v1327
  %v1329 = vrot.slane %v1237, 5
  %v1330 = vrot.slane %v1329, 4
  %v1331 = vrot.slane %v1238, 5
  %v1332 = vsel %vm792, %v1330, %v1331
  %v1333 = vrot.slane %v1239, 5
  %v1334 = vrot.slane %v1333, 4
  %v1335 = vrot.slane %v1240, 5
  %v1336 = vsel %vm792, %v1334, %v1335
  %1353 = vst [vmem:[#allocation3 + $0x14] sm:$0xf] %v1276
  %1354 = vst [vmem:[#allocation3 + $0x38] sm:$0xf] %v1280
  %1355 = vst [vmem:[#allocation3 + $0x5c] sm:$0xf] %v1284
  %1356 = vst [vmem:[#allocation3 + $0x80] sm:$0xf] %v1288
  %1357 = vst [vmem:[#allocation3 + $0xa4] sm:$0xf] %v1292
  %1358 = vst [vmem:[#allocation3 + $0xc8] sm:$0xf] %v1296
  %1359 = vst [vmem:[#allocation3 + $0xec] sm:$0xf] %v1300
  %1360 = vst [vmem:[#allocation3 + $0x110] sm:$0xf] %v1304
  %1361 = vst [vmem:[#allocation3 + $0x134] sm:$0xf] %v1308
  %1362 = vst [vmem:[#allocation3 + $0x158] sm:$0xf] %v1312
  %1363 = vst [vmem:[#allocation3 + $0x17c] sm:$0xf] %v1316
  %1364 = vst [vmem:[#allocation3 + $0x1a0] sm:$0xf] %v1320
  %1365 = vst [vmem:[#allocation3 + $0x1c4] sm:$0xf] %v1324
  %1366 = vst [vmem:[#allocation3 + $0x1e8] sm:$0xf] %v1328
  %1367 = vst [vmem:[#allocation3 + $0x20c] sm:$0xf] %v1332
  %1368 = vst [vmem:[#allocation3 + $0x230] sm:$0xf] %v1336
  %s1369 = scalar_lea.vmem [#allocation2], 16
  %v1370 = vld [vmem:[%s1369] sm:$0xf]
  %v1371 = vld [vmem:[%s1369 + $0x8] sm:$0xf]
  %v1372 = vld [vmem:[%s1369 + $0x10] sm:$0xf]
  %v1373 = vld [vmem:[%s1369 + $0x18] sm:$0xf]
  %v1374 = vld [vmem:[%s1369 + $0x20] sm:$0xf]
  %v1375 = vld [vmem:[%s1369 + $0x28] sm:$0xf]
  %v1376 = vld [vmem:[%s1369 + $0x30] sm:$0xf]
  %v1377 = vld [vmem:[%s1369 + $0x38] sm:$0xf]
  %v1378 = vld [vmem:[%s1369 + $0x50] sm:$0xf]
  %v1379 = vld [vmem:[%s1369 + $0x58] sm:$0xf]
  %v1380 = vld [vmem:[%s1369 + $0x60] sm:$0xf]
  %v1381 = vld [vmem:[%s1369 + $0x68] sm:$0xf]
  %v1382 = vld [vmem:[%s1369 + $0x70] sm:$0xf]
  %v1383 = vld [vmem:[%s1369 + $0x78] sm:$0xf]
  %v1384 = vld [vmem:[%s1369 + $0x80] sm:$0xf]
  %v1385 = vld [vmem:[%s1369 + $0x88] sm:$0xf]
  %1386 = vst [vmem:[#allocation3 + $0x18] sm:$0xf] %v1370
  %1387 = vst [vmem:[#allocation3 + $0x3c] sm:$0xf] %v1371
  %1388 = vst [vmem:[#allocation3 + $0x60] sm:$0xf] %v1372
  %1389 = vst [vmem:[#allocation3 + $0x84] sm:$0xf] %v1373
  %1390 = vst [vmem:[#allocation3 + $0xa8] sm:$0xf] %v1374
  %1391 = vst [vmem:[#allocation3 + $0xcc] sm:$0xf] %v1375
  %1392 = vst [vmem:[#allocation3 + $0xf0] sm:$0xf] %v1376
  %1393 = vst [vmem:[#allocation3 + $0x114] sm:$0xf] %v1377
  %1394 = vst [vmem:[#allocation3 + $0x138] sm:$0xf] %v1378
  %1395 = vst [vmem:[#allocation3 + $0x15c] sm:$0xf] %v1379
  %1396 = vst [vmem:[#allocation3 + $0x180] sm:$0xf] %v1380
  %1397 = vst [vmem:[#allocation3 + $0x1a4] sm:$0xf] %v1381
  %1398 = vst [vmem:[#allocation3 + $0x1c8] sm:$0xf] %v1382
  %1399 = vst [vmem:[#allocation3 + $0x1ec] sm:$0xf] %v1383
  %1400 = vst [vmem:[#allocation3 + $0x210] sm:$0xf] %v1384
  %1401 = vst [vmem:[#allocation3 + $0x234] sm:$0xf] %v1385
  %v1402 = vld [vmem:[%s1369] sm:$0xf]
  %v1403 = vld [vmem:[%s1369 + $0x4] sm:$0x1]
  %v1404 = vld [vmem:[%s1369 + $0x8] sm:$0xf]
  %v1405 = vld [vmem:[%s1369 + $0xc] sm:$0x1]
  %v1406 = vld [vmem:[%s1369 + $0x10] sm:$0xf]
  %v1407 = vld [vmem:[%s1369 + $0x14] sm:$0x1]
  %v1408 = vld [vmem:[%s1369 + $0x18] sm:$0xf]
  %v1409 = vld [vmem:[%s1369 + $0x1c] sm:$0x1]
  %v1410 = vld [vmem:[%s1369 + $0x20] sm:$0xf]
  %v1411 = vld [vmem:[%s1369 + $0x24] sm:$0x1]
  %v1412 = vld [vmem:[%s1369 + $0x28] sm:$0xf]
  %v1413 = vld [vmem:[%s1369 + $0x2c] sm:$0x1]
  %v1414 = vld [vmem:[%s1369 + $0x30] sm:$0xf]
  %v1415 = vld [vmem:[%s1369 + $0x34] sm:$0x1]
  %v1416 = vld [vmem:[%s1369 + $0x38] sm:$0xf]
  %v1417 = vld [vmem:[%s1369 + $0x3c] sm:$0x1]
  %v1418 = vld [vmem:[%s1369 + $0x50] sm:$0xf]
  %v1419 = vld [vmem:[%s1369 + $0x54] sm:$0x1]
  %v1420 = vld [vmem:[%s1369 + $0x58] sm:$0xf]
  %v1421 = vld [vmem:[%s1369 + $0x5c] sm:$0x1]
  %v1422 = vld [vmem:[%s1369 + $0x60] sm:$0xf]
  %v1423 = vld [vmem:[%s1369 + $0x64] sm:$0x1]
  %v1424 = vld [vmem:[%s1369 + $0x68] sm:$0xf]
  %v1425 = vld [vmem:[%s1369 + $0x6c] sm:$0x1]
  %v1426 = vld [vmem:[%s1369 + $0x70] sm:$0xf]
  %v1427 = vld [vmem:[%s1369 + $0x74] sm:$0x1]
  %v1428 = vld [vmem:[%s1369 + $0x78] sm:$0xf]
  %v1429 = vld [vmem:[%s1369 + $0x7c] sm:$0x1]
  %v1430 = vld [vmem:[%s1369 + $0x80] sm:$0xf]
  %v1431 = vld [vmem:[%s1369 + $0x84] sm:$0x1]
  %v1432 = vld [vmem:[%s1369 + $0x88] sm:$0xf]
  %v1433 = vld [vmem:[%s1369 + $0x8c] sm:$0x1]
  %v1435 = vshrl.u32 %v1402, 16
  %v1437 = vrot.slane %v1435, 4
  %v1438 = vshll.u32 %v1402, 16
  %v1440 = vrot.slane %v1438, 5
  %v1441 = vor.u32 %v1437, %v1440
  %v1442 = vrot.slane %v1441, 4
  %v1444 = vshll.u32 %v1403, 16
  %v1446 = vrot.slane %v1444, 5
  %v1447 = vsel %vm469, %v1442, %v1446
  %v1449 = vshrl.u32 %v1404, 16
  %v1451 = vrot.slane %v1449, 4
  %v1452 = vshll.u32 %v1404, 16
  %v1454 = vrot.slane %v1452, 5
  %v1455 = vor.u32 %v1451, %v1454
  %v1456 = vrot.slane %v1455, 4
  %v1458 = vshll.u32 %v1405, 16
  %v1460 = vrot.slane %v1458, 5
  %v1461 = vsel %vm469, %v1456, %v1460
  %v1463 = vshrl.u32 %v1406, 16
  %v1465 = vrot.slane %v1463, 4
  %v1466 = vshll.u32 %v1406, 16
  %v1468 = vrot.slane %v1466, 5
  %v1469 = vor.u32 %v1465, %v1468
  %v1470 = vrot.slane %v1469, 4
  %v1472 = vshll.u32 %v1407, 16
  %v1474 = vrot.slane %v1472, 5
  %v1475 = vsel %vm469, %v1470, %v1474
  %v1477 = vshrl.u32 %v1408, 16
  %v1479 = vrot.slane %v1477, 4
  %v1480 = vshll.u32 %v1408, 16
  %v1482 = vrot.slane %v1480, 5
  %v1483 = vor.u32 %v1479, %v1482
  %v1484 = vrot.slane %v1483, 4
  %v1486 = vshll.u32 %v1409, 16
  %v1488 = vrot.slane %v1486, 5
  %v1489 = vsel %vm469, %v1484, %v1488
  %v1491 = vshrl.u32 %v1410, 16
  %v1493 = vrot.slane %v1491, 4
  %v1494 = vshll.u32 %v1410, 16
  %v1496 = vrot.slane %v1494, 5
  %v1497 = vor.u32 %v1493, %v1496
  %v1498 = vrot.slane %v1497, 4
  %v1500 = vshll.u32 %v1411, 16
  %v1502 = vrot.slane %v1500, 5
  %v1503 = vsel %vm469, %v1498, %v1502
  %v1505 = vshrl.u32 %v1412, 16
  %v1507 = vrot.slane %v1505, 4
  %v1508 = vshll.u32 %v1412, 16
  %v1510 = vrot.slane %v1508, 5
  %v1511 = vor.u32 %v1507, %v1510
  %v1512 = vrot.slane %v1511, 4
  %v1514 = vshll.u32 %v1413, 16
  %v1516 = vrot.slane %v1514, 5
  %v1517 = vsel %vm469, %v1512, %v1516
  %v1519 = vshrl.u32 %v1414, 16
  %v1521 = vrot.slane %v1519, 4
  %v1522 = vshll.u32 %v1414, 16
  %v1524 = vrot.slane %v1522, 5
  %v1525 = vor.u32 %v1521, %v1524
  %v1526 = vrot.slane %v1525, 4
  %v1528 = vshll.u32 %v1415, 16
  %v1530 = vrot.slane %v1528, 5
  %v1531 = vsel %vm469, %v1526, %v1530
  %v1533 = vshrl.u32 %v1416, 16
  %v1535 = vrot.slane %v1533, 4
  %v1536 = vshll.u32 %v1416, 16
  %v1538 = vrot.slane %v1536, 5
  %v1539 = vor.u32 %v1535, %v1538
  %v1540 = vrot.slane %v1539, 4
  %v1542 = vshll.u32 %v1417, 16
  %v1544 = vrot.slane %v1542, 5
  %v1545 = vsel %vm469, %v1540, %v1544
  %v1547 = vshrl.u32 %v1418, 16
  %v1549 = vrot.slane %v1547, 4
  %v1550 = vshll.u32 %v1418, 16
  %v1552 = vrot.slane %v1550, 5
  %v1553 = vor.u32 %v1549, %v1552
  %v1554 = vrot.slane %v1553, 4
  %v1556 = vshll.u32 %v1419, 16
  %v1558 = vrot.slane %v1556, 5
  %v1559 = vsel %vm469, %v1554, %v1558
  %v1561 = vshrl.u32 %v1420, 16
  %v1563 = vrot.slane %v1561, 4
  %v1564 = vshll.u32 %v1420, 16
  %v1566 = vrot.slane %v1564, 5
  %v1567 = vor.u32 %v1563, %v1566
  %v1568 = vrot.slane %v1567, 4
  %v1570 = vshll.u32 %v1421, 16
  %v1572 = vrot.slane %v1570, 5
  %v1573 = vsel %vm469, %v1568, %v1572
  %v1575 = vshrl.u32 %v1422, 16
  %v1577 = vrot.slane %v1575, 4
  %v1578 = vshll.u32 %v1422, 16
  %v1580 = vrot.slane %v1578, 5
  %v1581 = vor.u32 %v1577, %v1580
  %v1582 = vrot.slane %v1581, 4
  %v1584 = vshll.u32 %v1423, 16
  %v1586 = vrot.slane %v1584, 5
  %v1587 = vsel %vm469, %v1582, %v1586
  %v1589 = vshrl.u32 %v1424, 16
  %v1591 = vrot.slane %v1589, 4
  %v1592 = vshll.u32 %v1424, 16
  %v1594 = vrot.slane %v1592, 5
  %v1595 = vor.u32 %v1591, %v1594
  %v1596 = vrot.slane %v1595, 4
  %v1598 = vshll.u32 %v1425, 16
  %v1600 = vrot.slane %v1598, 5
  %v1601 = vsel %vm469, %v1596, %v1600
  %v1603 = vshrl.u32 %v1426, 16
  %v1605 = vrot.slane %v1603, 4
  %v1606 = vshll.u32 %v1426, 16
  %v1608 = vrot.slane %v1606, 5
  %v1609 = vor.u32 %v1605, %v1608
  %v1610 = vrot.slane %v1609, 4
  %v1612 = vshll.u32 %v1427, 16
  %v1614 = vrot.slane %v1612, 5
  %v1615 = vsel %vm469, %v1610, %v1614
  %v1617 = vshrl.u32 %v1428, 16
  %v1619 = vrot.slane %v1617, 4
  %v1620 = vshll.u32 %v1428, 16
  %v1622 = vrot.slane %v1620, 5
  %v1623 = vor.u32 %v1619, %v1622
  %v1624 = vrot.slane %v1623, 4
  %v1626 = vshll.u32 %v1429, 16
  %v1628 = vrot.slane %v1626, 5
  %v1629 = vsel %vm469, %v1624, %v1628
  %v1631 = vshrl.u32 %v1430, 16
  %v1633 = vrot.slane %v1631, 4
  %v1634 = vshll.u32 %v1430, 16
  %v1636 = vrot.slane %v1634, 5
  %v1637 = vor.u32 %v1633, %v1636
  %v1638 = vrot.slane %v1637, 4
  %v1640 = vshll.u32 %v1431, 16
  %v1642 = vrot.slane %v1640, 5
  %v1643 = vsel %vm469, %v1638, %v1642
  %v1645 = vshrl.u32 %v1432, 16
  %v1647 = vrot.slane %v1645, 4
  %v1648 = vshll.u32 %v1432, 16
  %v1650 = vrot.slane %v1648, 5
  %v1651 = vor.u32 %v1647, %v1650
  %v1652 = vrot.slane %v1651, 4
  %v1654 = vshll.u32 %v1433, 16
  %v1656 = vrot.slane %v1654, 5
  %v1657 = vsel %vm469, %v1652, %v1656
  %1674 = vst [vmem:[#allocation3 + $0x1c] sm:$0xf] %v1447
  %1675 = vst [vmem:[#allocation3 + $0x40] sm:$0xf] %v1461
  %1676 = vst [vmem:[#allocation3 + $0x64] sm:$0xf] %v1475
  %1677 = vst [vmem:[#allocation3 + $0x88] sm:$0xf] %v1489
  %1678 = vst [vmem:[#allocation3 + $0xac] sm:$0xf] %v1503
  %1679 = vst [vmem:[#allocation3 + $0xd0] sm:$0xf] %v1517
  %1680 = vst [vmem:[#allocation3 + $0xf4] sm:$0xf] %v1531
  %1681 = vst [vmem:[#allocation3 + $0x118] sm:$0xf] %v1545
  %1682 = vst [vmem:[#allocation3 + $0x13c] sm:$0xf] %v1559
  %1683 = vst [vmem:[#allocation3 + $0x160] sm:$0xf] %v1573
  %1684 = vst [vmem:[#allocation3 + $0x184] sm:$0xf] %v1587
  %1685 = vst [vmem:[#allocation3 + $0x1a8] sm:$0xf] %v1601
  %1686 = vst [vmem:[#allocation3 + $0x1cc] sm:$0xf] %v1615
  %1687 = vst [vmem:[#allocation3 + $0x1f0] sm:$0xf] %v1629
  %1688 = vst [vmem:[#allocation3 + $0x214] sm:$0xf] %v1643
  %1689 = vst [vmem:[#allocation3 + $0x238] sm:$0xf] %v1657
  %v1690 = vld [vmem:[%s1369] sm:$0xe]
  %v1691 = vld [vmem:[%s1369 + $0x4] sm:$0x1]
  %v1692 = vld [vmem:[%s1369 + $0x8] sm:$0xe]
  %v1693 = vld [vmem:[%s1369 + $0xc] sm:$0x1]
  %v1694 = vld [vmem:[%s1369 + $0x10] sm:$0xe]
  %v1695 = vld [vmem:[%s1369 + $0x14] sm:$0x1]
  %v1696 = vld [vmem:[%s1369 + $0x18] sm:$0xe]
  %v1697 = vld [vmem:[%s1369 + $0x1c] sm:$0x1]
  %v1698 = vld [vmem:[%s1369 + $0x20] sm:$0xe]
  %v1699 = vld [vmem:[%s1369 + $0x24] sm:$0x1]
  %v1700 = vld [vmem:[%s1369 + $0x28] sm:$0xe]
  %v1701 = vld [vmem:[%s1369 + $0x2c] sm:$0x1]
  %v1702 = vld [vmem:[%s1369 + $0x30] sm:$0xe]
  %v1703 = vld [vmem:[%s1369 + $0x34] sm:$0x1]
  %v1704 = vld [vmem:[%s1369 + $0x38] sm:$0xe]
  %v1705 = vld [vmem:[%s1369 + $0x3c] sm:$0x1]
  %v1706 = vld [vmem:[%s1369 + $0x50] sm:$0xe]
  %v1707 = vld [vmem:[%s1369 + $0x54] sm:$0x1]
  %v1708 = vld [vmem:[%s1369 + $0x58] sm:$0xe]
  %v1709 = vld [vmem:[%s1369 + $0x5c] sm:$0x1]
  %v1710 = vld [vmem:[%s1369 + $0x60] sm:$0xe]
  %v1711 = vld [vmem:[%s1369 + $0x64] sm:$0x1]
  %v1712 = vld [vmem:[%s1369 + $0x68] sm:$0xe]
  %v1713 = vld [vmem:[%s1369 + $0x6c] sm:$0x1]
  %v1714 = vld [vmem:[%s1369 + $0x70] sm:$0xe]
  %v1715 = vld [vmem:[%s1369 + $0x74] sm:$0x1]
  %v1716 = vld [vmem:[%s1369 + $0x78] sm:$0xe]
  %v1717 = vld [vmem:[%s1369 + $0x7c] sm:$0x1]
  %v1718 = vld [vmem:[%s1369 + $0x80] sm:$0xe]
  %v1719 = vld [vmem:[%s1369 + $0x84] sm:$0x1]
  %v1720 = vld [vmem:[%s1369 + $0x88] sm:$0xe]
  %v1721 = vld [vmem:[%s1369 + $0x8c] sm:$0x1]
  %v1754 = vrot.slane %v1690, 5
  %v1755 = vrot.slane %v1754, 4
  %v1756 = vrot.slane %v1691, 5
  %v1757 = vsel %vm792, %v1755, %v1756
  %v1758 = vrot.slane %v1692, 5
  %v1759 = vrot.slane %v1758, 4
  %v1760 = vrot.slane %v1693, 5
  %v1761 = vsel %vm792, %v1759, %v1760
  %v1762 = vrot.slane %v1694, 5
  %v1763 = vrot.slane %v1762, 4
  %v1764 = vrot.slane %v1695, 5
  %v1765 = vsel %vm792, %v1763, %v1764
  %v1766 = vrot.slane %v1696, 5
  %v1767 = vrot.slane %v1766, 4
  %v1768 = vrot.slane %v1697, 5
  %v1769 = vsel %vm792, %v1767, %v1768
  %v1770 = vrot.slane %v1698, 5
  %v1771 = vrot.slane %v1770, 4
  %v1772 = vrot.slane %v1699, 5
  %v1773 = vsel %vm792, %v1771, %v1772
  %v1774 = vrot.slane %v1700, 5
  %v1775 = vrot.slane %v1774, 4
  %v1776 = vrot.slane %v1701, 5
  %v1777 = vsel %vm792, %v1775, %v1776
  %v1778 = vrot.slane %v1702, 5
  %v1779 = vrot.slane %v1778, 4
  %v1780 = vrot.slane %v1703, 5
  %v1781 = vsel %vm792, %v1779, %v1780
  %v1782 = vrot.slane %v1704, 5
  %v1783 = vrot.slane %v1782, 4
  %v1784 = vrot.slane %v1705, 5
  %v1785 = vsel %vm792, %v1783, %v1784
  %v1786 = vrot.slane %v1706, 5
  %v1787 = vrot.slane %v1786, 4
  %v1788 = vrot.slane %v1707, 5
  %v1789 = vsel %vm792, %v1787, %v1788
  %v1790 = vrot.slane %v1708, 5
  %v1791 = vrot.slane %v1790, 4
  %v1792 = vrot.slane %v1709, 5
  %v1793 = vsel %vm792, %v1791, %v1792
  %v1794 = vrot.slane %v1710, 5
  %v1795 = vrot.slane %v1794, 4
  %v1796 = vrot.slane %v1711, 5
  %v1797 = vsel %vm792, %v1795, %v1796
  %v1798 = vrot.slane %v1712, 5
  %v1799 = vrot.slane %v1798, 4
  %v1800 = vrot.slane %v1713, 5
  %v1801 = vsel %vm792, %v1799, %v1800
  %v1802 = vrot.slane %v1714, 5
  %v1803 = vrot.slane %v1802, 4
  %v1804 = vrot.slane %v1715, 5
  %v1805 = vsel %vm792, %v1803, %v1804
  %v1806 = vrot.slane %v1716, 5
  %v1807 = vrot.slane %v1806, 4
  %v1808 = vrot.slane %v1717, 5
  %v1809 = vsel %vm792, %v1807, %v1808
  %v1810 = vrot.slane %v1718, 5
  %v1811 = vrot.slane %v1810, 4
  %v1812 = vrot.slane %v1719, 5
  %v1813 = vsel %vm792, %v1811, %v1812
  %v1814 = vrot.slane %v1720, 5
  %v1815 = vrot.slane %v1814, 4
  %v1816 = vrot.slane %v1721, 5
  %v1817 = vsel %vm792, %v1815, %v1816
  %1834 = vst [vmem:[#allocation3 + $0x20] sm:$0xf] %v1757
  %1835 = vst [vmem:[#allocation3 + $0x44] sm:$0xf] %v1761
  %1836 = vst [vmem:[#allocation3 + $0x68] sm:$0xf] %v1765
  %1837 = vst [vmem:[#allocation3 + $0x8c] sm:$0xf] %v1769
  %1838 = vst [vmem:[#allocation3 + $0xb0] sm:$0xf] %v1773
  %1839 = vst [vmem:[#allocation3 + $0xd4] sm:$0xf] %v1777
  %1840 = vst [vmem:[#allocation3 + $0xf8] sm:$0xf] %v1781
  %1841 = vst [vmem:[#allocation3 + $0x11c] sm:$0xf] %v1785
  %1842 = vst [vmem:[#allocation3 + $0x140] sm:$0xf] %v1789
  %1843 = vst [vmem:[#allocation3 + $0x164] sm:$0xf] %v1793
  %1844 = vst [vmem:[#allocation3 + $0x188] sm:$0xf] %v1797
  %1845 = vst [vmem:[#allocation3 + $0x1ac] sm:$0xf] %v1801
  %1846 = vst [vmem:[#allocation3 + $0x1d0] sm:$0xf] %v1805
  %1847 = vst [vmem:[#allocation3 + $0x1f4] sm:$0xf] %v1809
  %1848 = vst [vmem:[#allocation3 + $0x218] sm:$0xf] %v1813
  %1849 = vst [vmem:[#allocation3 + $0x23c] sm:$0xf] %v1817
  %v1850 = vld [vmem:[#allocation3] sm:$0xff]
  %v1851 = vld [vmem:[#allocation3 + $0x8] sm:$0xff]
  %v1852 = vld [vmem:[#allocation3 + $0x10] sm:$0xff]
  %v1853 = vld [vmem:[#allocation3 + $0x18] sm:$0xff]
  %v1854 = vld [vmem:[#allocation3 + $0x20] sm:$0xf]
  %v1855 = vld [vmem:[#allocation3 + $0x24] sm:$0xff]
  %v1856 = vld [vmem:[#allocation3 + $0x2c] sm:$0xff]
  %v1857 = vld [vmem:[#allocation3 + $0x34] sm:$0xff]
  %v1858 = vld [vmem:[#allocation3 + $0x3c] sm:$0xff]
  %v1859 = vld [vmem:[#allocation3 + $0x44] sm:$0xf]
  %v1860 = vld [vmem:[#allocation3 + $0x48] sm:$0xff]
  %v1861 = vld [vmem:[#allocation3 + $0x50] sm:$0xff]
  %v1862 = vld [vmem:[#allocation3 + $0x58] sm:$0xff]
  %v1863 = vld [vmem:[#allocation3 + $0x60] sm:$0xff]
  %v1864 = vld [vmem:[#allocation3 + $0x68] sm:$0xf]
  %v1865 = vld [vmem:[#allocation3 + $0x6c] sm:$0xff]
  %v1866 = vld [vmem:[#allocation3 + $0x74] sm:$0xff]
  %v1867 = vld [vmem:[#allocation3 + $0x7c] sm:$0xff]
  %v1868 = vld [vmem:[#allocation3 + $0x84] sm:$0xff]
  %v1869 = vld [vmem:[#allocation3 + $0x8c] sm:$0xf]
  %v1870 = vld [vmem:[#allocation3 + $0x90] sm:$0xff]
  %v1871 = vld [vmem:[#allocation3 + $0x98] sm:$0xff]
  %v1872 = vld [vmem:[#allocation3 + $0xa0] sm:$0xff]
  %v1873 = vld [vmem:[#allocation3 + $0xa8] sm:$0xff]
  %v1874 = vld [vmem:[#allocation3 + $0xb0] sm:$0xf]
  %v1875 = vld [vmem:[#allocation3 + $0xb4] sm:$0xff]
  %v1876 = vld [vmem:[#allocation3 + $0xbc] sm:$0xff]
  %v1877 = vld [vmem:[#allocation3 + $0xc4] sm:$0xff]
  %v1878 = vld [vmem:[#allocation3 + $0xcc] sm:$0xff]
  %v1879 = vld [vmem:[#allocation3 + $0xd4] sm:$0xf]
  %v1880 = vld [vmem:[#allocation3 + $0xd8] sm:$0xff]
  %v1881 = vld [vmem:[#allocation3 + $0xe0] sm:$0xff]
  %v1882 = vld [vmem:[#allocation3 + $0xe8] sm:$0xff]
  %v1883 = vld [vmem:[#allocation3 + $0xf0] sm:$0xff]
  %v1884 = vld [vmem:[#allocation3 + $0xf8] sm:$0xf]
  %v1885 = vld [vmem:[#allocation3 + $0xfc] sm:$0xff]
  %v1886 = vld [vmem:[#allocation3 + $0x104] sm:$0xff]
  %v1887 = vld [vmem:[#allocation3 + $0x10c] sm:$0xff]
  %v1888 = vld [vmem:[#allocation3 + $0x114] sm:$0xff]
  %v1889 = vld [vmem:[#allocation3 + $0x11c] sm:$0xf]
  %v1890 = vld [vmem:[#allocation3 + $0x120] sm:$0xff]
  %v1891 = vld [vmem:[#allocation3 + $0x128] sm:$0xff]
  %v1892 = vld [vmem:[#allocation3 + $0x130] sm:$0xff]
  %v1893 = vld [vmem:[#allocation3 + $0x138] sm:$0xff]
  %v1894 = vld [vmem:[#allocation3 + $0x140] sm:$0xf]
  %v1895 = vld [vmem:[#allocation3 + $0x144] sm:$0xff]
  %v1896 = vld [vmem:[#allocation3 + $0x14c] sm:$0xff]
  %v1897 = vld [vmem:[#allocation3 + $0x154] sm:$0xff]
  %v1898 = vld [vmem:[#allocation3 + $0x15c] sm:$0xff]
  %v1899 = vld [vmem:[#allocation3 + $0x164] sm:$0xf]
  %v1900 = vld [vmem:[#allocation3 + $0x168] sm:$0xff]
  %v1901 = vld [vmem:[#allocation3 + $0x170] sm:$0xff]
  %v1902 = vld [vmem:[#allocation3 + $0x178] sm:$0xff]
  %v1903 = vld [vmem:[#allocation3 + $0x180] sm:$0xff]
  %v1904 = vld [vmem:[#allocation3 + $0x188] sm:$0xf]
  %v1905 = vld [vmem:[#allocation3 + $0x18c] sm:$0xff]
  %v1906 = vld [vmem:[#allocation3 + $0x194] sm:$0xff]
  %v1907 = vld [vmem:[#allocation3 + $0x19c] sm:$0xff]
  %v1908 = vld [vmem:[#allocation3 + $0x1a4] sm:$0xff]
  %v1909 = vld [vmem:[#allocation3 + $0x1ac] sm:$0xf]
  %v1910 = vld [vmem:[#allocation3 + $0x1b0] sm:$0xff]
  %v1911 = vld [vmem:[#allocation3 + $0x1b8] sm:$0xff]
  %v1912 = vld [vmem:[#allocation3 + $0x1c0] sm:$0xff]
  %v1913 = vld [vmem:[#allocation3 + $0x1c8] sm:$0xff]
  %v1914 = vld [vmem:[#allocation3 + $0x1d0] sm:$0xf]
  %v1915 = vld [vmem:[#allocation3 + $0x1d4] sm:$0xff]
  %v1916 = vld [vmem:[#allocation3 + $0x1dc] sm:$0xff]
  %v1917 = vld [vmem:[#allocation3 + $0x1e4] sm:$0xff]
  %v1918 = vld [vmem:[#allocation3 + $0x1ec] sm:$0xff]
  %v1919 = vld [vmem:[#allocation3 + $0x1f4] sm:$0xf]
  %v1920 = vld [vmem:[#allocation3 + $0x1f8] sm:$0xff]
  %v1921 = vld [vmem:[#allocation3 + $0x200] sm:$0xff]
  %v1922 = vld [vmem:[#allocation3 + $0x208] sm:$0xff]
  %v1923 = vld [vmem:[#allocation3 + $0x210] sm:$0xff]
  %v1924 = vld [vmem:[#allocation3 + $0x218] sm:$0xf]
  %v1925 = vld [vmem:[#allocation3 + $0x21c] sm:$0xff]
  %v1926 = vld [vmem:[#allocation3 + $0x224] sm:$0xff]
  %v1927 = vld [vmem:[#allocation3 + $0x22c] sm:$0xff]
  %v1928 = vld [vmem:[#allocation3 + $0x234] sm:$0xff]
  %v1929 = vld [vmem:[#allocation3 + $0x23c] sm:$0xf]
  %v1930 = vld [vmem:[%s1] sm:$0xf]
  %v1931 = vld [vmem:[%s1 + $0x4] sm:$0xf]
  %v1932 = vld [vmem:[%s1 + $0x8] sm:$0xf]
  %v1933 = vld [vmem:[%s1 + $0xc] sm:$0xf]
  %v1934 = vld [vmem:[%s1 + $0x10] sm:$0xf]
  %v1935 = vld [vmem:[%s1 + $0x14] sm:$0xf]
  %v1936 = vld [vmem:[%s1 + $0x18] sm:$0xf]
  %v1937 = vld [vmem:[%s1 + $0x1c] sm:$0xf]
  %v1938 = vld [vmem:[%s1 + $0x20] sm:$0xf]
  %v1939 = vld [vmem:[%s1 + $0x24] sm:$0xf]
  %v1940 = vld [vmem:[%s1 + $0x28] sm:$0xf]
  %v1941 = vld [vmem:[%s1 + $0x2c] sm:$0xf]
  %v1942 = vld [vmem:[%s1 + $0x30] sm:$0xf]
  %v1943 = vld [vmem:[%s1 + $0x34] sm:$0xf]
  %v1944 = vld [vmem:[%s1 + $0x38] sm:$0xf]
  %v1945 = vld [vmem:[%s1 + $0x3c] sm:$0xf]
  %v1946 = vld [vmem:[%s1 + $0x40] sm:$0xf]
  %v1947 = vld [vmem:[%s1 + $0x44] sm:$0xf]
  %v1948 = vld [vmem:[%s1 + $0x48] sm:$0xf]
  %v1949 = vld [vmem:[%s1 + $0x4c] sm:$0xf]
  %v1950 = vld [vmem:[%s1 + $0x50] sm:$0xf]
  %v1951 = vld [vmem:[%s1 + $0x54] sm:$0xf]
  %v1952 = vld [vmem:[%s1 + $0x58] sm:$0xf]
  %v1953 = vld [vmem:[%s1 + $0x5c] sm:$0xf]
  %v1954 = vld [vmem:[%s1 + $0x60] sm:$0xf]
  %v1955 = vld [vmem:[%s1 + $0x64] sm:$0xf]
  %v1956 = vld [vmem:[%s1 + $0x68] sm:$0xf]
  %v1957 = vld [vmem:[%s1 + $0x6c] sm:$0xf]
  %v1958 = vld [vmem:[%s1 + $0x70] sm:$0xf]
  %v1959 = vld [vmem:[%s1 + $0x74] sm:$0xf]
  %v1960 = vld [vmem:[%s1 + $0x78] sm:$0xf]
  %v1961 = vld [vmem:[%s1 + $0x7c] sm:$0xf]
  %v1962 = vld [vmem:[%s1 + $0x80] sm:$0xf]
  %v1963 = vld [vmem:[%s1 + $0x84] sm:$0xf]
  %v1964 = vld [vmem:[%s1 + $0x88] sm:$0xf]
  %v1965 = vld [vmem:[%s1 + $0x8c] sm:$0xf]
  %v1966 = vld [vmem:[%s1 + $0x90] sm:$0xf]
  %v1967 = vld [vmem:[%s1 + $0x94] sm:$0xf]
  %v1968 = vld [vmem:[%s1 + $0x98] sm:$0xf]
  %v1969 = vld [vmem:[%s1 + $0x9c] sm:$0xf]
  %v1970 = vld [vmem:[%s1 + $0xa0] sm:$0xf]
  %v1971 = vld [vmem:[%s1 + $0xa4] sm:$0xf]
  %v1972 = vld [vmem:[%s1 + $0xa8] sm:$0xf]
  %v1973 = vld [vmem:[%s1 + $0xac] sm:$0xf]
  %v1974 = vld [vmem:[%s1 + $0xb0] sm:$0xf]
  %v1975 = vld [vmem:[%s1 + $0xb4] sm:$0xf]
  %v1976 = vld [vmem:[%s1 + $0xb8] sm:$0xf]
  %v1977 = vld [vmem:[%s1 + $0xbc] sm:$0xf]
  %v1978 = vld [vmem:[%s1 + $0xc0] sm:$0xf]
  %v1979 = vld [vmem:[%s1 + $0xc4] sm:$0xf]
  %v1980 = vld [vmem:[%s1 + $0xc8] sm:$0xf]
  %v1981 = vld [vmem:[%s1 + $0xcc] sm:$0xf]
  %v1982 = vld [vmem:[%s1 + $0xd0] sm:$0xf]
  %v1983 = vld [vmem:[%s1 + $0xd4] sm:$0xf]
  %v1984 = vld [vmem:[%s1 + $0xd8] sm:$0xf]
  %v1985 = vld [vmem:[%s1 + $0xdc] sm:$0xf]
  %v1986 = vld [vmem:[%s1 + $0xe0] sm:$0xf]
  %v1987 = vld [vmem:[%s1 + $0xe4] sm:$0xf]
  %v1988 = vld [vmem:[%s1 + $0xe8] sm:$0xf]
  %v1989 = vld [vmem:[%s1 + $0xec] sm:$0xf]
  %v1990 = vld [vmem:[%s1 + $0xf0] sm:$0xf]
  %v1991 = vld [vmem:[%s1 + $0xf4] sm:$0xf]
  %v1992 = vld [vmem:[%s1 + $0xf8] sm:$0xf]
  %v1993 = vld [vmem:[%s1 + $0xfc] sm:$0xf]
  %v1994 = vld [vmem:[%s1 + $0x100] sm:$0xf]
  %v1995 = vld [vmem:[%s1 + $0x104] sm:$0xf]
  %v1996 = vld [vmem:[%s1 + $0x108] sm:$0xf]
  %v1997 = vld [vmem:[%s1 + $0x10c] sm:$0xf]
  %v1998 = vld [vmem:[%s1 + $0x110] sm:$0xf]
  %v1999 = vld [vmem:[%s1 + $0x114] sm:$0xf]
  %v2000 = vld [vmem:[%s1 + $0x118] sm:$0xf]
  %v2001 = vld [vmem:[%s1 + $0x11c] sm:$0xf]
  %v2002 = vld [vmem:[%s1 + $0x120] sm:$0xf]
  %v2003 = vld [vmem:[%s1 + $0x124] sm:$0xf]
  %v2004 = vld [vmem:[%s1 + $0x128] sm:$0xf]
  %v2005 = vld [vmem:[%s1 + $0x12c] sm:$0xf]
  %v2006 = vld [vmem:[%s1 + $0x130] sm:$0xf]
  %v2007 = vld [vmem:[%s1 + $0x134] sm:$0xf]
  %v2008 = vld [vmem:[%s1 + $0x138] sm:$0xf]
  %v2009 = vld [vmem:[%s1 + $0x13c] sm:$0xf]
  %v2010 = vld [vmem:[%s1 + $0x140] sm:$0xf]
  %v2011 = vld [vmem:[%s1 + $0x144] sm:$0xf]
  %v2012 = vld [vmem:[%s1 + $0x148] sm:$0xf]
  %v2013 = vld [vmem:[%s1 + $0x14c] sm:$0xf]
  %v2014 = vld [vmem:[%s1 + $0x150] sm:$0xf]
  %v2015 = vld [vmem:[%s1 + $0x154] sm:$0xf]
  %v2016 = vld [vmem:[%s1 + $0x158] sm:$0xf]
  %v2017 = vld [vmem:[%s1 + $0x15c] sm:$0xf]
  %v2018 = vld [vmem:[%s1 + $0x160] sm:$0xf]
  %v2019 = vld [vmem:[%s1 + $0x164] sm:$0xf]
  %v2020 = vld [vmem:[%s1 + $0x168] sm:$0xf]
  %v2021 = vld [vmem:[%s1 + $0x16c] sm:$0xf]
  %v2022 = vld [vmem:[%s1 + $0x170] sm:$0xf]
  %v2023 = vld [vmem:[%s1 + $0x174] sm:$0xf]
  %v2024 = vld [vmem:[%s1 + $0x178] sm:$0xf]
  %v2025 = vld [vmem:[%s1 + $0x17c] sm:$0xf]
  %v2026 = vld [vmem:[%s1 + $0x180] sm:$0xf]
  %v2027 = vld [vmem:[%s1 + $0x184] sm:$0xf]
  %v2028 = vld [vmem:[%s1 + $0x188] sm:$0xf]
  %v2029 = vld [vmem:[%s1 + $0x18c] sm:$0xf]
  %v2030 = vld [vmem:[%s1 + $0x190] sm:$0xf]
  %v2031 = vld [vmem:[%s1 + $0x194] sm:$0xf]
  %v2032 = vld [vmem:[%s1 + $0x198] sm:$0xf]
  %v2033 = vld [vmem:[%s1 + $0x19c] sm:$0xf]
  %v2034 = vld [vmem:[%s1 + $0x1a0] sm:$0xf]
  %v2035 = vld [vmem:[%s1 + $0x1a4] sm:$0xf]
  %v2036 = vld [vmem:[%s1 + $0x1a8] sm:$0xf]
  %v2037 = vld [vmem:[%s1 + $0x1ac] sm:$0xf]
  %v2038 = vld [vmem:[%s1 + $0x1b0] sm:$0xf]
  %v2039 = vld [vmem:[%s1 + $0x1b4] sm:$0xf]
  %v2040 = vld [vmem:[%s1 + $0x1b8] sm:$0xf]
  %v2041 = vld [vmem:[%s1 + $0x1bc] sm:$0xf]
  %v2042 = vld [vmem:[%s1 + $0x1c0] sm:$0xf]
  %v2043 = vld [vmem:[%s1 + $0x1c4] sm:$0xf]
  %v2044 = vld [vmem:[%s1 + $0x1c8] sm:$0xf]
  %v2045 = vld [vmem:[%s1 + $0x1cc] sm:$0xf]
  %v2046 = vld [vmem:[%s1 + $0x1d0] sm:$0xf]
  %v2047 = vld [vmem:[%s1 + $0x1d4] sm:$0xf]
  %v2048 = vld [vmem:[%s1 + $0x1d8] sm:$0xf]
  %v2049 = vld [vmem:[%s1 + $0x1dc] sm:$0xf]
  %v2050 = vld [vmem:[%s1 + $0x1e0] sm:$0xf]
  %v2051 = vld [vmem:[%s1 + $0x1e4] sm:$0xf]
  %v2052 = vld [vmem:[%s1 + $0x1e8] sm:$0xf]
  %v2053 = vld [vmem:[%s1 + $0x1ec] sm:$0xf]
  %v2054 = vld [vmem:[%s1 + $0x1f0] sm:$0xf]
  %v2055 = vld [vmem:[%s1 + $0x1f4] sm:$0xf]
  %v2056 = vld [vmem:[%s1 + $0x1f8] sm:$0xf]
  %v2057 = vld [vmem:[%s1 + $0x1fc] sm:$0xf]
  %v2058 = vld [vmem:[%s1 + $0x200] sm:$0xf]
  %v2059 = vld [vmem:[%s1 + $0x204] sm:$0xf]
  %v2060 = vld [vmem:[%s1 + $0x208] sm:$0xf]
  %v2061 = vld [vmem:[%s1 + $0x20c] sm:$0xf]
  %v2062 = vld [vmem:[%s1 + $0x210] sm:$0xf]
  %v2063 = vld [vmem:[%s1 + $0x214] sm:$0xf]
  %v2064 = vld [vmem:[%s1 + $0x218] sm:$0xf]
  %v2065 = vld [vmem:[%s1 + $0x21c] sm:$0xf]
  %v2066 = vld [vmem:[%s1 + $0x220] sm:$0xf]
  %v2067 = vld [vmem:[%s1 + $0x224] sm:$0xf]
  %v2068 = vld [vmem:[%s1 + $0x228] sm:$0xf]
  %v2069 = vld [vmem:[%s1 + $0x22c] sm:$0xf]
  %v2070 = vld [vmem:[%s1 + $0x230] sm:$0xf]
  %v2071 = vld [vmem:[%s1 + $0x234] sm:$0xf]
  %v2072 = vld [vmem:[%s1 + $0x238] sm:$0xf]
  %v2073 = vld [vmem:[%s1 + $0x23c] sm:$0xf]
  %v2154 = vunpack.c.l.b16 %v1850
  %v2155 = vunpack.c.h.b16 %v1850
  %v2156 = vunpack.c.l.b16 %v1851
  %v2157 = vunpack.c.h.b16 %v1851
  %v2158 = vunpack.c.l.b16 %v1852
  %v2159 = vunpack.c.h.b16 %v1852
  %v2160 = vunpack.c.l.b16 %v1853
  %v2161 = vunpack.c.h.b16 %v1853
  %v2162 = vunpack.c.l.b16 %v1854
  %v2163 = vunpack.c.l.b16 %v1855
  %v2164 = vunpack.c.h.b16 %v1855
  %v2165 = vunpack.c.l.b16 %v1856
  %v2166 = vunpack.c.h.b16 %v1856
  %v2167 = vunpack.c.l.b16 %v1857
  %v2168 = vunpack.c.h.b16 %v1857
  %v2169 = vunpack.c.l.b16 %v1858
  %v2170 = vunpack.c.h.b16 %v1858
  %v2171 = vunpack.c.l.b16 %v1859
  %v2172 = vunpack.c.l.b16 %v1860
  %v2173 = vunpack.c.h.b16 %v1860
  %v2174 = vunpack.c.l.b16 %v1861
  %v2175 = vunpack.c.h.b16 %v1861
  %v2176 = vunpack.c.l.b16 %v1862
  %v2177 = vunpack.c.h.b16 %v1862
  %v2178 = vunpack.c.l.b16 %v1863
  %v2179 = vunpack.c.h.b16 %v1863
  %v2180 = vunpack.c.l.b16 %v1864
  %v2181 = vunpack.c.l.b16 %v1865
  %v2182 = vunpack.c.h.b16 %v1865
  %v2183 = vunpack.c.l.b16 %v1866
  %v2184 = vunpack.c.h.b16 %v1866
  %v2185 = vunpack.c.l.b16 %v1867
  %v2186 = vunpack.c.h.b16 %v1867
  %v2187 = vunpack.c.l.b16 %v1868
  %v2188 = vunpack.c.h.b16 %v1868
  %v2189 = vunpack.c.l.b16 %v1869
  %v2190 = vunpack.c.l.b16 %v1870
  %v2191 = vunpack.c.h.b16 %v1870
  %v2192 = vunpack.c.l.b16 %v1871
  %v2193 = vunpack.c.h.b16 %v1871
  %v2194 = vunpack.c.l.b16 %v1872
  %v2195 = vunpack.c.h.b16 %v1872
  %v2196 = vunpack.c.l.b16 %v1873
  %v2197 = vunpack.c.h.b16 %v1873
  %v2198 = vunpack.c.l.b16 %v1874
  %v2199 = vunpack.c.l.b16 %v1875
  %v2200 = vunpack.c.h.b16 %v1875
  %v2201 = vunpack.c.l.b16 %v1876
  %v2202 = vunpack.c.h.b16 %v1876
  %v2203 = vunpack.c.l.b16 %v1877
  %v2204 = vunpack.c.h.b16 %v1877
  %v2205 = vunpack.c.l.b16 %v1878
  %v2206 = vunpack.c.h.b16 %v1878
  %v2207 = vunpack.c.l.b16 %v1879
  %v2208 = vunpack.c.l.b16 %v1880
  %v2209 = vunpack.c.h.b16 %v1880
  %v2210 = vunpack.c.l.b16 %v1881
  %v2211 = vunpack.c.h.b16 %v1881
  %v2212 = vunpack.c.l.b16 %v1882
  %v2213 = vunpack.c.h.b16 %v1882
  %v2214 = vunpack.c.l.b16 %v1883
  %v2215 = vunpack.c.h.b16 %v1883
  %v2216 = vunpack.c.l.b16 %v1884
  %v2217 = vunpack.c.l.b16 %v1885
  %v2218 = vunpack.c.h.b16 %v1885
  %v2219 = vunpack.c.l.b16 %v1886
  %v2220 = vunpack.c.h.b16 %v1886
  %v2221 = vunpack.c.l.b16 %v1887
  %v2222 = vunpack.c.h.b16 %v1887
  %v2223 = vunpack.c.l.b16 %v1888
  %v2224 = vunpack.c.h.b16 %v1888
  %v2225 = vunpack.c.l.b16 %v1889
  %v2226 = vunpack.c.l.b16 %v1890
  %v2227 = vunpack.c.h.b16 %v1890
  %v2228 = vunpack.c.l.b16 %v1891
  %v2229 = vunpack.c.h.b16 %v1891
  %v2230 = vunpack.c.l.b16 %v1892
  %v2231 = vunpack.c.h.b16 %v1892
  %v2232 = vunpack.c.l.b16 %v1893
  %v2233 = vunpack.c.h.b16 %v1893
  %v2234 = vunpack.c.l.b16 %v1894
  %v2235 = vunpack.c.l.b16 %v1895
  %v2236 = vunpack.c.h.b16 %v1895
  %v2237 = vunpack.c.l.b16 %v1896
  %v2238 = vunpack.c.h.b16 %v1896
  %v2239 = vunpack.c.l.b16 %v1897
  %v2240 = vunpack.c.h.b16 %v1897
  %v2241 = vunpack.c.l.b16 %v1898
  %v2242 = vunpack.c.h.b16 %v1898
  %v2243 = vunpack.c.l.b16 %v1899
  %v2244 = vunpack.c.l.b16 %v1900
  %v2245 = vunpack.c.h.b16 %v1900
  %v2246 = vunpack.c.l.b16 %v1901
  %v2247 = vunpack.c.h.b16 %v1901
  %v2248 = vunpack.c.l.b16 %v1902
  %v2249 = vunpack.c.h.b16 %v1902
  %v2250 = vunpack.c.l.b16 %v1903
  %v2251 = vunpack.c.h.b16 %v1903
  %v2252 = vunpack.c.l.b16 %v1904
  %v2253 = vunpack.c.l.b16 %v1905
  %v2254 = vunpack.c.h.b16 %v1905
  %v2255 = vunpack.c.l.b16 %v1906
  %v2256 = vunpack.c.h.b16 %v1906
  %v2257 = vunpack.c.l.b16 %v1907
  %v2258 = vunpack.c.h.b16 %v1907
  %v2259 = vunpack.c.l.b16 %v1908
  %v2260 = vunpack.c.h.b16 %v1908
  %v2261 = vunpack.c.l.b16 %v1909
  %v2262 = vunpack.c.l.b16 %v1910
  %v2263 = vunpack.c.h.b16 %v1910
  %v2264 = vunpack.c.l.b16 %v1911
  %v2265 = vunpack.c.h.b16 %v1911
  %v2266 = vunpack.c.l.b16 %v1912
  %v2267 = vunpack.c.h.b16 %v1912
  %v2268 = vunpack.c.l.b16 %v1913
  %v2269 = vunpack.c.h.b16 %v1913
  %v2270 = vunpack.c.l.b16 %v1914
  %v2271 = vunpack.c.l.b16 %v1915
  %v2272 = vunpack.c.h.b16 %v1915
  %v2273 = vunpack.c.l.b16 %v1916
  %v2274 = vunpack.c.h.b16 %v1916
  %v2275 = vunpack.c.l.b16 %v1917
  %v2276 = vunpack.c.h.b16 %v1917
  %v2277 = vunpack.c.l.b16 %v1918
  %v2278 = vunpack.c.h.b16 %v1918
  %v2279 = vunpack.c.l.b16 %v1919
  %v2280 = vunpack.c.l.b16 %v1920
  %v2281 = vunpack.c.h.b16 %v1920
  %v2282 = vunpack.c.l.b16 %v1921
  %v2283 = vunpack.c.h.b16 %v1921
  %v2284 = vunpack.c.l.b16 %v1922
  %v2285 = vunpack.c.h.b16 %v1922
  %v2286 = vunpack.c.l.b16 %v1923
  %v2287 = vunpack.c.h.b16 %v1923
  %v2288 = vunpack.c.l.b16 %v1924
  %v2289 = vunpack.c.l.b16 %v1925
  %v2290 = vunpack.c.h.b16 %v1925
  %v2291 = vunpack.c.l.b16 %v1926
  %v2292 = vunpack.c.h.b16 %v1926
  %v2293 = vunpack.c.l.b16 %v1927
  %v2294 = vunpack.c.h.b16 %v1927
  %v2295 = vunpack.c.l.b16 %v1928
  %v2296 = vunpack.c.h.b16 %v1928
  %v2297 = vunpack.c.l.b16 %v1929
  %v2298 = vpack.c.b16 %v2163, %v2154
  %v2299 = vpack.c.b16 %v2164, %v2155
  %v2300 = vpack.c.b16 %v2165, %v2156
  %v2301 = vpack.c.b16 %v2166, %v2157
  %v2302 = vpack.c.b16 %v2167, %v2158
  %v2303 = vpack.c.b16 %v2168, %v2159
  %v2304 = vpack.c.b16 %v2169, %v2160
  %v2305 = vpack.c.b16 %v2170, %v2161
  %v2306 = vpack.c.b16 %v2171, %v2162
  %v2307 = vpack.c.b16 %v2181, %v2172
  %v2308 = vpack.c.b16 %v2182, %v2173
  %v2309 = vpack.c.b16 %v2183, %v2174
  %v2310 = vpack.c.b16 %v2184, %v2175
  %v2311 = vpack.c.b16 %v2185, %v2176
  %v2312 = vpack.c.b16 %v2186, %v2177
  %v2313 = vpack.c.b16 %v2187, %v2178
  %v2314 = vpack.c.b16 %v2188, %v2179
  %v2315 = vpack.c.b16 %v2189, %v2180
  %v2316 = vpack.c.b16 %v2199, %v2190
  %v2317 = vpack.c.b16 %v2200, %v2191
  %v2318 = vpack.c.b16 %v2201, %v2192
  %v2319 = vpack.c.b16 %v2202, %v2193
  %v2320 = vpack.c.b16 %v2203, %v2194
  %v2321 = vpack.c.b16 %v2204, %v2195
  %v2322 = vpack.c.b16 %v2205, %v2196
  %v2323 = vpack.c.b16 %v2206, %v2197
  %v2324 = vpack.c.b16 %v2207, %v2198
  %v2325 = vpack.c.b16 %v2217, %v2208
  %v2326 = vpack.c.b16 %v2218, %v2209
  %v2327 = vpack.c.b16 %v2219, %v2210
  %v2328 = vpack.c.b16 %v2220, %v2211
  %v2329 = vpack.c.b16 %v2221, %v2212
  %v2330 = vpack.c.b16 %v2222, %v2213
  %v2331 = vpack.c.b16 %v2223, %v2214
  %v2332 = vpack.c.b16 %v2224, %v2215
  %v2333 = vpack.c.b16 %v2225, %v2216
  %v2334 = vpack.c.b16 %v2235, %v2226
  %v2335 = vpack.c.b16 %v2236, %v2227
  %v2336 = vpack.c.b16 %v2237, %v2228
  %v2337 = vpack.c.b16 %v2238, %v2229
  %v2338 = vpack.c.b16 %v2239, %v2230
  %v2339 = vpack.c.b16 %v2240, %v2231
  %v2340 = vpack.c.b16 %v2241, %v2232
  %v2341 = vpack.c.b16 %v2242, %v2233
  %v2342 = vpack.c.b16 %v2243, %v2234
  %v2343 = vpack.c.b16 %v2253, %v2244
  %v2344 = vpack.c.b16 %v2254, %v2245
  %v2345 = vpack.c.b16 %v2255, %v2246
  %v2346 = vpack.c.b16 %v2256, %v2247
  %v2347 = vpack.c.b16 %v2257, %v2248
  %v2348 = vpack.c.b16 %v2258, %v2249
  %v2349 = vpack.c.b16 %v2259, %v2250
  %v2350 = vpack.c.b16 %v2260, %v2251
  %v2351 = vpack.c.b16 %v2261, %v2252
  %v2352 = vpack.c.b16 %v2271, %v2262
  %v2353 = vpack.c.b16 %v2272, %v2263
  %v2354 = vpack.c.b16 %v2273, %v2264
  %v2355 = vpack.c.b16 %v2274, %v2265
  %v2356 = vpack.c.b16 %v2275, %v2266
  %v2357 = vpack.c.b16 %v2276, %v2267
  %v2358 = vpack.c.b16 %v2277, %v2268
  %v2359 = vpack.c.b16 %v2278, %v2269
  %v2360 = vpack.c.b16 %v2279, %v2270
  %v2361 = vpack.c.b16 %v2289, %v2280
  %v2362 = vpack.c.b16 %v2290, %v2281
  %v2363 = vpack.c.b16 %v2291, %v2282
  %v2364 = vpack.c.b16 %v2292, %v2283
  %v2365 = vpack.c.b16 %v2293, %v2284
  %v2366 = vpack.c.b16 %v2294, %v2285
  %v2367 = vpack.c.b16 %v2295, %v2286
  %v2368 = vpack.c.b16 %v2296, %v2287
  %v2369 = vpack.c.b16 %v2297, %v2288
  %v2586 = vunpack.c.l.b16 %v1930
  %v2587 = vunpack.c.l.b16 %v1931
  %v2588 = vunpack.c.l.b16 %v1932
  %v2589 = vunpack.c.l.b16 %v1933
  %v2590 = vunpack.c.l.b16 %v1934
  %v2591 = vunpack.c.l.b16 %v1935
  %v2592 = vunpack.c.l.b16 %v1936
  %v2593 = vunpack.c.l.b16 %v1937
  %v2594 = vunpack.c.l.b16 %v1938
  %v2595 = vunpack.c.l.b16 %v1939
  %v2596 = vunpack.c.l.b16 %v1940
  %v2597 = vunpack.c.l.b16 %v1941
  %v2598 = vunpack.c.l.b16 %v1942
  %v2599 = vunpack.c.l.b16 %v1943
  %v2600 = vunpack.c.l.b16 %v1944
  %v2601 = vunpack.c.l.b16 %v1945
  %v2602 = vunpack.c.l.b16 %v1946
  %v2603 = vunpack.c.l.b16 %v1947
  %v2604 = vunpack.c.l.b16 %v1948
  %v2605 = vunpack.c.l.b16 %v1949
  %v2606 = vunpack.c.l.b16 %v1950
  %v2607 = vunpack.c.l.b16 %v1951
  %v2608 = vunpack.c.l.b16 %v1952
  %v2609 = vunpack.c.l.b16 %v1953
  %v2610 = vunpack.c.l.b16 %v1954
  %v2611 = vunpack.c.l.b16 %v1955
  %v2612 = vunpack.c.l.b16 %v1956
  %v2613 = vunpack.c.l.b16 %v1957
  %v2614 = vunpack.c.l.b16 %v1958
  %v2615 = vunpack.c.l.b16 %v1959
  %v2616 = vunpack.c.l.b16 %v1960
  %v2617 = vunpack.c.l.b16 %v1961
  %v2618 = vunpack.c.l.b16 %v1962
  %v2619 = vunpack.c.l.b16 %v1963
  %v2620 = vunpack.c.l.b16 %v1964
  %v2621 = vunpack.c.l.b16 %v1965
  %v2622 = vunpack.c.l.b16 %v1966
  %v2623 = vunpack.c.l.b16 %v1967
  %v2624 = vunpack.c.l.b16 %v1968
  %v2625 = vunpack.c.l.b16 %v1969
  %v2626 = vunpack.c.l.b16 %v1970
  %v2627 = vunpack.c.l.b16 %v1971
  %v2628 = vunpack.c.l.b16 %v1972
  %v2629 = vunpack.c.l.b16 %v1973
  %v2630 = vunpack.c.l.b16 %v1974
  %v2631 = vunpack.c.l.b16 %v1975
  %v2632 = vunpack.c.l.b16 %v1976
  %v2633 = vunpack.c.l.b16 %v1977
  %v2634 = vunpack.c.l.b16 %v1978
  %v2635 = vunpack.c.l.b16 %v1979
  %v2636 = vunpack.c.l.b16 %v1980
  %v2637 = vunpack.c.l.b16 %v1981
  %v2638 = vunpack.c.l.b16 %v1982
  %v2639 = vunpack.c.l.b16 %v1983
  %v2640 = vunpack.c.l.b16 %v1984
  %v2641 = vunpack.c.l.b16 %v1985
  %v2642 = vunpack.c.l.b16 %v1986
  %v2643 = vunpack.c.l.b16 %v1987
  %v2644 = vunpack.c.l.b16 %v1988
  %v2645 = vunpack.c.l.b16 %v1989
  %v2646 = vunpack.c.l.b16 %v1990
  %v2647 = vunpack.c.l.b16 %v1991
  %v2648 = vunpack.c.l.b16 %v1992
  %v2649 = vunpack.c.l.b16 %v1993
  %v2650 = vunpack.c.l.b16 %v1994
  %v2651 = vunpack.c.l.b16 %v1995
  %v2652 = vunpack.c.l.b16 %v1996
  %v2653 = vunpack.c.l.b16 %v1997
  %v2654 = vunpack.c.l.b16 %v1998
  %v2655 = vunpack.c.l.b16 %v1999
  %v2656 = vunpack.c.l.b16 %v2000
  %v2657 = vunpack.c.l.b16 %v2001
  %v2658 = vunpack.c.l.b16 %v2002
  %v2659 = vunpack.c.l.b16 %v2003
  %v2660 = vunpack.c.l.b16 %v2004
  %v2661 = vunpack.c.l.b16 %v2005
  %v2662 = vunpack.c.l.b16 %v2006
  %v2663 = vunpack.c.l.b16 %v2007
  %v2664 = vunpack.c.l.b16 %v2008
  %v2665 = vunpack.c.l.b16 %v2009
  %v2666 = vunpack.c.l.b16 %v2010
  %v2667 = vunpack.c.l.b16 %v2011
  %v2668 = vunpack.c.l.b16 %v2012
  %v2669 = vunpack.c.l.b16 %v2013
  %v2670 = vunpack.c.l.b16 %v2014
  %v2671 = vunpack.c.l.b16 %v2015
  %v2672 = vunpack.c.l.b16 %v2016
  %v2673 = vunpack.c.l.b16 %v2017
  %v2674 = vunpack.c.l.b16 %v2018
  %v2675 = vunpack.c.l.b16 %v2019
  %v2676 = vunpack.c.l.b16 %v2020
  %v2677 = vunpack.c.l.b16 %v2021
  %v2678 = vunpack.c.l.b16 %v2022
  %v2679 = vunpack.c.l.b16 %v2023
  %v2680 = vunpack.c.l.b16 %v2024
  %v2681 = vunpack.c.l.b16 %v2025
  %v2682 = vunpack.c.l.b16 %v2026
  %v2683 = vunpack.c.l.b16 %v2027
  %v2684 = vunpack.c.l.b16 %v2028
  %v2685 = vunpack.c.l.b16 %v2029
  %v2686 = vunpack.c.l.b16 %v2030
  %v2687 = vunpack.c.l.b16 %v2031
  %v2688 = vunpack.c.l.b16 %v2032
  %v2689 = vunpack.c.l.b16 %v2033
  %v2690 = vunpack.c.l.b16 %v2034
  %v2691 = vunpack.c.l.b16 %v2035
  %v2692 = vunpack.c.l.b16 %v2036
  %v2693 = vunpack.c.l.b16 %v2037
  %v2694 = vunpack.c.l.b16 %v2038
  %v2695 = vunpack.c.l.b16 %v2039
  %v2696 = vunpack.c.l.b16 %v2040
  %v2697 = vunpack.c.l.b16 %v2041
  %v2698 = vunpack.c.l.b16 %v2042
  %v2699 = vunpack.c.l.b16 %v2043
  %v2700 = vunpack.c.l.b16 %v2044
  %v2701 = vunpack.c.l.b16 %v2045
  %v2702 = vunpack.c.l.b16 %v2046
  %v2703 = vunpack.c.l.b16 %v2047
  %v2704 = vunpack.c.l.b16 %v2048
  %v2705 = vunpack.c.l.b16 %v2049
  %v2706 = vunpack.c.l.b16 %v2050
  %v2707 = vunpack.c.l.b16 %v2051
  %v2708 = vunpack.c.l.b16 %v2052
  %v2709 = vunpack.c.l.b16 %v2053
  %v2710 = vunpack.c.l.b16 %v2054
  %v2711 = vunpack.c.l.b16 %v2055
  %v2712 = vunpack.c.l.b16 %v2056
  %v2713 = vunpack.c.l.b16 %v2057
  %v2714 = vunpack.c.l.b16 %v2058
  %v2715 = vunpack.c.l.b16 %v2059
  %v2716 = vunpack.c.l.b16 %v2060
  %v2717 = vunpack.c.l.b16 %v2061
  %v2718 = vunpack.c.l.b16 %v2062
  %v2719 = vunpack.c.l.b16 %v2063
  %v2720 = vunpack.c.l.b16 %v2064
  %v2721 = vunpack.c.l.b16 %v2065
  %v2722 = vunpack.c.l.b16 %v2066
  %v2723 = vunpack.c.l.b16 %v2067
  %v2724 = vunpack.c.l.b16 %v2068
  %v2725 = vunpack.c.l.b16 %v2069
  %v2726 = vunpack.c.l.b16 %v2070
  %v2727 = vunpack.c.l.b16 %v2071
  %v2728 = vunpack.c.l.b16 %v2072
  %v2729 = vunpack.c.l.b16 %v2073
  %v2730 = vpack.c.b16 %v2587, %v2586
  %v2731 = vpack.c.b16 %v2589, %v2588
  %v2732 = vpack.c.b16 %v2591, %v2590
  %v2733 = vpack.c.b16 %v2593, %v2592
  %v2734 = vpack.c.b16 %v2595, %v2594
  %v2735 = vpack.c.b16 %v2597, %v2596
  %v2736 = vpack.c.b16 %v2599, %v2598
  %v2737 = vpack.c.b16 %v2601, %v2600
  %v2738 = vpack.c.b16 %v2603, %v2602
  %v2739 = vpack.c.b16 %v2605, %v2604
  %v2740 = vpack.c.b16 %v2607, %v2606
  %v2741 = vpack.c.b16 %v2609, %v2608
  %v2742 = vpack.c.b16 %v2611, %v2610
  %v2743 = vpack.c.b16 %v2613, %v2612
  %v2744 = vpack.c.b16 %v2615, %v2614
  %v2745 = vpack.c.b16 %v2617, %v2616
  %v2746 = vpack.c.b16 %v2619, %v2618
  %v2747 = vpack.c.b16 %v2621, %v2620
  %v2748 = vpack.c.b16 %v2623, %v2622
  %v2749 = vpack.c.b16 %v2625, %v2624
  %v2750 = vpack.c.b16 %v2627, %v2626
  %v2751 = vpack.c.b16 %v2629, %v2628
  %v2752 = vpack.c.b16 %v2631, %v2630
  %v2753 = vpack.c.b16 %v2633, %v2632
  %v2754 = vpack.c.b16 %v2635, %v2634
  %v2755 = vpack.c.b16 %v2637, %v2636
  %v2756 = vpack.c.b16 %v2639, %v2638
  %v2757 = vpack.c.b16 %v2641, %v2640
  %v2758 = vpack.c.b16 %v2643, %v2642
  %v2759 = vpack.c.b16 %v2645, %v2644
  %v2760 = vpack.c.b16 %v2647, %v2646
  %v2761 = vpack.c.b16 %v2649, %v2648
  %v2762 = vpack.c.b16 %v2651, %v2650
  %v2763 = vpack.c.b16 %v2653, %v2652
  %v2764 = vpack.c.b16 %v2655, %v2654
  %v2765 = vpack.c.b16 %v2657, %v2656
  %v2766 = vpack.c.b16 %v2659, %v2658
  %v2767 = vpack.c.b16 %v2661, %v2660
  %v2768 = vpack.c.b16 %v2663, %v2662
  %v2769 = vpack.c.b16 %v2665, %v2664
  %v2770 = vpack.c.b16 %v2667, %v2666
  %v2771 = vpack.c.b16 %v2669, %v2668
  %v2772 = vpack.c.b16 %v2671, %v2670
  %v2773 = vpack.c.b16 %v2673, %v2672
  %v2774 = vpack.c.b16 %v2675, %v2674
  %v2775 = vpack.c.b16 %v2677, %v2676
  %v2776 = vpack.c.b16 %v2679, %v2678
  %v2777 = vpack.c.b16 %v2681, %v2680
  %v2778 = vpack.c.b16 %v2683, %v2682
  %v2779 = vpack.c.b16 %v2685, %v2684
  %v2780 = vpack.c.b16 %v2687, %v2686
  %v2781 = vpack.c.b16 %v2689, %v2688
  %v2782 = vpack.c.b16 %v2691, %v2690
  %v2783 = vpack.c.b16 %v2693, %v2692
  %v2784 = vpack.c.b16 %v2695, %v2694
  %v2785 = vpack.c.b16 %v2697, %v2696
  %v2786 = vpack.c.b16 %v2699, %v2698
  %v2787 = vpack.c.b16 %v2701, %v2700
  %v2788 = vpack.c.b16 %v2703, %v2702
  %v2789 = vpack.c.b16 %v2705, %v2704
  %v2790 = vpack.c.b16 %v2707, %v2706
  %v2791 = vpack.c.b16 %v2709, %v2708
  %v2792 = vpack.c.b16 %v2711, %v2710
  %v2793 = vpack.c.b16 %v2713, %v2712
  %v2794 = vpack.c.b16 %v2715, %v2714
  %v2795 = vpack.c.b16 %v2717, %v2716
  %v2796 = vpack.c.b16 %v2719, %v2718
  %v2797 = vpack.c.b16 %v2721, %v2720
  %v2798 = vpack.c.b16 %v2723, %v2722
  %v2799 = vpack.c.b16 %v2725, %v2724
  %v2800 = vpack.c.b16 %v2727, %v2726
  %v2801 = vpack.c.b16 %v2729, %v2728
  %2874 = vmatpush.bf16.msra.mxu0 %v2737
  %2875 = vmatpush.bf16.msra.mxu0 %v2736
  %2876 = vmatpush.bf16.msra.mxu0 %v2735
  %2877 = vmatpush.bf16.msra.mxu0 %v2734
  %2878 = vmatpush.bf16.msra.mxu0 %v2733
  %2879 = vmatpush.bf16.msra.mxu0 %v2732
  %2880 = vmatpush.bf16.msra.mxu0 %v2731
  %2881 = vmatpush.bf16.msra.mxu0 %v2730
  %2882 = vmatmul.bf16.gmra.mxu0 %v2298
  %v2883 = vpop.f32.mrf.mxu0
  %v2884 = vadd.f32 0.0, %v2883
  %v2885 = vpop.f32.mrf.mxu0
  %v2886 = vadd.f32 0.0, %v2885
  %2887 = vmatmul.bf16.gmra.mxu0 %v2307
  %v2888 = vpop.f32.mrf.mxu0
  %v2889 = vadd.f32 0.0, %v2888
  %v2890 = vpop.f32.mrf.mxu0
  %v2891 = vadd.f32 0.0, %v2890
  %2892 = vmatmul.bf16.gmra.mxu0 %v2316
  %v2893 = vpop.f32.mrf.mxu0
  %v2894 = vadd.f32 0.0, %v2893
  %v2895 = vpop.f32.mrf.mxu0
  %v2896 = vadd.f32 0.0, %v2895
  %2897 = vmatmul.bf16.gmra.mxu0 %v2325
  %v2898 = vpop.f32.mrf.mxu0
  %v2899 = vadd.f32 0.0, %v2898
  %v2900 = vpop.f32.mrf.mxu0
  %v2901 = vadd.f32 0.0, %v2900
  %2902 = vmatmul.bf16.gmra.mxu0 %v2334
  %v2903 = vpop.f32.mrf.mxu0
  %v2904 = vadd.f32 0.0, %v2903
  %v2905 = vpop.f32.mrf.mxu0
  %v2906 = vadd.f32 0.0, %v2905
  %2907 = vmatmul.bf16.gmra.mxu0 %v2343
  %v2908 = vpop.f32.mrf.mxu0
  %v2909 = vadd.f32 0.0, %v2908
  %v2910 = vpop.f32.mrf.mxu0
  %v2911 = vadd.f32 0.0, %v2910
  %2912 = vmatmul.bf16.gmra.mxu0 %v2352
  %v2913 = vpop.f32.mrf.mxu0
  %v2914 = vadd.f32 0.0, %v2913
  %v2915 = vpop.f32.mrf.mxu0
  %v2916 = vadd.f32 0.0, %v2915
  %2917 = vmatmul.bf16.gmra.mxu0 %v2361
  %v2918 = vpop.f32.mrf.mxu0
  %v2919 = vadd.f32 0.0, %v2918
  %v2920 = vpop.f32.mrf.mxu0
  %v2921 = vadd.f32 0.0, %v2920
  %2922 = vdwg.mxu0
  %2923 = vmatpush.bf16.msra.mxu0 %v2745
  %2924 = vmatpush.bf16.msra.mxu0 %v2744
  %2925 = vmatpush.bf16.msra.mxu0 %v2743
  %2926 = vmatpush.bf16.msra.mxu0 %v2742
  %2927 = vmatpush.bf16.msra.mxu0 %v2741
  %2928 = vmatpush.bf16.msra.mxu0 %v2740
  %2929 = vmatpush.bf16.msra.mxu0 %v2739
  %2930 = vmatpush.bf16.msra.mxu0 %v2738
  %2931 = vmatmul.bf16.gmra.mxu0 %v2299
  %v2932 = vpop.f32.mrf.mxu0
  %v2933 = vadd.f32 %v2884, %v2932
  %v2934 = vpop.f32.mrf.mxu0
  %v2935 = vadd.f32 %v2886, %v2934
  %2936 = vmatmul.bf16.gmra.mxu0 %v2308
  %v2937 = vpop.f32.mrf.mxu0
  %v2938 = vadd.f32 %v2889, %v2937
  %v2939 = vpop.f32.mrf.mxu0
  %v2940 = vadd.f32 %v2891, %v2939
  %2941 = vmatmul.bf16.gmra.mxu0 %v2317
  %v2942 = vpop.f32.mrf.mxu0
  %v2943 = vadd.f32 %v2894, %v2942
  %v2944 = vpop.f32.mrf.mxu0
  %v2945 = vadd.f32 %v2896, %v2944
  %2946 = vmatmul.bf16.gmra.mxu0 %v2326
  %v2947 = vpop.f32.mrf.mxu0
  %v2948 = vadd.f32 %v2899, %v2947
  %v2949 = vpop.f32.mrf.mxu0
  %v2950 = vadd.f32 %v2901, %v2949
  %2951 = vmatmul.bf16.gmra.mxu0 %v2335
  %v2952 = vpop.f32.mrf.mxu0
  %v2953 = vadd.f32 %v2904, %v2952
  %v2954 = vpop.f32.mrf.mxu0
  %v2955 = vadd.f32 %v2906, %v2954
  %2956 = vmatmul.bf16.gmra.mxu0 %v2344
  %v2957 = vpop.f32.mrf.mxu0
  %v2958 = vadd.f32 %v2909, %v2957
  %v2959 = vpop.f32.mrf.mxu0
  %v2960 = vadd.f32 %v2911, %v2959
  %2961 = vmatmul.bf16.gmra.mxu0 %v2353
  %v2962 = vpop.f32.mrf.mxu0
  %v2963 = vadd.f32 %v2914, %v2962
  %v2964 = vpop.f32.mrf.mxu0
  %v2965 = vadd.f32 %v2916, %v2964
  %2966 = vmatmul.bf16.gmra.mxu0 %v2362
  %v2967 = vpop.f32.mrf.mxu0
  %v2968 = vadd.f32 %v2919, %v2967
  %v2969 = vpop.f32.mrf.mxu0
  %v2970 = vadd.f32 %v2921, %v2969
  %2971 = vdwg.mxu0
  %2972 = vmatpush.bf16.msra.mxu0 %v2753
  %2973 = vmatpush.bf16.msra.mxu0 %v2752
  %2974 = vmatpush.bf16.msra.mxu0 %v2751
  %2975 = vmatpush.bf16.msra.mxu0 %v2750
  %2976 = vmatpush.bf16.msra.mxu0 %v2749
  %2977 = vmatpush.bf16.msra.mxu0 %v2748
  %2978 = vmatpush.bf16.msra.mxu0 %v2747
  %2979 = vmatpush.bf16.msra.mxu0 %v2746
  %2980 = vmatmul.bf16.gmra.mxu0 %v2300
  %v2981 = vpop.f32.mrf.mxu0
  %v2982 = vadd.f32 %v2933, %v2981
  %v2983 = vpop.f32.mrf.mxu0
  %v2984 = vadd.f32 %v2935, %v2983
  %2985 = vmatmul.bf16.gmra.mxu0 %v2309
  %v2986 = vpop.f32.mrf.mxu0
  %v2987 = vadd.f32 %v2938, %v2986
  %v2988 = vpop.f32.mrf.mxu0
  %v2989 = vadd.f32 %v2940, %v2988
  %2990 = vmatmul.bf16.gmra.mxu0 %v2318
  %v2991 = vpop.f32.mrf.mxu0
  %v2992 = vadd.f32 %v2943, %v2991
  %v2993 = vpop.f32.mrf.mxu0
  %v2994 = vadd.f32 %v2945, %v2993
  %2995 = vmatmul.bf16.gmra.mxu0 %v2327
  %v2996 = vpop.f32.mrf.mxu0
  %v2997 = vadd.f32 %v2948, %v2996
  %v2998 = vpop.f32.mrf.mxu0
  %v2999 = vadd.f32 %v2950, %v2998
  %3000 = vmatmul.bf16.gmra.mxu0 %v2336
  %v3001 = vpop.f32.mrf.mxu0
  %v3002 = vadd.f32 %v2953, %v3001
  %v3003 = vpop.f32.mrf.mxu0
  %v3004 = vadd.f32 %v2955, %v3003
  %3005 = vmatmul.bf16.gmra.mxu0 %v2345
  %v3006 = vpop.f32.mrf.mxu0
  %v3007 = vadd.f32 %v2958, %v3006
  %v3008 = vpop.f32.mrf.mxu0
  %v3009 = vadd.f32 %v2960, %v3008
  %3010 = vmatmul.bf16.gmra.mxu0 %v2354
  %v3011 = vpop.f32.mrf.mxu0
  %v3012 = vadd.f32 %v2963, %v3011
  %v3013 = vpop.f32.mrf.mxu0
  %v3014 = vadd.f32 %v2965, %v3013
  %3015 = vmatmul.bf16.gmra.mxu0 %v2363
  %v3016 = vpop.f32.mrf.mxu0
  %v3017 = vadd.f32 %v2968, %v3016
  %v3018 = vpop.f32.mrf.mxu0
  %v3019 = vadd.f32 %v2970, %v3018
  %3020 = vdwg.mxu0
  %3021 = vmatpush.bf16.msra.mxu0 %v2761
  %3022 = vmatpush.bf16.msra.mxu0 %v2760
  %3023 = vmatpush.bf16.msra.mxu0 %v2759
  %3024 = vmatpush.bf16.msra.mxu0 %v2758
  %3025 = vmatpush.bf16.msra.mxu0 %v2757
  %3026 = vmatpush.bf16.msra.mxu0 %v2756
  %3027 = vmatpush.bf16.msra.mxu0 %v2755
  %3028 = vmatpush.bf16.msra.mxu0 %v2754
  %3029 = vmatmul.bf16.gmra.mxu0 %v2301
  %v3030 = vpop.f32.mrf.mxu0
  %v3031 = vadd.f32 %v2982, %v3030
  %v3032 = vpop.f32.mrf.mxu0
  %v3033 = vadd.f32 %v2984, %v3032
  %3034 = vmatmul.bf16.gmra.mxu0 %v2310
  %v3035 = vpop.f32.mrf.mxu0
  %v3036 = vadd.f32 %v2987, %v3035
  %v3037 = vpop.f32.mrf.mxu0
  %v3038 = vadd.f32 %v2989, %v3037
  %3039 = vmatmul.bf16.gmra.mxu0 %v2319
  %v3040 = vpop.f32.mrf.mxu0
  %v3041 = vadd.f32 %v2992, %v3040
  %v3042 = vpop.f32.mrf.mxu0
  %v3043 = vadd.f32 %v2994, %v3042
  %3044 = vmatmul.bf16.gmra.mxu0 %v2328
  %v3045 = vpop.f32.mrf.mxu0
  %v3046 = vadd.f32 %v2997, %v3045
  %v3047 = vpop.f32.mrf.mxu0
  %v3048 = vadd.f32 %v2999, %v3047
  %3049 = vmatmul.bf16.gmra.mxu0 %v2337
  %v3050 = vpop.f32.mrf.mxu0
  %v3051 = vadd.f32 %v3002, %v3050
  %v3052 = vpop.f32.mrf.mxu0
  %v3053 = vadd.f32 %v3004, %v3052
  %3054 = vmatmul.bf16.gmra.mxu0 %v2346
  %v3055 = vpop.f32.mrf.mxu0
  %v3056 = vadd.f32 %v3007, %v3055
  %v3057 = vpop.f32.mrf.mxu0
  %v3058 = vadd.f32 %v3009, %v3057
  %3059 = vmatmul.bf16.gmra.mxu0 %v2355
  %v3060 = vpop.f32.mrf.mxu0
  %v3061 = vadd.f32 %v3012, %v3060
  %v3062 = vpop.f32.mrf.mxu0
  %v3063 = vadd.f32 %v3014, %v3062
  %3064 = vmatmul.bf16.gmra.mxu0 %v2364
  %v3065 = vpop.f32.mrf.mxu0
  %v3066 = vadd.f32 %v3017, %v3065
  %v3067 = vpop.f32.mrf.mxu0
  %v3068 = vadd.f32 %v3019, %v3067
  %3069 = vdwg.mxu0
  %3070 = vmatpush.bf16.msra.mxu0 %v2769
  %3071 = vmatpush.bf16.msra.mxu0 %v2768
  %3072 = vmatpush.bf16.msra.mxu0 %v2767
  %3073 = vmatpush.bf16.msra.mxu0 %v2766
  %3074 = vmatpush.bf16.msra.mxu0 %v2765
  %3075 = vmatpush.bf16.msra.mxu0 %v2764
  %3076 = vmatpush.bf16.msra.mxu0 %v2763
  %3077 = vmatpush.bf16.msra.mxu0 %v2762
  %3078 = vmatmul.bf16.gmra.mxu0 %v2302
  %v3079 = vpop.f32.mrf.mxu0
  %v3080 = vadd.f32 %v3031, %v3079
  %v3081 = vpop.f32.mrf.mxu0
  %v3082 = vadd.f32 %v3033, %v3081
  %3083 = vmatmul.bf16.gmra.mxu0 %v2311
  %v3084 = vpop.f32.mrf.mxu0
  %v3085 = vadd.f32 %v3036, %v3084
  %v3086 = vpop.f32.mrf.mxu0
  %v3087 = vadd.f32 %v3038, %v3086
  %3088 = vmatmul.bf16.gmra.mxu0 %v2320
  %v3089 = vpop.f32.mrf.mxu0
  %v3090 = vadd.f32 %v3041, %v3089
  %v3091 = vpop.f32.mrf.mxu0
  %v3092 = vadd.f32 %v3043, %v3091
  %3093 = vmatmul.bf16.gmra.mxu0 %v2329
  %v3094 = vpop.f32.mrf.mxu0
  %v3095 = vadd.f32 %v3046, %v3094
  %v3096 = vpop.f32.mrf.mxu0
  %v3097 = vadd.f32 %v3048, %v3096
  %3098 = vmatmul.bf16.gmra.mxu0 %v2338
  %v3099 = vpop.f32.mrf.mxu0
  %v3100 = vadd.f32 %v3051, %v3099
  %v3101 = vpop.f32.mrf.mxu0
  %v3102 = vadd.f32 %v3053, %v3101
  %3103 = vmatmul.bf16.gmra.mxu0 %v2347
  %v3104 = vpop.f32.mrf.mxu0
  %v3105 = vadd.f32 %v3056, %v3104
  %v3106 = vpop.f32.mrf.mxu0
  %v3107 = vadd.f32 %v3058, %v3106
  %3108 = vmatmul.bf16.gmra.mxu0 %v2356
  %v3109 = vpop.f32.mrf.mxu0
  %v3110 = vadd.f32 %v3061, %v3109
  %v3111 = vpop.f32.mrf.mxu0
  %v3112 = vadd.f32 %v3063, %v3111
  %3113 = vmatmul.bf16.gmra.mxu0 %v2365
  %v3114 = vpop.f32.mrf.mxu0
  %v3115 = vadd.f32 %v3066, %v3114
  %v3116 = vpop.f32.mrf.mxu0
  %v3117 = vadd.f32 %v3068, %v3116
  %3118 = vdwg.mxu0
  %3119 = vmatpush.bf16.msra.mxu0 %v2777
  %3120 = vmatpush.bf16.msra.mxu0 %v2776
  %3121 = vmatpush.bf16.msra.mxu0 %v2775
  %3122 = vmatpush.bf16.msra.mxu0 %v2774
  %3123 = vmatpush.bf16.msra.mxu0 %v2773
  %3124 = vmatpush.bf16.msra.mxu0 %v2772
  %3125 = vmatpush.bf16.msra.mxu0 %v2771
  %3126 = vmatpush.bf16.msra.mxu0 %v2770
  %3127 = vmatmul.bf16.gmra.mxu0 %v2303
  %v3128 = vpop.f32.mrf.mxu0
  %v3129 = vadd.f32 %v3080, %v3128
  %v3130 = vpop.f32.mrf.mxu0
  %v3131 = vadd.f32 %v3082, %v3130
  %3132 = vmatmul.bf16.gmra.mxu0 %v2312
  %v3133 = vpop.f32.mrf.mxu0
  %v3134 = vadd.f32 %v3085, %v3133
  %v3135 = vpop.f32.mrf.mxu0
  %v3136 = vadd.f32 %v3087, %v3135
  %3137 = vmatmul.bf16.gmra.mxu0 %v2321
  %v3138 = vpop.f32.mrf.mxu0
  %v3139 = vadd.f32 %v3090, %v3138
  %v3140 = vpop.f32.mrf.mxu0
  %v3141 = vadd.f32 %v3092, %v3140
  %3142 = vmatmul.bf16.gmra.mxu0 %v2330
  %v3143 = vpop.f32.mrf.mxu0
  %v3144 = vadd.f32 %v3095, %v3143
  %v3145 = vpop.f32.mrf.mxu0
  %v3146 = vadd.f32 %v3097, %v3145
  %3147 = vmatmul.bf16.gmra.mxu0 %v2339
  %v3148 = vpop.f32.mrf.mxu0
  %v3149 = vadd.f32 %v3100, %v3148
  %v3150 = vpop.f32.mrf.mxu0
  %v3151 = vadd.f32 %v3102, %v3150
  %3152 = vmatmul.bf16.gmra.mxu0 %v2348
  %v3153 = vpop.f32.mrf.mxu0
  %v3154 = vadd.f32 %v3105, %v3153
  %v3155 = vpop.f32.mrf.mxu0
  %v3156 = vadd.f32 %v3107, %v3155
  %3157 = vmatmul.bf16.gmra.mxu0 %v2357
  %v3158 = vpop.f32.mrf.mxu0
  %v3159 = vadd.f32 %v3110, %v3158
  %v3160 = vpop.f32.mrf.mxu0
  %v3161 = vadd.f32 %v3112, %v3160
  %3162 = vmatmul.bf16.gmra.mxu0 %v2366
  %v3163 = vpop.f32.mrf.mxu0
  %v3164 = vadd.f32 %v3115, %v3163
  %v3165 = vpop.f32.mrf.mxu0
  %v3166 = vadd.f32 %v3117, %v3165
  %3167 = vdwg.mxu0
  %3168 = vmatpush.bf16.msra.mxu0 %v2785
  %3169 = vmatpush.bf16.msra.mxu0 %v2784
  %3170 = vmatpush.bf16.msra.mxu0 %v2783
  %3171 = vmatpush.bf16.msra.mxu0 %v2782
  %3172 = vmatpush.bf16.msra.mxu0 %v2781
  %3173 = vmatpush.bf16.msra.mxu0 %v2780
  %3174 = vmatpush.bf16.msra.mxu0 %v2779
  %3175 = vmatpush.bf16.msra.mxu0 %v2778
  %3176 = vmatmul.bf16.gmra.mxu0 %v2304
  %v3177 = vpop.f32.mrf.mxu0
  %v3178 = vadd.f32 %v3129, %v3177
  %v3179 = vpop.f32.mrf.mxu0
  %v3180 = vadd.f32 %v3131, %v3179
  %3181 = vmatmul.bf16.gmra.mxu0 %v2313
  %v3182 = vpop.f32.mrf.mxu0
  %v3183 = vadd.f32 %v3134, %v3182
  %v3184 = vpop.f32.mrf.mxu0
  %v3185 = vadd.f32 %v3136, %v3184
  %3186 = vmatmul.bf16.gmra.mxu0 %v2322
  %v3187 = vpop.f32.mrf.mxu0
  %v3188 = vadd.f32 %v3139, %v3187
  %v3189 = vpop.f32.mrf.mxu0
  %v3190 = vadd.f32 %v3141, %v3189
  %3191 = vmatmul.bf16.gmra.mxu0 %v2331
  %v3192 = vpop.f32.mrf.mxu0
  %v3193 = vadd.f32 %v3144, %v3192
  %v3194 = vpop.f32.mrf.mxu0
  %v3195 = vadd.f32 %v3146, %v3194
  %3196 = vmatmul.bf16.gmra.mxu0 %v2340
  %v3197 = vpop.f32.mrf.mxu0
  %v3198 = vadd.f32 %v3149, %v3197
  %v3199 = vpop.f32.mrf.mxu0
  %v3200 = vadd.f32 %v3151, %v3199
  %3201 = vmatmul.bf16.gmra.mxu0 %v2349
  %v3202 = vpop.f32.mrf.mxu0
  %v3203 = vadd.f32 %v3154, %v3202
  %v3204 = vpop.f32.mrf.mxu0
  %v3205 = vadd.f32 %v3156, %v3204
  %3206 = vmatmul.bf16.gmra.mxu0 %v2358
  %v3207 = vpop.f32.mrf.mxu0
  %v3208 = vadd.f32 %v3159, %v3207
  %v3209 = vpop.f32.mrf.mxu0
  %v3210 = vadd.f32 %v3161, %v3209
  %3211 = vmatmul.bf16.gmra.mxu0 %v2367
  %v3212 = vpop.f32.mrf.mxu0
  %v3213 = vadd.f32 %v3164, %v3212
  %v3214 = vpop.f32.mrf.mxu0
  %v3215 = vadd.f32 %v3166, %v3214
  %3216 = vdwg.mxu0
  %3217 = vmatpush.bf16.msra.mxu0 %v2793
  %3218 = vmatpush.bf16.msra.mxu0 %v2792
  %3219 = vmatpush.bf16.msra.mxu0 %v2791
  %3220 = vmatpush.bf16.msra.mxu0 %v2790
  %3221 = vmatpush.bf16.msra.mxu0 %v2789
  %3222 = vmatpush.bf16.msra.mxu0 %v2788
  %3223 = vmatpush.bf16.msra.mxu0 %v2787
  %3224 = vmatpush.bf16.msra.mxu0 %v2786
  %3225 = vmatmul.bf16.gmra.mxu0 %v2305
  %v3226 = vpop.f32.mrf.mxu0
  %v3227 = vadd.f32 %v3178, %v3226
  %v3228 = vpop.f32.mrf.mxu0
  %v3229 = vadd.f32 %v3180, %v3228
  %3230 = vmatmul.bf16.gmra.mxu0 %v2314
  %v3231 = vpop.f32.mrf.mxu0
  %v3232 = vadd.f32 %v3183, %v3231
  %v3233 = vpop.f32.mrf.mxu0
  %v3234 = vadd.f32 %v3185, %v3233
  %3235 = vmatmul.bf16.gmra.mxu0 %v2323
  %v3236 = vpop.f32.mrf.mxu0
  %v3237 = vadd.f32 %v3188, %v3236
  %v3238 = vpop.f32.mrf.mxu0
  %v3239 = vadd.f32 %v3190, %v3238
  %3240 = vmatmul.bf16.gmra.mxu0 %v2332
  %v3241 = vpop.f32.mrf.mxu0
  %v3242 = vadd.f32 %v3193, %v3241
  %v3243 = vpop.f32.mrf.mxu0
  %v3244 = vadd.f32 %v3195, %v3243
  %3245 = vmatmul.bf16.gmra.mxu0 %v2341
  %v3246 = vpop.f32.mrf.mxu0
  %v3247 = vadd.f32 %v3198, %v3246
  %v3248 = vpop.f32.mrf.mxu0
  %v3249 = vadd.f32 %v3200, %v3248
  %3250 = vmatmul.bf16.gmra.mxu0 %v2350
  %v3251 = vpop.f32.mrf.mxu0
  %v3252 = vadd.f32 %v3203, %v3251
  %v3253 = vpop.f32.mrf.mxu0
  %v3254 = vadd.f32 %v3205, %v3253
  %3255 = vmatmul.bf16.gmra.mxu0 %v2359
  %v3256 = vpop.f32.mrf.mxu0
  %v3257 = vadd.f32 %v3208, %v3256
  %v3258 = vpop.f32.mrf.mxu0
  %v3259 = vadd.f32 %v3210, %v3258
  %3260 = vmatmul.bf16.gmra.mxu0 %v2368
  %v3261 = vpop.f32.mrf.mxu0
  %v3262 = vadd.f32 %v3213, %v3261
  %v3263 = vpop.f32.mrf.mxu0
  %v3264 = vadd.f32 %v3215, %v3263
  %3265 = vdwg.mxu0
  %3266 = vmatpush.bf16.msra.mxu0 %v2801
  %3267 = vmatpush.bf16.msra.mxu0 %v2800
  %3268 = vmatpush.bf16.msra.mxu0 %v2799
  %3269 = vmatpush.bf16.msra.mxu0 %v2798
  %3270 = vmatpush.bf16.msra.mxu0 %v2797
  %3271 = vmatpush.bf16.msra.mxu0 %v2796
  %3272 = vmatpush.bf16.msra.mxu0 %v2795
  %3273 = vmatpush.bf16.msra.mxu0 %v2794
  %3274 = vmatmul.bf16.gmra.mxu0 %v2306
  %v3275 = vpop.f32.mrf.mxu0
  %v3276 = vadd.f32 %v3227, %v3275
  %v3277 = vpop.f32.mrf.mxu0
  %v3278 = vadd.f32 %v3229, %v3277
  %3279 = vmatmul.bf16.gmra.mxu0 %v2315
  %v3280 = vpop.f32.mrf.mxu0
  %v3281 = vadd.f32 %v3232, %v3280
  %v3282 = vpop.f32.mrf.mxu0
  %v3283 = vadd.f32 %v3234, %v3282
  %3284 = vmatmul.bf16.gmra.mxu0 %v2324
  %v3285 = vpop.f32.mrf.mxu0
  %v3286 = vadd.f32 %v3237, %v3285
  %v3287 = vpop.f32.mrf.mxu0
  %v3288 = vadd.f32 %v3239, %v3287
  %3289 = vmatmul.bf16.gmra.mxu0 %v2333
  %v3290 = vpop.f32.mrf.mxu0
  %v3291 = vadd.f32 %v3242, %v3290
  %v3292 = vpop.f32.mrf.mxu0
  %v3293 = vadd.f32 %v3244, %v3292
  %3294 = vmatmul.bf16.gmra.mxu0 %v2342
  %v3295 = vpop.f32.mrf.mxu0
  %v3296 = vadd.f32 %v3247, %v3295
  %v3297 = vpop.f32.mrf.mxu0
  %v3298 = vadd.f32 %v3249, %v3297
  %3299 = vmatmul.bf16.gmra.mxu0 %v2351
  %v3300 = vpop.f32.mrf.mxu0
  %v3301 = vadd.f32 %v3252, %v3300
  %v3302 = vpop.f32.mrf.mxu0
  %v3303 = vadd.f32 %v3254, %v3302
  %3304 = vmatmul.bf16.gmra.mxu0 %v2360
  %v3305 = vpop.f32.mrf.mxu0
  %v3306 = vadd.f32 %v3257, %v3305
  %v3307 = vpop.f32.mrf.mxu0
  %v3308 = vadd.f32 %v3259, %v3307
  %3309 = vmatmul.bf16.gmra.mxu0 %v2369
  %v3310 = vpop.f32.mrf.mxu0
  %v3311 = vadd.f32 %v3262, %v3310
  %v3312 = vpop.f32.mrf.mxu0
  %v3313 = vadd.f32 %v3264, %v3312
  %3314 = vdwg.mxu0
  %v3315 = vadd.f32 %v3276, %v3278
  %v3316 = vadd.f32 %v3315, %v3281
  %v3317 = vadd.f32 %v3316, %v3283
  %v3318 = vadd.f32 %v3317, %v3286
  %v3319 = vadd.f32 %v3318, %v3288
  %v3320 = vadd.f32 %v3319, %v3291
  %v3321 = vadd.f32 %v3320, %v3293
  %v3322 = vadd.f32 %v3321, %v3296
  %v3323 = vadd.f32 %v3322, %v3298
  %v3324 = vadd.f32 %v3323, %v3301
  %v3325 = vadd.f32 %v3324, %v3303
  %v3326 = vadd.f32 %v3325, %v3306
  %v3327 = vadd.f32 %v3326, %v3308
  %v3328 = vadd.f32 %v3327, %v3311
  %v3329 = vadd.f32 %v3328, %v3313
  %v3330 = vrot.slane %v3329, 4
  %v3331 = vadd.f32 %v3329, %v3330
  %v3332 = vrot.slane %v3331, 2
  %v3333 = vadd.f32 %v3331, %v3332
  %v3334 = vrot.slane %v3333, 1
  %v3335 = vadd.f32 %v3333, %v3334
  %v3336 = vmul.f32 %v3276, %v3276
  %v3337 = vmul.f32 %v3278, %v3278
  %v3338 = vmul.f32 %v3281, %v3281
  %v3339 = vmul.f32 %v3283, %v3283
  %v3340 = vmul.f32 %v3286, %v3286
  %v3341 = vmul.f32 %v3288, %v3288
  %v3342 = vmul.f32 %v3291, %v3291
  %v3343 = vmul.f32 %v3293, %v3293
  %v3344 = vmul.f32 %v3296, %v3296
  %v3345 = vmul.f32 %v3298, %v3298
  %v3346 = vmul.f32 %v3301, %v3301
  %v3347 = vmul.f32 %v3303, %v3303
  %v3348 = vmul.f32 %v3306, %v3306
  %v3349 = vmul.f32 %v3308, %v3308
  %v3350 = vmul.f32 %v3311, %v3311
  %v3351 = vmul.f32 %v3313, %v3313
  %v3352 = vadd.f32 %v3336, %v3337
  %v3353 = vadd.f32 %v3352, %v3338
  %v3354 = vadd.f32 %v3353, %v3339
  %v3355 = vadd.f32 %v3354, %v3340
  %v3356 = vadd.f32 %v3355, %v3341
  %v3357 = vadd.f32 %v3356, %v3342
  %v3358 = vadd.f32 %v3357, %v3343
  %v3359 = vadd.f32 %v3358, %v3344
  %v3360 = vadd.f32 %v3359, %v3345
  %v3361 = vadd.f32 %v3360, %v3346
  %v3362 = vadd.f32 %v3361, %v3347
  %v3363 = vadd.f32 %v3362, %v3348
  %v3364 = vadd.f32 %v3363, %v3349
  %v3365 = vadd.f32 %v3364, %v3350
  %v3366 = vadd.f32 %v3365, %v3351
  %v3367 = vrot.slane %v3366, 4
  %v3368 = vadd.f32 %v3366, %v3367
  %v3369 = vrot.slane %v3368, 2
  %v3370 = vadd.f32 %v3368, %v3369
  %v3371 = vrot.slane %v3370, 1
  %v3372 = vadd.f32 %v3370, %v3371
  %v3373 = vmul.f32 %v3335, 0.0078125
  %v3374 = vmul.f32 %v3372, 0.0078125
  %v3375 = vmul.f32 %v3373, %v3373
  %v3376 = vsub.f32 %v3374, %v3375
  %v3377 = vmax.f32 %v3376, 0.0
  %v3378 = vld [vmem:[%s2] sm:$0x1]
  %v3379 = vadd.f32 %v3377, 1e-05
  %v3380 = vrsqrt.pop %v3379
  %v3381 = vmul.f32 %v3380, %v3379
  %v3382 = vmul.f32 %v3381, %v3380
  %v3383 = vmul.f32 0.5, %v3382
  %v3384 = vsub.f32 1.5, %v3383
  %v3385 = vmul.f32 %v3380, %v3384
  %vm3386 = vweird.f32 %v3379
  %vm3387 = vweird.f32 %v3380
  %vm3388 = vmor %vm3386, %vm3387
  %v3389 = vsel %vm3388, %v3380, %v3385
  %v3390 = vmul.f32 %v3378, %v3389
  %v3391 = vsub.f32 %v3276, %v3373
  %v3392 = vsub.f32 %v3278, %v3373
  %v3393 = vsub.f32 %v3281, %v3373
  %v3394 = vsub.f32 %v3283, %v3373
  %v3395 = vsub.f32 %v3286, %v3373
  %v3396 = vsub.f32 %v3288, %v3373
  %v3397 = vsub.f32 %v3291, %v3373
  %v3398 = vsub.f32 %v3293, %v3373
  %v3399 = vsub.f32 %v3296, %v3373
  %v3400 = vsub.f32 %v3298, %v3373
  %v3401 = vsub.f32 %v3301, %v3373
  %v3402 = vsub.f32 %v3303, %v3373
  %v3403 = vsub.f32 %v3306, %v3373
  %v3404 = vsub.f32 %v3308, %v3373
  %v3405 = vsub.f32 %v3311, %v3373
  %v3406 = vsub.f32 %v3313, %v3373
  %v3408 = vperm.slane %v3390, 0
  %v3410 = vmul.f32 %v3391, %v3408
  %v3411 = vmul.f32 %v3392, %v3408
  %v3412 = vmul.f32 %v3393, %v3408
  %v3413 = vmul.f32 %v3394, %v3408
  %v3414 = vmul.f32 %v3395, %v3408
  %v3415 = vmul.f32 %v3396, %v3408
  %v3416 = vmul.f32 %v3397, %v3408
  %v3417 = vmul.f32 %v3398, %v3408
  %v3418 = vmul.f32 %v3399, %v3408
  %v3419 = vmul.f32 %v3400, %v3408
  %v3420 = vmul.f32 %v3401, %v3408
  %v3421 = vmul.f32 %v3402, %v3408
  %v3422 = vmul.f32 %v3403, %v3408
  %v3423 = vmul.f32 %v3404, %v3408
  %v3424 = vmul.f32 %v3405, %v3408
  %v3425 = vmul.f32 %v3406, %v3408
  %v3426 = vld [vmem:[%s3] sm:$0x1]
  %v3428 = vperm.slane %v3426, 0
  %v3430 = vadd.f32 %v3410, %v3428
  %v3431 = vadd.f32 %v3411, %v3428
  %v3432 = vadd.f32 %v3412, %v3428
  %v3433 = vadd.f32 %v3413, %v3428
  %v3434 = vadd.f32 %v3414, %v3428
  %v3435 = vadd.f32 %v3415, %v3428
  %v3436 = vadd.f32 %v3416, %v3428
  %v3437 = vadd.f32 %v3417, %v3428
  %v3438 = vadd.f32 %v3418, %v3428
  %v3439 = vadd.f32 %v3419, %v3428
  %v3440 = vadd.f32 %v3420, %v3428
  %v3441 = vadd.f32 %v3421, %v3428
  %v3442 = vadd.f32 %v3422, %v3428
  %v3443 = vadd.f32 %v3423, %v3428
  %v3444 = vadd.f32 %v3424, %v3428
  %v3445 = vadd.f32 %v3425, %v3428
  %v3446 = vmul.f32 %v3430, 0.01
  %v3447 = vmul.f32 %v3431, 0.01
  %v3448 = vmul.f32 %v3432, 0.01
  %v3449 = vmul.f32 %v3433, 0.01
  %v3450 = vmul.f32 %v3434, 0.01
  %v3451 = vmul.f32 %v3435, 0.01
  %v3452 = vmul.f32 %v3436, 0.01
  %v3453 = vmul.f32 %v3437, 0.01
  %v3454 = vmul.f32 %v3438, 0.01
  %v3455 = vmul.f32 %v3439, 0.01
  %v3456 = vmul.f32 %v3440, 0.01
  %v3457 = vmul.f32 %v3441, 0.01
  %v3458 = vmul.f32 %v3442, 0.01
  %v3459 = vmul.f32 %v3443, 0.01
  %v3460 = vmul.f32 %v3444, 0.01
  %v3461 = vmul.f32 %v3445, 0.01
  %v3462 = vmax.f32 %v3430, %v3446
  %v3463 = vmax.f32 %v3431, %v3447
  %v3464 = vmax.f32 %v3432, %v3448
  %v3465 = vmax.f32 %v3433, %v3449
  %v3466 = vmax.f32 %v3434, %v3450
  %v3467 = vmax.f32 %v3435, %v3451
  %v3468 = vmax.f32 %v3436, %v3452
  %v3469 = vmax.f32 %v3437, %v3453
  %v3470 = vmax.f32 %v3438, %v3454
  %v3471 = vmax.f32 %v3439, %v3455
  %v3472 = vmax.f32 %v3440, %v3456
  %v3473 = vmax.f32 %v3441, %v3457
  %v3474 = vmax.f32 %v3442, %v3458
  %v3475 = vmax.f32 %v3443, %v3459
  %v3476 = vmax.f32 %v3444, %v3460
  %v3477 = vmax.f32 %v3445, %v3461
  %3478 = vst [vmem:[%s4] sm:$0xff] %v3462
  %3479 = vst [vmem:[%s4 + $0x8] sm:$0xff] %v3463
  %3480 = vst [vmem:[%s4 + $0x10] sm:$0xff] %v3464
  %3481 = vst [vmem:[%s4 + $0x18] sm:$0xff] %v3465
  %3482 = vst [vmem:[%s4 + $0x20] sm:$0xff] %v3466
  %3483 = vst [vmem:[%s4 + $0x28] sm:$0xff] %v3467
  %3484 = vst [vmem:[%s4 + $0x30] sm:$0xff] %v3468
  %3485 = vst [vmem:[%s4 + $0x38] sm:$0xff] %v3469
  %3486 = vst [vmem:[%s4 + $0x40] sm:$0xff] %v3470
  %3487 = vst [vmem:[%s4 + $0x48] sm:$0xff] %v3471
  %3488 = vst [vmem:[%s4 + $0x50] sm:$0xff] %v3472
  %3489 = vst [vmem:[%s4 + $0x58] sm:$0xff] %v3473
  %3490 = vst [vmem:[%s4 + $0x60] sm:$0xff] %v3474
  %3491 = vst [vmem:[%s4 + $0x68] sm:$0xff] %v3475
  %3492 = vst [vmem:[%s4 + $0x70] sm:$0xff] %v3476
  %3493 = vst [vmem:[%s4 + $0x78] sm:$0xff] %v3477
  // Predicated region
  $region18: #{down_forward.3} parent=0 // pred_check
    _
  $region19: #{down_forward.3} parent=0 // pred_check_branch
    %3495 = sbr.rel (0) target = $region21
  $region20: #{down_forward.3} parent=0 // pred_region
    _
  $region21: #{down_forward.3} parent=0 // pred_fallthru
    _
  // Predicated region
  $region22: #{down_forward.3} parent=0 // pred_check
    _
  $region23: #{down_forward.3} parent=0 // pred_check_branch
    %3497 = sbr.rel (0) target = $region25
  $region24: #{down_forward.3} parent=0 // pred_region
    _
  $region25: #{down_forward.3} parent=0 // pred_fallthru
    _

// kernel: down_forward.2
$region0: #{down_forward.2}
  #allocation0 [shape = 'u32[]', space=smem, size = 0x4, offset = 0x4, fixed_abs, tag = 'smem constant byte address 0x4 - core index']
  #allocation1 [shape = 'u32[72,128]{1,0:T(1,128)}', space=vmem, size = 0x9000, scoped, tag = 'internal scratch']
  #allocation2 [shape = 'bf16[2,10,10,128]{3,2,1,0:T(8,128)(2,1)}', space=vmem, size = 0x14000, scoped, tag = 'scratch operand']
  #allocation3 [shape = 'bf16[128,1152]{1,0:T(8,128)(2,1)}', space=vmem, size = 0x48000, scoped, tag = 'scratch operand']
  %s0 = inlined_call_operand.vmem [shape: f32[4,128,128], index: 0, kind: input, shape index: {}]
  %s1 = inlined_call_operand.vmem [shape: bf16[1152,128], index: 1, kind: input, shape index: {}]
  %s2 = inlined_call_operand.vmem [shape: f32[1,128], index: 2, kind: input, shape index: {}]
  %s3 = inlined_call_operand.vmem [shape: f32[1,128], index: 3, kind: input, shape index: {}]
  %s4 = inlined_call_operand.vmem [shape: bf16[128,128], index: 4, kind: output, shape index: {}]
  %s5 = sld [smem:[#allocation0]]
  $region26: #{down_forward.2} parent=0
    _
  %s7 = ssub.s32 1, %s5
  %s8 = scalar_select 0, %s7, %s5
  // Predicated region
  $region2: #{down_forward.2} parent=0 // pred_check
    _
  $region3: #{down_forward.2} parent=0 // pred_check_branch
    %10 = sbr.rel (0) target = $region5
  $region4: #{down_forward.2} parent=0 // pred_region
    _
  $region5: #{down_forward.2} parent=0 // pred_fallthru
    _
  // Predicated region
  $region6: #{down_forward.2} parent=0 // pred_check
    _
  $region7: #{down_forward.2} parent=0 // pred_check_branch
    %12 = sbr.rel (0) target = $region9
  $region8: #{down_forward.2} parent=0 // pred_region
    _
  $region9: #{down_forward.2} parent=0 // pred_fallthru
    _
  // Predicated region
  $region10: #{down_forward.2} parent=0 // pred_check
    _
  $region11: #{down_forward.2} parent=0 // pred_check_branch
    %14 = sbr.rel (0) target = $region13
  $region12: #{down_forward.2} parent=0 // pred_region
    _
  $region13: #{down_forward.2} parent=0 // pred_fallthru
    _
  // Predicated region
  $region14: #{down_forward.2} parent=0 // pred_check
    _
  $region15: #{down_forward.2} parent=0 // pred_check_branch
    %16 = sbr.rel (0) target = $region17
  $region16: #{down_forward.2} parent=0 // pred_region
    _
  $region17: #{down_forward.2} parent=0 // pred_fallthru
    _
  %v18 = vld [vmem:[%s0] sm:$0xff]
  %v19 = vld [vmem:[%s0 + $0x8] sm:$0xff]
  %v20 = vld [vmem:[%s0 + $0x10] sm:$0xff]
  %v21 = vld [vmem:[%s0 + $0x18] sm:$0xff]
  %v22 = vld [vmem:[%s0 + $0x20] sm:$0xff]
  %v23 = vld [vmem:[%s0 + $0x28] sm:$0xff]
  %v24 = vld [vmem:[%s0 + $0x30] sm:$0xff]
  %v25 = vld [vmem:[%s0 + $0x38] sm:$0xff]
  %v26 = vld [vmem:[%s0 + $0x40] sm:$0xff]
  %v27 = vld [vmem:[%s0 + $0x48] sm:$0xff]
  %v28 = vld [vmem:[%s0 + $0x50] sm:$0xff]
  %v29 = vld [vmem:[%s0 + $0x58] sm:$0xff]
  %v30 = vld [vmem:[%s0 + $0x60] sm:$0xff]
  %v31 = vld [vmem:[%s0 + $0x68] sm:$0xff]
  %v32 = vld [vmem:[%s0 + $0x70] sm:$0xff]
  %v33 = vld [vmem:[%s0 + $0x78] sm:$0xff]
  %s34 = scalar_lea.vmem %s0, 128
  %v35 = vld [vmem:[%s34] sm:$0xff]
  %v36 = vld [vmem:[%s34 + $0x8] sm:$0xff]
  %v37 = vld [vmem:[%s34 + $0x10] sm:$0xff]
  %v38 = vld [vmem:[%s34 + $0x18] sm:$0xff]
  %v39 = vld [vmem:[%s34 + $0x20] sm:$0xff]
  %v40 = vld [vmem:[%s34 + $0x28] sm:$0xff]
  %v41 = vld [vmem:[%s34 + $0x30] sm:$0xff]
  %v42 = vld [vmem:[%s34 + $0x38] sm:$0xff]
  %v43 = vld [vmem:[%s34 + $0x40] sm:$0xff]
  %v44 = vld [vmem:[%s34 + $0x48] sm:$0xff]
  %v45 = vld [vmem:[%s34 + $0x50] sm:$0xff]
  %v46 = vld [vmem:[%s34 + $0x58] sm:$0xff]
  %v47 = vld [vmem:[%s34 + $0x60] sm:$0xff]
  %v48 = vld [vmem:[%s34 + $0x68] sm:$0xff]
  %v49 = vld [vmem:[%s34 + $0x70] sm:$0xff]
  %v50 = vld [vmem:[%s34 + $0x78] sm:$0xff]
  %v51 = vmax.f32 %v18, %v35
  %v52 = vmax.f32 %v19, %v36
  %v53 = vmax.f32 %v20, %v37
  %v54 = vmax.f32 %v21, %v38
  %v55 = vmax.f32 %v22, %v39
  %v56 = vmax.f32 %v23, %v40
  %v57 = vmax.f32 %v24, %v41
  %v58 = vmax.f32 %v25, %v42
  %v59 = vmax.f32 %v26, %v43
  %v60 = vmax.f32 %v27, %v44
  %v61 = vmax.f32 %v28, %v45
  %v62 = vmax.f32 %v29, %v46
  %v63 = vmax.f32 %v30, %v47
  %v64 = vmax.f32 %v31, %v48
  %v65 = vmax.f32 %v32, %v49
  %v66 = vmax.f32 %v33, %v50
  %s67 = scalar_lea.vmem %s0, 256
  %v68 = vld [vmem:[%s67] sm:$0xff]
  %v69 = vld [vmem:[%s67 + $0x8] sm:$0xff]
  %v70 = vld [vmem:[%s67 + $0x10] sm:$0xff]
  %v71 = vld [vmem:[%s67 + $0x18] sm:$0xff]
  %v72 = vld [vmem:[%s67 + $0x20] sm:$0xff]
  %v73 = vld [vmem:[%s67 + $0x28] sm:$0xff]
  %v74 = vld [vmem:[%s67 + $0x30] sm:$0xff]
  %v75 = vld [vmem:[%s67 + $0x38] sm:$0xff]
  %v76 = vld [vmem:[%s67 + $0x40] sm:$0xff]
  %v77 = vld [vmem:[%s67 + $0x48] sm:$0xff]
  %v78 = vld [vmem:[%s67 + $0x50] sm:$0xff]
  %v79 = vld [vmem:[%s67 + $0x58] sm:$0xff]
  %v80 = vld [vmem:[%s67 + $0x60] sm:$0xff]
  %v81 = vld [vmem:[%s67 + $0x68] sm:$0xff]
  %v82 = vld [vmem:[%s67 + $0x70] sm:$0xff]
  %v83 = vld [vmem:[%s67 + $0x78] sm:$0xff]
  %s84 = scalar_lea.vmem %s0, 384
  %v85 = vld [vmem:[%s84] sm:$0xff]
  %v86 = vld [vmem:[%s84 + $0x8] sm:$0xff]
  %v87 = vld [vmem:[%s84 + $0x10] sm:$0xff]
  %v88 = vld [vmem:[%s84 + $0x18] sm:$0xff]
  %v89 = vld [vmem:[%s84 + $0x20] sm:$0xff]
  %v90 = vld [vmem:[%s84 + $0x28] sm:$0xff]
  %v91 = vld [vmem:[%s84 + $0x30] sm:$0xff]
  %v92 = vld [vmem:[%s84 + $0x38] sm:$0xff]
  %v93 = vld [vmem:[%s84 + $0x40] sm:$0xff]
  %v94 = vld [vmem:[%s84 + $0x48] sm:$0xff]
  %v95 = vld [vmem:[%s84 + $0x50] sm:$0xff]
  %v96 = vld [vmem:[%s84 + $0x58] sm:$0xff]
  %v97 = vld [vmem:[%s84 + $0x60] sm:$0xff]
  %v98 = vld [vmem:[%s84 + $0x68] sm:$0xff]
  %v99 = vld [vmem:[%s84 + $0x70] sm:$0xff]
  %v100 = vld [vmem:[%s84 + $0x78] sm:$0xff]
  %v101 = vmax.f32 %v68, %v85
  %v102 = vmax.f32 %v69, %v86
  %v103 = vmax.f32 %v70, %v87
  %v104 = vmax.f32 %v71, %v88
  %v105 = vmax.f32 %v72, %v89
  %v106 = vmax.f32 %v73, %v90
  %v107 = vmax.f32 %v74, %v91
  %v108 = vmax.f32 %v75, %v92
  %v109 = vmax.f32 %v76, %v93
  %v110 = vmax.f32 %v77, %v94
  %v111 = vmax.f32 %v78, %v95
  %v112 = vmax.f32 %v79, %v96
  %v113 = vmax.f32 %v80, %v97
  %v114 = vmax.f32 %v81, %v98
  %v115 = vmax.f32 %v82, %v99
  %v116 = vmax.f32 %v83, %v100
  %v117 = vmax.f32 %v51, %v101
  %v118 = vmax.f32 %v52, %v102
  %v119 = vmax.f32 %v53, %v103
  %v120 = vmax.f32 %v54, %v104
  %v121 = vmax.f32 %v55, %v105
  %v122 = vmax.f32 %v56, %v106
  %v123 = vmax.f32 %v57, %v107
  %v124 = vmax.f32 %v58, %v108
  %v125 = vmax.f32 %v59, %v109
  %v126 = vmax.f32 %v60, %v110
  %v127 = vmax.f32 %v61, %v111
  %v128 = vmax.f32 %v62, %v112
  %v129 = vmax.f32 %v63, %v113
  %v130 = vmax.f32 %v64, %v114
  %v131 = vmax.f32 %v65, %v115
  %v132 = vmax.f32 %v66, %v116
  %v133 = vpack.c.bf16 %v117, %v117
  %v134 = vpack.c.bf16 %v118, %v118
  %v135 = vpack.c.bf16 %v119, %v119
  %v136 = vpack.c.bf16 %v120, %v120
  %v137 = vpack.c.bf16 %v121, %v121
  %v138 = vpack.c.bf16 %v122, %v122
  %v139 = vpack.c.bf16 %v123, %v123
  %v140 = vpack.c.bf16 %v124, %v124
  %v141 = vpack.c.bf16 %v125, %v125
  %v142 = vpack.c.bf16 %v126, %v126
  %v143 = vpack.c.bf16 %v127, %v127
  %v144 = vpack.c.bf16 %v128, %v128
  %v145 = vpack.c.bf16 %v129, %v129
  %v146 = vpack.c.bf16 %v130, %v130
  %v147 = vpack.c.bf16 %v131, %v131
  %v148 = vpack.c.bf16 %v132, %v132
  %149 = vst [vmem:[#allocation2] sm:$0xf] 0
  %150 = vst [vmem:[#allocation2 + $0x4] sm:$0x1] 0
  %151 = vst [vmem:[#allocation2 + $0x50] sm:$0xf] 0
  %152 = vst [vmem:[#allocation2 + $0x54] sm:$0x1] 0
  %s153 = scalar_lea.vmem [#allocation2], 72
  %154 = vst [vmem:[%s153] sm:$0xf] 0
  %155 = vst [vmem:[%s153 + $0x4] sm:$0x1] 0
  %156 = vst [vmem:[%s153 + $0x50] sm:$0xf] 0
  %157 = vst [vmem:[%s153 + $0x54] sm:$0x1] 0
  %s158 = scalar_lea.vmem [#allocation2], 8
  %vm159 = vcmask 1040384
  %vm160 = vsmask.f32 256
  %vm161 = vmand %vm159, %vm160
  %v162 = vld [vmem:[%s158] sm:$0x1]
  %v163 = vsel %vm161, 0, %v162
  %164 = vst [vmem:[%s158] sm:$0x1] %v163
  %v165 = vld [vmem:[%s158 + $0x8] sm:$0x1]
  %v166 = vsel %vm161, 0, %v165
  %167 = vst [vmem:[%s158 + $0x8] sm:$0x1] %v166
  %v168 = vld [vmem:[%s158 + $0x10] sm:$0x1]
  %v169 = vsel %vm161, 0, %v168
  %170 = vst [vmem:[%s158 + $0x10] sm:$0x1] %v169
  %v171 = vld [vmem:[%s158 + $0x18] sm:$0x1]
  %v172 = vsel %vm161, 0, %v171
  %173 = vst [vmem:[%s158 + $0x18] sm:$0x1] %v172
  %v174 = vld [vmem:[%s158 + $0x20] sm:$0x1]
  %v175 = vsel %vm161, 0, %v174
  %176 = vst [vmem:[%s158 + $0x20] sm:$0x1] %v175
  %v177 = vld [vmem:[%s158 + $0x28] sm:$0x1]
  %v178 = vsel %vm161, 0, %v177
  %179 = vst [vmem:[%s158 + $0x28] sm:$0x1] %v178
  %v180 = vld [vmem:[%s158 + $0x30] sm:$0x1]
  %v181 = vsel %vm161, 0, %v180
  %182 = vst [vmem:[%s158 + $0x30] sm:$0x1] %v181
  %v183 = vld [vmem:[%s158 + $0x38] sm:$0x1]
  %v184 = vsel %vm161, 0, %v183
  %185 = vst [vmem:[%s158 + $0x38] sm:$0x1] %v184
  %v186 = vld [vmem:[%s158 + $0x50] sm:$0x1]
  %v187 = vsel %vm161, 0, %v186
  %188 = vst [vmem:[%s158 + $0x50] sm:$0x1] %v187
  %v189 = vld [vmem:[%s158 + $0x58] sm:$0x1]
  %v190 = vsel %vm161, 0, %v189
  %191 = vst [vmem:[%s158 + $0x58] sm:$0x1] %v190
  %v192 = vld [vmem:[%s158 + $0x60] sm:$0x1]
  %v193 = vsel %vm161, 0, %v192
  %194 = vst [vmem:[%s158 + $0x60] sm:$0x1] %v193
  %v195 = vld [vmem:[%s158 + $0x68] sm:$0x1]
  %v196 = vsel %vm161, 0, %v195
  %197 = vst [vmem:[%s158 + $0x68] sm:$0x1] %v196
  %v198 = vld [vmem:[%s158 + $0x70] sm:$0x1]
  %v199 = vsel %vm161, 0, %v198
  %200 = vst [vmem:[%s158 + $0x70] sm:$0x1] %v199
  %v201 = vld [vmem:[%s158 + $0x78] sm:$0x1]
  %v202 = vsel %vm161, 0, %v201
  %203 = vst [vmem:[%s158 + $0x78] sm:$0x1] %v202
  %v204 = vld [vmem:[%s158 + $0x80] sm:$0x1]
  %v205 = vsel %vm161, 0, %v204
  %206 = vst [vmem:[%s158 + $0x80] sm:$0x1] %v205
  %v207 = vld [vmem:[%s158 + $0x88] sm:$0x1]
  %v208 = vsel %vm161, 0, %v207
  %209 = vst [vmem:[%s158 + $0x88] sm:$0x1] %v208
  %vm210 = vsmask.f32 7938
  %vm211 = vmand %vm159, %vm210
  %v212 = vld [vmem:[%s158 + $0x4] sm:$0x1]
  %v213 = vsel %vm211, 0, %v212
  %214 = vst [vmem:[%s158 + $0x4] sm:$0x1] %v213
  %v215 = vld [vmem:[%s158 + $0xc] sm:$0x1]
  %v216 = vsel %vm211, 0, %v215
  %217 = vst [vmem:[%s158 + $0xc] sm:$0x1] %v216
  %v218 = vld [vmem:[%s158 + $0x14] sm:$0x1]
  %v219 = vsel %vm211, 0, %v218
  %220 = vst [vmem:[%s158 + $0x14] sm:$0x1] %v219
  %v221 = vld [vmem:[%s158 + $0x1c] sm:$0x1]
  %v222 = vsel %vm211, 0, %v221
  %223 = vst [vmem:[%s158 + $0x1c] sm:$0x1] %v222
  %v224 = vld [vmem:[%s158 + $0x24] sm:$0x1]
  %v225 = vsel %vm211, 0, %v224
  %226 = vst [vmem:[%s158 + $0x24] sm:$0x1] %v225
  %v227 = vld [vmem:[%s158 + $0x2c] sm:$0x1]
  %v228 = vsel %vm211, 0, %v227
  %229 = vst [vmem:[%s158 + $0x2c] sm:$0x1] %v228
  %v230 = vld [vmem:[%s158 + $0x34] sm:$0x1]
  %v231 = vsel %vm211, 0, %v230
  %232 = vst [vmem:[%s158 + $0x34] sm:$0x1] %v231
  %v233 = vld [vmem:[%s158 + $0x3c] sm:$0x1]
  %v234 = vsel %vm211, 0, %v233
  %235 = vst [vmem:[%s158 + $0x3c] sm:$0x1] %v234
  %v236 = vld [vmem:[%s158 + $0x54] sm:$0x1]
  %v237 = vsel %vm211, 0, %v236
  %238 = vst [vmem:[%s158 + $0x54] sm:$0x1] %v237
  %v239 = vld [vmem:[%s158 + $0x5c] sm:$0x1]
  %v240 = vsel %vm211, 0, %v239
  %241 = vst [vmem:[%s158 + $0x5c] sm:$0x1] %v240
  %v242 = vld [vmem:[%s158 + $0x64] sm:$0x1]
  %v243 = vsel %vm211, 0, %v242
  %244 = vst [vmem:[%s158 + $0x64] sm:$0x1] %v243
  %v245 = vld [vmem:[%s158 + $0x6c] sm:$0x1]
  %v246 = vsel %vm211, 0, %v245
  %247 = vst [vmem:[%s158 + $0x6c] sm:$0x1] %v246
  %v248 = vld [vmem:[%s158 + $0x74] sm:$0x1]
  %v249 = vsel %vm211, 0, %v248
  %250 = vst [vmem:[%s158 + $0x74] sm:$0x1] %v249
  %v251 = vld [vmem:[%s158 + $0x7c] sm:$0x1]
  %v252 = vsel %vm211, 0, %v251
  %253 = vst [vmem:[%s158 + $0x7c] sm:$0x1] %v252
  %v254 = vld [vmem:[%s158 + $0x84] sm:$0x1]
  %v255 = vsel %vm211, 0, %v254
  %256 = vst [vmem:[%s158 + $0x84] sm:$0x1] %v255
  %v257 = vld [vmem:[%s158 + $0x8c] sm:$0x1]
  %v258 = vsel %vm211, 0, %v257
  %259 = vst [vmem:[%s158 + $0x8c] sm:$0x1] %v258
  %v261 = vshrl.u32 %v133, 16
  %v263 = vrot.slane %v261, 7
  %v264 = vshll.u32 %v133, 16
  %v266 = vor.u32 %v263, %v264
  %v267 = vrot.slane %v263, 4
  %v269 = vshrl.u32 %v134, 16
  %v271 = vrot.slane %v269, 7
  %v272 = vshll.u32 %v134, 16
  %v274 = vor.u32 %v271, %v272
  %v275 = vrot.slane %v271, 4
  %v277 = vshrl.u32 %v135, 16
  %v279 = vrot.slane %v277, 7
  %v280 = vshll.u32 %v135, 16
  %v282 = vor.u32 %v279, %v280
  %v283 = vrot.slane %v279, 4
  %v285 = vshrl.u32 %v136, 16
  %v287 = vrot.slane %v285, 7
  %v288 = vshll.u32 %v136, 16
  %v290 = vor.u32 %v287, %v288
  %v291 = vrot.slane %v287, 4
  %v293 = vshrl.u32 %v137, 16
  %v295 = vrot.slane %v293, 7
  %v296 = vshll.u32 %v137, 16
  %v298 = vor.u32 %v295, %v296
  %v299 = vrot.slane %v295, 4
  %v301 = vshrl.u32 %v138, 16
  %v303 = vrot.slane %v301, 7
  %v304 = vshll.u32 %v138, 16
  %v306 = vor.u32 %v303, %v304
  %v307 = vrot.slane %v303, 4
  %v309 = vshrl.u32 %v139, 16
  %v311 = vrot.slane %v309, 7
  %v312 = vshll.u32 %v139, 16
  %v314 = vor.u32 %v311, %v312
  %v315 = vrot.slane %v311, 4
  %v317 = vshrl.u32 %v140, 16
  %v319 = vrot.slane %v317, 7
  %v320 = vshll.u32 %v140, 16
  %v322 = vor.u32 %v319, %v320
  %v323 = vrot.slane %v319, 4
  %v325 = vshrl.u32 %v141, 16
  %v327 = vrot.slane %v325, 7
  %v328 = vshll.u32 %v141, 16
  %v330 = vor.u32 %v327, %v328
  %v331 = vrot.slane %v327, 4
  %v333 = vshrl.u32 %v142, 16
  %v335 = vrot.slane %v333, 7
  %v336 = vshll.u32 %v142, 16
  %v338 = vor.u32 %v335, %v336
  %v339 = vrot.slane %v335, 4
  %v341 = vshrl.u32 %v143, 16
  %v343 = vrot.slane %v341, 7
  %v344 = vshll.u32 %v143, 16
  %v346 = vor.u32 %v343, %v344
  %v347 = vrot.slane %v343, 4
  %v349 = vshrl.u32 %v144, 16
  %v351 = vrot.slane %v349, 7
  %v352 = vshll.u32 %v144, 16
  %v354 = vor.u32 %v351, %v352
  %v355 = vrot.slane %v351, 4
  %v357 = vshrl.u32 %v145, 16
  %v359 = vrot.slane %v357, 7
  %v360 = vshll.u32 %v145, 16
  %v362 = vor.u32 %v359, %v360
  %v363 = vrot.slane %v359, 4
  %v365 = vshrl.u32 %v146, 16
  %v367 = vrot.slane %v365, 7
  %v368 = vshll.u32 %v146, 16
  %v370 = vor.u32 %v367, %v368
  %v371 = vrot.slane %v367, 4
  %v373 = vshrl.u32 %v147, 16
  %v375 = vrot.slane %v373, 7
  %v376 = vshll.u32 %v147, 16
  %v378 = vor.u32 %v375, %v376
  %v379 = vrot.slane %v375, 4
  %v381 = vshrl.u32 %v148, 16
  %v383 = vrot.slane %v381, 7
  %v384 = vshll.u32 %v148, 16
  %v386 = vor.u32 %v383, %v384
  %v387 = vrot.slane %v383, 4
  %vm420 = vcmask 1043456
  %vm421 = vmand %vm420, %vm210
  %v422 = vld [vmem:[%s158] sm:$0xf]
  %v423 = vsel %vm421, %v266, %v422
  %424 = vst [vmem:[%s158] sm:$0xf] %v423
  %v425 = vld [vmem:[%s158 + $0x4] sm:$0x1]
  %v426 = vsel %vm161, %v267, %v425
  %427 = vst [vmem:[%s158 + $0x4] sm:$0x1] %v426
  %v428 = vld [vmem:[%s158 + $0x8] sm:$0xf]
  %v429 = vsel %vm421, %v274, %v428
  %430 = vst [vmem:[%s158 + $0x8] sm:$0xf] %v429
  %v431 = vld [vmem:[%s158 + $0xc] sm:$0x1]
  %v432 = vsel %vm161, %v275, %v431
  %433 = vst [vmem:[%s158 + $0xc] sm:$0x1] %v432
  %v434 = vld [vmem:[%s158 + $0x10] sm:$0xf]
  %v435 = vsel %vm421, %v282, %v434
  %436 = vst [vmem:[%s158 + $0x10] sm:$0xf] %v435
  %v437 = vld [vmem:[%s158 + $0x14] sm:$0x1]
  %v438 = vsel %vm161, %v283, %v437
  %439 = vst [vmem:[%s158 + $0x14] sm:$0x1] %v438
  %v440 = vld [vmem:[%s158 + $0x18] sm:$0xf]
  %v441 = vsel %vm421, %v290, %v440
  %442 = vst [vmem:[%s158 + $0x18] sm:$0xf] %v441
  %v443 = vld [vmem:[%s158 + $0x1c] sm:$0x1]
  %v444 = vsel %vm161, %v291, %v443
  %445 = vst [vmem:[%s158 + $0x1c] sm:$0x1] %v444
  %v446 = vld [vmem:[%s158 + $0x20] sm:$0xf]
  %v447 = vsel %vm421, %v298, %v446
  %448 = vst [vmem:[%s158 + $0x20] sm:$0xf] %v447
  %v449 = vld [vmem:[%s158 + $0x24] sm:$0x1]
  %v450 = vsel %vm161, %v299, %v449
  %451 = vst [vmem:[%s158 + $0x24] sm:$0x1] %v450
  %v452 = vld [vmem:[%s158 + $0x28] sm:$0xf]
  %v453 = vsel %vm421, %v306, %v452
  %454 = vst [vmem:[%s158 + $0x28] sm:$0xf] %v453
  %v455 = vld [vmem:[%s158 + $0x2c] sm:$0x1]
  %v456 = vsel %vm161, %v307, %v455
  %457 = vst [vmem:[%s158 + $0x2c] sm:$0x1] %v456
  %v458 = vld [vmem:[%s158 + $0x30] sm:$0xf]
  %v459 = vsel %vm421, %v314, %v458
  %460 = vst [vmem:[%s158 + $0x30] sm:$0xf] %v459
  %v461 = vld [vmem:[%s158 + $0x34] sm:$0x1]
  %v462 = vsel %vm161, %v315, %v461
  %463 = vst [vmem:[%s158 + $0x34] sm:$0x1] %v462
  %v464 = vld [vmem:[%s158 + $0x38] sm:$0xf]
  %v465 = vsel %vm421, %v322, %v464
  %466 = vst [vmem:[%s158 + $0x38] sm:$0xf] %v465
  %v467 = vld [vmem:[%s158 + $0x3c] sm:$0x1]
  %v468 = vsel %vm161, %v323, %v467
  %469 = vst [vmem:[%s158 + $0x3c] sm:$0x1] %v468
  %v470 = vld [vmem:[%s158 + $0x50] sm:$0xf]
  %v471 = vsel %vm421, %v330, %v470
  %472 = vst [vmem:[%s158 + $0x50] sm:$0xf] %v471
  %v473 = vld [vmem:[%s158 + $0x54] sm:$0x1]
  %v474 = vsel %vm161, %v331, %v473
  %475 = vst [vmem:[%s158 + $0x54] sm:$0x1] %v474
  %v476 = vld [vmem:[%s158 + $0x58] sm:$0xf]
  %v477 = vsel %vm421, %v338, %v476
  %478 = vst [vmem:[%s158 + $0x58] sm:$0xf] %v477
  %v479 = vld [vmem:[%s158 + $0x5c] sm:$0x1]
  %v480 = vsel %vm161, %v339, %v479
  %481 = vst [vmem:[%s158 + $0x5c] sm:$0x1] %v480
  %v482 = vld [vmem:[%s158 + $0x60] sm:$0xf]
  %v483 = vsel %vm421, %v346, %v482
  %484 = vst [vmem:[%s158 + $0x60] sm:$0xf] %v483
  %v485 = vld [vmem:[%s158 + $0x64] sm:$0x1]
  %v486 = vsel %vm161, %v347, %v485
  %487 = vst [vmem:[%s158 + $0x64] sm:$0x1] %v486
  %v488 = vld [vmem:[%s158 + $0x68] sm:$0xf]
  %v489 = vsel %vm421, %v354, %v488
  %490 = vst [vmem:[%s158 + $0x68] sm:$0xf] %v489
  %v491 = vld [vmem:[%s158 + $0x6c] sm:$0x1]
  %v492 = vsel %vm161, %v355, %v491
  %493 = vst [vmem:[%s158 + $0x6c] sm:$0x1] %v492
  %v494 = vld [vmem:[%s158 + $0x70] sm:$0xf]
  %v495 = vsel %vm421, %v362, %v494
  %496 = vst [vmem:[%s158 + $0x70] sm:$0xf] %v495
  %v497 = vld [vmem:[%s158 + $0x74] sm:$0x1]
  %v498 = vsel %vm161, %v363, %v497
  %499 = vst [vmem:[%s158 + $0x74] sm:$0x1] %v498
  %v500 = vld [vmem:[%s158 + $0x78] sm:$0xf]
  %v501 = vsel %vm421, %v370, %v500
  %502 = vst [vmem:[%s158 + $0x78] sm:$0xf] %v501
  %v503 = vld [vmem:[%s158 + $0x7c] sm:$0x1]
  %v504 = vsel %vm161, %v371, %v503
  %505 = vst [vmem:[%s158 + $0x7c] sm:$0x1] %v504
  %v506 = vld [vmem:[%s158 + $0x80] sm:$0xf]
  %v507 = vsel %vm421, %v378, %v506
  %508 = vst [vmem:[%s158 + $0x80] sm:$0xf] %v507
  %v509 = vld [vmem:[%s158 + $0x84] sm:$0x1]
  %v510 = vsel %vm161, %v379, %v509
  %511 = vst [vmem:[%s158 + $0x84] sm:$0x1] %v510
  %v512 = vld [vmem:[%s158 + $0x88] sm:$0xf]
  %v513 = vsel %vm421, %v386, %v512
  %514 = vst [vmem:[%s158 + $0x88] sm:$0xf] %v513
  %v515 = vld [vmem:[%s158 + $0x8c] sm:$0x1]
  %v516 = vsel %vm161, %v387, %v515
  %517 = vst [vmem:[%s158 + $0x8c] sm:$0x1] %v516
  %v518 = vld [vmem:[#allocation2] sm:$0xf]
  %v519 = vld [vmem:[#allocation2 + $0x8] sm:$0xf]
  %v520 = vld [vmem:[#allocation2 + $0x10] sm:$0xf]
  %v521 = vld [vmem:[#allocation2 + $0x18] sm:$0xf]
  %v522 = vld [vmem:[#allocation2 + $0x20] sm:$0xf]
  %v523 = vld [vmem:[#allocation2 + $0x28] sm:$0xf]
  %v524 = vld [vmem:[#allocation2 + $0x30] sm:$0xf]
  %v525 = vld [vmem:[#allocation2 + $0x38] sm:$0xf]
  %v526 = vld [vmem:[#allocation2 + $0x50] sm:$0xf]
  %v527 = vld [vmem:[#allocation2 + $0x58] sm:$0xf]
  %v528 = vld [vmem:[#allocation2 + $0x60] sm:$0xf]
  %v529 = vld [vmem:[#allocation2 + $0x68] sm:$0xf]
  %v530 = vld [vmem:[#allocation2 + $0x70] sm:$0xf]
  %v531 = vld [vmem:[#allocation2 + $0x78] sm:$0xf]
  %v532 = vld [vmem:[#allocation2 + $0x80] sm:$0xf]
  %v533 = vld [vmem:[#allocation2 + $0x88] sm:$0xf]
  %534 = vst [vmem:[#allocation3] sm:$0xf] %v518
  %535 = vst [vmem:[#allocation3 + $0x24] sm:$0xf] %v519
  %536 = vst [vmem:[#allocation3 + $0x48] sm:$0xf] %v520
  %537 = vst [vmem:[#allocation3 + $0x6c] sm:$0xf] %v521
  %538 = vst [vmem:[#allocation3 + $0x90] sm:$0xf] %v522
  %539 = vst [vmem:[#allocation3 + $0xb4] sm:$0xf] %v523
  %540 = vst [vmem:[#allocation3 + $0xd8] sm:$0xf] %v524
  %541 = vst [vmem:[#allocation3 + $0xfc] sm:$0xf] %v525
  %542 = vst [vmem:[#allocation3 + $0x120] sm:$0xf] %v526
  %543 = vst [vmem:[#allocation3 + $0x144] sm:$0xf] %v527
  %544 = vst [vmem:[#allocation3 + $0x168] sm:$0xf] %v528
  %545 = vst [vmem:[#allocation3 + $0x18c] sm:$0xf] %v529
  %546 = vst [vmem:[#allocation3 + $0x1b0] sm:$0xf] %v530
  %547 = vst [vmem:[#allocation3 + $0x1d4] sm:$0xf] %v531
  %548 = vst [vmem:[#allocation3 + $0x1f8] sm:$0xf] %v532
  %549 = vst [vmem:[#allocation3 + $0x21c] sm:$0xf] %v533
  %v550 = vld [vmem:[#allocation2] sm:$0xf]
  %v551 = vld [vmem:[#allocation2 + $0x4] sm:$0x1]
  %v552 = vld [vmem:[#allocation2 + $0x8] sm:$0xf]
  %v553 = vld [vmem:[#allocation2 + $0xc] sm:$0x1]
  %v554 = vld [vmem:[#allocation2 + $0x10] sm:$0xf]
  %v555 = vld [vmem:[#allocation2 + $0x14] sm:$0x1]
  %v556 = vld [vmem:[#allocation2 + $0x18] sm:$0xf]
  %v557 = vld [vmem:[#allocation2 + $0x1c] sm:$0x1]
  %v558 = vld [vmem:[#allocation2 + $0x20] sm:$0xf]
  %v559 = vld [vmem:[#allocation2 + $0x24] sm:$0x1]
  %v560 = vld [vmem:[#allocation2 + $0x28] sm:$0xf]
  %v561 = vld [vmem:[#allocation2 + $0x2c] sm:$0x1]
  %v562 = vld [vmem:[#allocation2 + $0x30] sm:$0xf]
  %v563 = vld [vmem:[#allocation2 + $0x34] sm:$0x1]
  %v564 = vld [vmem:[#allocation2 + $0x38] sm:$0xf]
  %v565 = vld [vmem:[#allocation2 + $0x3c] sm:$0x1]
  %v566 = vld [vmem:[#allocation2 + $0x50] sm:$0xf]
  %v567 = vld [vmem:[#allocation2 + $0x54] sm:$0x1]
  %v568 = vld [vmem:[#allocation2 + $0x58] sm:$0xf]
  %v569 = vld [vmem:[#allocation2 + $0x5c] sm:$0x1]
  %v570 = vld [vmem:[#allocation2 + $0x60] sm:$0xf]
  %v571 = vld [vmem:[#allocation2 + $0x64] sm:$0x1]
  %v572 = vld [vmem:[#allocation2 + $0x68] sm:$0xf]
  %v573 = vld [vmem:[#allocation2 + $0x6c] sm:$0x1]
  %v574 = vld [vmem:[#allocation2 + $0x70] sm:$0xf]
  %v575 = vld [vmem:[#allocation2 + $0x74] sm:$0x1]
  %v576 = vld [vmem:[#allocation2 + $0x78] sm:$0xf]
  %v577 = vld [vmem:[#allocation2 + $0x7c] sm:$0x1]
  %v578 = vld [vmem:[#allocation2 + $0x80] sm:$0xf]
  %v579 = vld [vmem:[#allocation2 + $0x84] sm:$0x1]
  %v580 = vld [vmem:[#allocation2 + $0x88] sm:$0xf]
  %v581 = vld [vmem:[#allocation2 + $0x8c] sm:$0x1]
  %vm582 = vsmask.f32 3328
  %vm583 = vsmask.f32 7440
  %vm584 = vmor %vm582, %vm583
  %v586 = vshrl.u32 %v550, 16
  %v588 = vrot.slane %v586, 4
  %v589 = vshll.u32 %v550, 16
  %v591 = vrot.slane %v589, 5
  %v592 = vor.u32 %v588, %v591
  %v593 = vrot.slane %v592, 4
  %v595 = vshll.u32 %v551, 16
  %v597 = vrot.slane %v595, 5
  %v598 = vsel %vm584, %v593, %v597
  %v600 = vshrl.u32 %v552, 16
  %v602 = vrot.slane %v600, 4
  %v603 = vshll.u32 %v552, 16
  %v605 = vrot.slane %v603, 5
  %v606 = vor.u32 %v602, %v605
  %v607 = vrot.slane %v606, 4
  %v609 = vshll.u32 %v553, 16
  %v611 = vrot.slane %v609, 5
  %v612 = vsel %vm584, %v607, %v611
  %v614 = vshrl.u32 %v554, 16
  %v616 = vrot.slane %v614, 4
  %v617 = vshll.u32 %v554, 16
  %v619 = vrot.slane %v617, 5
  %v620 = vor.u32 %v616, %v619
  %v621 = vrot.slane %v620, 4
  %v623 = vshll.u32 %v555, 16
  %v625 = vrot.slane %v623, 5
  %v626 = vsel %vm584, %v621, %v625
  %v628 = vshrl.u32 %v556, 16
  %v630 = vrot.slane %v628, 4
  %v631 = vshll.u32 %v556, 16
  %v633 = vrot.slane %v631, 5
  %v634 = vor.u32 %v630, %v633
  %v635 = vrot.slane %v634, 4
  %v637 = vshll.u32 %v557, 16
  %v639 = vrot.slane %v637, 5
  %v640 = vsel %vm584, %v635, %v639
  %v642 = vshrl.u32 %v558, 16
  %v644 = vrot.slane %v642, 4
  %v645 = vshll.u32 %v558, 16
  %v647 = vrot.slane %v645, 5
  %v648 = vor.u32 %v644, %v647
  %v649 = vrot.slane %v648, 4
  %v651 = vshll.u32 %v559, 16
  %v653 = vrot.slane %v651, 5
  %v654 = vsel %vm584, %v649, %v653
  %v656 = vshrl.u32 %v560, 16
  %v658 = vrot.slane %v656, 4
  %v659 = vshll.u32 %v560, 16
  %v661 = vrot.slane %v659, 5
  %v662 = vor.u32 %v658, %v661
  %v663 = vrot.slane %v662, 4
  %v665 = vshll.u32 %v561, 16
  %v667 = vrot.slane %v665, 5
  %v668 = vsel %vm584, %v663, %v667
  %v670 = vshrl.u32 %v562, 16
  %v672 = vrot.slane %v670, 4
  %v673 = vshll.u32 %v562, 16
  %v675 = vrot.slane %v673, 5
  %v676 = vor.u32 %v672, %v675
  %v677 = vrot.slane %v676, 4
  %v679 = vshll.u32 %v563, 16
  %v681 = vrot.slane %v679, 5
  %v682 = vsel %vm584, %v677, %v681
  %v684 = vshrl.u32 %v564, 16
  %v686 = vrot.slane %v684, 4
  %v687 = vshll.u32 %v564, 16
  %v689 = vrot.slane %v687, 5
  %v690 = vor.u32 %v686, %v689
  %v691 = vrot.slane %v690, 4
  %v693 = vshll.u32 %v565, 16
  %v695 = vrot.slane %v693, 5
  %v696 = vsel %vm584, %v691, %v695
  %v698 = vshrl.u32 %v566, 16
  %v700 = vrot.slane %v698, 4
  %v701 = vshll.u32 %v566, 16
  %v703 = vrot.slane %v701, 5
  %v704 = vor.u32 %v700, %v703
  %v705 = vrot.slane %v704, 4
  %v707 = vshll.u32 %v567, 16
  %v709 = vrot.slane %v707, 5
  %v710 = vsel %vm584, %v705, %v709
  %v712 = vshrl.u32 %v568, 16
  %v714 = vrot.slane %v712, 4
  %v715 = vshll.u32 %v568, 16
  %v717 = vrot.slane %v715, 5
  %v718 = vor.u32 %v714, %v717
  %v719 = vrot.slane %v718, 4
  %v721 = vshll.u32 %v569, 16
  %v723 = vrot.slane %v721, 5
  %v724 = vsel %vm584, %v719, %v723
  %v726 = vshrl.u32 %v570, 16
  %v728 = vrot.slane %v726, 4
  %v729 = vshll.u32 %v570, 16
  %v731 = vrot.slane %v729, 5
  %v732 = vor.u32 %v728, %v731
  %v733 = vrot.slane %v732, 4
  %v735 = vshll.u32 %v571, 16
  %v737 = vrot.slane %v735, 5
  %v738 = vsel %vm584, %v733, %v737
  %v740 = vshrl.u32 %v572, 16
  %v742 = vrot.slane %v740, 4
  %v743 = vshll.u32 %v572, 16
  %v745 = vrot.slane %v743, 5
  %v746 = vor.u32 %v742, %v745
  %v747 = vrot.slane %v746, 4
  %v749 = vshll.u32 %v573, 16
  %v751 = vrot.slane %v749, 5
  %v752 = vsel %vm584, %v747, %v751
  %v754 = vshrl.u32 %v574, 16
  %v756 = vrot.slane %v754, 4
  %v757 = vshll.u32 %v574, 16
  %v759 = vrot.slane %v757, 5
  %v760 = vor.u32 %v756, %v759
  %v761 = vrot.slane %v760, 4
  %v763 = vshll.u32 %v575, 16
  %v765 = vrot.slane %v763, 5
  %v766 = vsel %vm584, %v761, %v765
  %v768 = vshrl.u32 %v576, 16
  %v770 = vrot.slane %v768, 4
  %v771 = vshll.u32 %v576, 16
  %v773 = vrot.slane %v771, 5
  %v774 = vor.u32 %v770, %v773
  %v775 = vrot.slane %v774, 4
  %v777 = vshll.u32 %v577, 16
  %v779 = vrot.slane %v777, 5
  %v780 = vsel %vm584, %v775, %v779
  %v782 = vshrl.u32 %v578, 16
  %v784 = vrot.slane %v782, 4
  %v785 = vshll.u32 %v578, 16
  %v787 = vrot.slane %v785, 5
  %v788 = vor.u32 %v784, %v787
  %v789 = vrot.slane %v788, 4
  %v791 = vshll.u32 %v579, 16
  %v793 = vrot.slane %v791, 5
  %v794 = vsel %vm584, %v789, %v793
  %v796 = vshrl.u32 %v580, 16
  %v798 = vrot.slane %v796, 4
  %v799 = vshll.u32 %v580, 16
  %v801 = vrot.slane %v799, 5
  %v802 = vor.u32 %v798, %v801
  %v803 = vrot.slane %v802, 4
  %v805 = vshll.u32 %v581, 16
  %v807 = vrot.slane %v805, 5
  %v808 = vsel %vm584, %v803, %v807
  %825 = vst [vmem:[#allocation3 + $0x4] sm:$0xf] %v598
  %826 = vst [vmem:[#allocation3 + $0x28] sm:$0xf] %v612
  %827 = vst [vmem:[#allocation3 + $0x4c] sm:$0xf] %v626
  %828 = vst [vmem:[#allocation3 + $0x70] sm:$0xf] %v640
  %829 = vst [vmem:[#allocation3 + $0x94] sm:$0xf] %v654
  %830 = vst [vmem:[#allocation3 + $0xb8] sm:$0xf] %v668
  %831 = vst [vmem:[#allocation3 + $0xdc] sm:$0xf] %v682
  %832 = vst [vmem:[#allocation3 + $0x100] sm:$0xf] %v696
  %833 = vst [vmem:[#allocation3 + $0x124] sm:$0xf] %v710
  %834 = vst [vmem:[#allocation3 + $0x148] sm:$0xf] %v724
  %835 = vst [vmem:[#allocation3 + $0x16c] sm:$0xf] %v738
  %836 = vst [vmem:[#allocation3 + $0x190] sm:$0xf] %v752
  %837 = vst [vmem:[#allocation3 + $0x1b4] sm:$0xf] %v766
  %838 = vst [vmem:[#allocation3 + $0x1d8] sm:$0xf] %v780
  %839 = vst [vmem:[#allocation3 + $0x1fc] sm:$0xf] %v794
  %840 = vst [vmem:[#allocation3 + $0x220] sm:$0xf] %v808
  %v841 = vld [vmem:[#allocation2] sm:$0xe]
  %v842 = vld [vmem:[#allocation2 + $0x4] sm:$0x1]
  %v843 = vld [vmem:[#allocation2 + $0x8] sm:$0xe]
  %v844 = vld [vmem:[#allocation2 + $0xc] sm:$0x1]
  %v845 = vld [vmem:[#allocation2 + $0x10] sm:$0xe]
  %v846 = vld [vmem:[#allocation2 + $0x14] sm:$0x1]
  %v847 = vld [vmem:[#allocation2 + $0x18] sm:$0xe]
  %v848 = vld [vmem:[#allocation2 + $0x1c] sm:$0x1]
  %v849 = vld [vmem:[#allocation2 + $0x20] sm:$0xe]
  %v850 = vld [vmem:[#allocation2 + $0x24] sm:$0x1]
  %v851 = vld [vmem:[#allocation2 + $0x28] sm:$0xe]
  %v852 = vld [vmem:[#allocation2 + $0x2c] sm:$0x1]
  %v853 = vld [vmem:[#allocation2 + $0x30] sm:$0xe]
  %v854 = vld [vmem:[#allocation2 + $0x34] sm:$0x1]
  %v855 = vld [vmem:[#allocation2 + $0x38] sm:$0xe]
  %v856 = vld [vmem:[#allocation2 + $0x3c] sm:$0x1]
  %v857 = vld [vmem:[#allocation2 + $0x50] sm:$0xe]
  %v858 = vld [vmem:[#allocation2 + $0x54] sm:$0x1]
  %v859 = vld [vmem:[#allocation2 + $0x58] sm:$0xe]
  %v860 = vld [vmem:[#allocation2 + $0x5c] sm:$0x1]
  %v861 = vld [vmem:[#allocation2 + $0x60] sm:$0xe]
  %v862 = vld [vmem:[#allocation2 + $0x64] sm:$0x1]
  %v863 = vld [vmem:[#allocation2 + $0x68] sm:$0xe]
  %v864 = vld [vmem:[#allocation2 + $0x6c] sm:$0x1]
  %v865 = vld [vmem:[#allocation2 + $0x70] sm:$0xe]
  %v866 = vld [vmem:[#allocation2 + $0x74] sm:$0x1]
  %v867 = vld [vmem:[#allocation2 + $0x78] sm:$0xe]
  %v868 = vld [vmem:[#allocation2 + $0x7c] sm:$0x1]
  %v869 = vld [vmem:[#allocation2 + $0x80] sm:$0xe]
  %v870 = vld [vmem:[#allocation2 + $0x84] sm:$0x1]
  %v871 = vld [vmem:[#allocation2 + $0x88] sm:$0xe]
  %v872 = vld [vmem:[#allocation2 + $0x8c] sm:$0x1]
  %vm905 = vcmask 1042432
  %vm906 = vcmask 1046532
  %vm907 = vmor %vm905, %vm906
  %v908 = vrot.slane %v841, 5
  %v909 = vrot.slane %v908, 4
  %v910 = vrot.slane %v842, 5
  %v911 = vsel %vm907, %v909, %v910
  %v912 = vrot.slane %v843, 5
  %v913 = vrot.slane %v912, 4
  %v914 = vrot.slane %v844, 5
  %v915 = vsel %vm907, %v913, %v914
  %v916 = vrot.slane %v845, 5
  %v917 = vrot.slane %v916, 4
  %v918 = vrot.slane %v846, 5
  %v919 = vsel %vm907, %v917, %v918
  %v920 = vrot.slane %v847, 5
  %v921 = vrot.slane %v920, 4
  %v922 = vrot.slane %v848, 5
  %v923 = vsel %vm907, %v921, %v922
  %v924 = vrot.slane %v849, 5
  %v925 = vrot.slane %v924, 4
  %v926 = vrot.slane %v850, 5
  %v927 = vsel %vm907, %v925, %v926
  %v928 = vrot.slane %v851, 5
  %v929 = vrot.slane %v928, 4
  %v930 = vrot.slane %v852, 5
  %v931 = vsel %vm907, %v929, %v930
  %v932 = vrot.slane %v853, 5
  %v933 = vrot.slane %v932, 4
  %v934 = vrot.slane %v854, 5
  %v935 = vsel %vm907, %v933, %v934
  %v936 = vrot.slane %v855, 5
  %v937 = vrot.slane %v936, 4
  %v938 = vrot.slane %v856, 5
  %v939 = vsel %vm907, %v937, %v938
  %v940 = vrot.slane %v857, 5
  %v941 = vrot.slane %v940, 4
  %v942 = vrot.slane %v858, 5
  %v943 = vsel %vm907, %v941, %v942
  %v944 = vrot.slane %v859, 5
  %v945 = vrot.slane %v944, 4
  %v946 = vrot.slane %v860, 5
  %v947 = vsel %vm907, %v945, %v946
  %v948 = vrot.slane %v861, 5
  %v949 = vrot.slane %v948, 4
  %v950 = vrot.slane %v862, 5
  %v951 = vsel %vm907, %v949, %v950
  %v952 = vrot.slane %v863, 5
  %v953 = vrot.slane %v952, 4
  %v954 = vrot.slane %v864, 5
  %v955 = vsel %vm907, %v953, %v954
  %v956 = vrot.slane %v865, 5
  %v957 = vrot.slane %v956, 4
  %v958 = vrot.slane %v866, 5
  %v959 = vsel %vm907, %v957, %v958
  %v960 = vrot.slane %v867, 5
  %v961 = vrot.slane %v960, 4
  %v962 = vrot.slane %v868, 5
  %v963 = vsel %vm907, %v961, %v962
  %v964 = vrot.slane %v869, 5
  %v965 = vrot.slane %v964, 4
  %v966 = vrot.slane %v870, 5
  %v967 = vsel %vm907, %v965, %v966
  %v968 = vrot.slane %v871, 5
  %v969 = vrot.slane %v968, 4
  %v970 = vrot.slane %v872, 5
  %v971 = vsel %vm907, %v969, %v970
  %988 = vst [vmem:[#allocation3 + $0x8] sm:$0xf] %v911
  %989 = vst [vmem:[#allocation3 + $0x2c] sm:$0xf] %v915
  %990 = vst [vmem:[#allocation3 + $0x50] sm:$0xf] %v919
  %991 = vst [vmem:[#allocation3 + $0x74] sm:$0xf] %v923
  %992 = vst [vmem:[#allocation3 + $0x98] sm:$0xf] %v927
  %993 = vst [vmem:[#allocation3 + $0xbc] sm:$0xf] %v931
  %994 = vst [vmem:[#allocation3 + $0xe0] sm:$0xf] %v935
  %995 = vst [vmem:[#allocation3 + $0x104] sm:$0xf] %v939
  %996 = vst [vmem:[#allocation3 + $0x128] sm:$0xf] %v943
  %997 = vst [vmem:[#allocation3 + $0x14c] sm:$0xf] %v947
  %998 = vst [vmem:[#allocation3 + $0x170] sm:$0xf] %v951
  %999 = vst [vmem:[#allocation3 + $0x194] sm:$0xf] %v955
  %1000 = vst [vmem:[#allocation3 + $0x1b8] sm:$0xf] %v959
  %1001 = vst [vmem:[#allocation3 + $0x1dc] sm:$0xf] %v963
  %1002 = vst [vmem:[#allocation3 + $0x200] sm:$0xf] %v967
  %1003 = vst [vmem:[#allocation3 + $0x224] sm:$0xf] %v971
  %v1004 = vld [vmem:[%s158] sm:$0xf]
  %v1005 = vld [vmem:[%s158 + $0x8] sm:$0xf]
  %v1006 = vld [vmem:[%s158 + $0x10] sm:$0xf]
  %v1007 = vld [vmem:[%s158 + $0x18] sm:$0xf]
  %v1008 = vld [vmem:[%s158 + $0x20] sm:$0xf]
  %v1009 = vld [vmem:[%s158 + $0x28] sm:$0xf]
  %v1010 = vld [vmem:[%s158 + $0x30] sm:$0xf]
  %v1011 = vld [vmem:[%s158 + $0x38] sm:$0xf]
  %v1012 = vld [vmem:[%s158 + $0x50] sm:$0xf]
  %v1013 = vld [vmem:[%s158 + $0x58] sm:$0xf]
  %v1014 = vld [vmem:[%s158 + $0x60] sm:$0xf]
  %v1015 = vld [vmem:[%s158 + $0x68] sm:$0xf]
  %v1016 = vld [vmem:[%s158 + $0x70] sm:$0xf]
  %v1017 = vld [vmem:[%s158 + $0x78] sm:$0xf]
  %v1018 = vld [vmem:[%s158 + $0x80] sm:$0xf]
  %v1019 = vld [vmem:[%s158 + $0x88] sm:$0xf]
  %1020 = vst [vmem:[#allocation3 + $0xc] sm:$0xf] %v1004
  %1021 = vst [vmem:[#allocation3 + $0x30] sm:$0xf] %v1005
  %1022 = vst [vmem:[#allocation3 + $0x54] sm:$0xf] %v1006
  %1023 = vst [vmem:[#allocation3 + $0x78] sm:$0xf] %v1007
  %1024 = vst [vmem:[#allocation3 + $0x9c] sm:$0xf] %v1008
  %1025 = vst [vmem:[#allocation3 + $0xc0] sm:$0xf] %v1009
  %1026 = vst [vmem:[#allocation3 + $0xe4] sm:$0xf] %v1010
  %1027 = vst [vmem:[#allocation3 + $0x108] sm:$0xf] %v1011
  %1028 = vst [vmem:[#allocation3 + $0x12c] sm:$0xf] %v1012
  %1029 = vst [vmem:[#allocation3 + $0x150] sm:$0xf] %v1013
  %1030 = vst [vmem:[#allocation3 + $0x174] sm:$0xf] %v1014
  %1031 = vst [vmem:[#allocation3 + $0x198] sm:$0xf] %v1015
  %1032 = vst [vmem:[#allocation3 + $0x1bc] sm:$0xf] %v1016
  %1033 = vst [vmem:[#allocation3 + $0x1e0] sm:$0xf] %v1017
  %1034 = vst [vmem:[#allocation3 + $0x204] sm:$0xf] %v1018
  %1035 = vst [vmem:[#allocation3 + $0x228] sm:$0xf] %v1019
  %v1036 = vld [vmem:[%s158] sm:$0xf]
  %v1037 = vld [vmem:[%s158 + $0x4] sm:$0x1]
  %v1038 = vld [vmem:[%s158 + $0x8] sm:$0xf]
  %v1039 = vld [vmem:[%s158 + $0xc] sm:$0x1]
  %v1040 = vld [vmem:[%s158 + $0x10] sm:$0xf]
  %v1041 = vld [vmem:[%s158 + $0x14] sm:$0x1]
  %v1042 = vld [vmem:[%s158 + $0x18] sm:$0xf]
  %v1043 = vld [vmem:[%s158 + $0x1c] sm:$0x1]
  %v1044 = vld [vmem:[%s158 + $0x20] sm:$0xf]
  %v1045 = vld [vmem:[%s158 + $0x24] sm:$0x1]
  %v1046 = vld [vmem:[%s158 + $0x28] sm:$0xf]
  %v1047 = vld [vmem:[%s158 + $0x2c] sm:$0x1]
  %v1048 = vld [vmem:[%s158 + $0x30] sm:$0xf]
  %v1049 = vld [vmem:[%s158 + $0x34] sm:$0x1]
  %v1050 = vld [vmem:[%s158 + $0x38] sm:$0xf]
  %v1051 = vld [vmem:[%s158 + $0x3c] sm:$0x1]
  %v1052 = vld [vmem:[%s158 + $0x50] sm:$0xf]
  %v1053 = vld [vmem:[%s158 + $0x54] sm:$0x1]
  %v1054 = vld [vmem:[%s158 + $0x58] sm:$0xf]
  %v1055 = vld [vmem:[%s158 + $0x5c] sm:$0x1]
  %v1056 = vld [vmem:[%s158 + $0x60] sm:$0xf]
  %v1057 = vld [vmem:[%s158 + $0x64] sm:$0x1]
  %v1058 = vld [vmem:[%s158 + $0x68] sm:$0xf]
  %v1059 = vld [vmem:[%s158 + $0x6c] sm:$0x1]
  %v1060 = vld [vmem:[%s158 + $0x70] sm:$0xf]
  %v1061 = vld [vmem:[%s158 + $0x74] sm:$0x1]
  %v1062 = vld [vmem:[%s158 + $0x78] sm:$0xf]
  %v1063 = vld [vmem:[%s158 + $0x7c] sm:$0x1]
  %v1064 = vld [vmem:[%s158 + $0x80] sm:$0xf]
  %v1065 = vld [vmem:[%s158 + $0x84] sm:$0x1]
  %v1066 = vld [vmem:[%s158 + $0x88] sm:$0xf]
  %v1067 = vld [vmem:[%s158 + $0x8c] sm:$0x1]
  %v1069 = vshrl.u32 %v1036, 16
  %v1071 = vrot.slane %v1069, 4
  %v1072 = vshll.u32 %v1036, 16
  %v1074 = vrot.slane %v1072, 5
  %v1075 = vor.u32 %v1071, %v1074
  %v1076 = vrot.slane %v1075, 4
  %v1078 = vshll.u32 %v1037, 16
  %v1080 = vrot.slane %v1078, 5
  %v1081 = vsel %vm584, %v1076, %v1080
  %v1083 = vshrl.u32 %v1038, 16
  %v1085 = vrot.slane %v1083, 4
  %v1086 = vshll.u32 %v1038, 16
  %v1088 = vrot.slane %v1086, 5
  %v1089 = vor.u32 %v1085, %v1088
  %v1090 = vrot.slane %v1089, 4
  %v1092 = vshll.u32 %v1039, 16
  %v1094 = vrot.slane %v1092, 5
  %v1095 = vsel %vm584, %v1090, %v1094
  %v1097 = vshrl.u32 %v1040, 16
  %v1099 = vrot.slane %v1097, 4
  %v1100 = vshll.u32 %v1040, 16
  %v1102 = vrot.slane %v1100, 5
  %v1103 = vor.u32 %v1099, %v1102
  %v1104 = vrot.slane %v1103, 4
  %v1106 = vshll.u32 %v1041, 16
  %v1108 = vrot.slane %v1106, 5
  %v1109 = vsel %vm584, %v1104, %v1108
  %v1111 = vshrl.u32 %v1042, 16
  %v1113 = vrot.slane %v1111, 4
  %v1114 = vshll.u32 %v1042, 16
  %v1116 = vrot.slane %v1114, 5
  %v1117 = vor.u32 %v1113, %v1116
  %v1118 = vrot.slane %v1117, 4
  %v1120 = vshll.u32 %v1043, 16
  %v1122 = vrot.slane %v1120, 5
  %v1123 = vsel %vm584, %v1118, %v1122
  %v1125 = vshrl.u32 %v1044, 16
  %v1127 = vrot.slane %v1125, 4
  %v1128 = vshll.u32 %v1044, 16
  %v1130 = vrot.slane %v1128, 5
  %v1131 = vor.u32 %v1127, %v1130
  %v1132 = vrot.slane %v1131, 4
  %v1134 = vshll.u32 %v1045, 16
  %v1136 = vrot.slane %v1134, 5
  %v1137 = vsel %vm584, %v1132, %v1136
  %v1139 = vshrl.u32 %v1046, 16
  %v1141 = vrot.slane %v1139, 4
  %v1142 = vshll.u32 %v1046, 16
  %v1144 = vrot.slane %v1142, 5
  %v1145 = vor.u32 %v1141, %v1144
  %v1146 = vrot.slane %v1145, 4
  %v1148 = vshll.u32 %v1047, 16
  %v1150 = vrot.slane %v1148, 5
  %v1151 = vsel %vm584, %v1146, %v1150
  %v1153 = vshrl.u32 %v1048, 16
  %v1155 = vrot.slane %v1153, 4
  %v1156 = vshll.u32 %v1048, 16
  %v1158 = vrot.slane %v1156, 5
  %v1159 = vor.u32 %v1155, %v1158
  %v1160 = vrot.slane %v1159, 4
  %v1162 = vshll.u32 %v1049, 16
  %v1164 = vrot.slane %v1162, 5
  %v1165 = vsel %vm584, %v1160, %v1164
  %v1167 = vshrl.u32 %v1050, 16
  %v1169 = vrot.slane %v1167, 4
  %v1170 = vshll.u32 %v1050, 16
  %v1172 = vrot.slane %v1170, 5
  %v1173 = vor.u32 %v1169, %v1172
  %v1174 = vrot.slane %v1173, 4
  %v1176 = vshll.u32 %v1051, 16
  %v1178 = vrot.slane %v1176, 5
  %v1179 = vsel %vm584, %v1174, %v1178
  %v1181 = vshrl.u32 %v1052, 16
  %v1183 = vrot.slane %v1181, 4
  %v1184 = vshll.u32 %v1052, 16
  %v1186 = vrot.slane %v1184, 5
  %v1187 = vor.u32 %v1183, %v1186
  %v1188 = vrot.slane %v1187, 4
  %v1190 = vshll.u32 %v1053, 16
  %v1192 = vrot.slane %v1190, 5
  %v1193 = vsel %vm584, %v1188, %v1192
  %v1195 = vshrl.u32 %v1054, 16
  %v1197 = vrot.slane %v1195, 4
  %v1198 = vshll.u32 %v1054, 16
  %v1200 = vrot.slane %v1198, 5
  %v1201 = vor.u32 %v1197, %v1200
  %v1202 = vrot.slane %v1201, 4
  %v1204 = vshll.u32 %v1055, 16
  %v1206 = vrot.slane %v1204, 5
  %v1207 = vsel %vm584, %v1202, %v1206
  %v1209 = vshrl.u32 %v1056, 16
  %v1211 = vrot.slane %v1209, 4
  %v1212 = vshll.u32 %v1056, 16
  %v1214 = vrot.slane %v1212, 5
  %v1215 = vor.u32 %v1211, %v1214
  %v1216 = vrot.slane %v1215, 4
  %v1218 = vshll.u32 %v1057, 16
  %v1220 = vrot.slane %v1218, 5
  %v1221 = vsel %vm584, %v1216, %v1220
  %v1223 = vshrl.u32 %v1058, 16
  %v1225 = vrot.slane %v1223, 4
  %v1226 = vshll.u32 %v1058, 16
  %v1228 = vrot.slane %v1226, 5
  %v1229 = vor.u32 %v1225, %v1228
  %v1230 = vrot.slane %v1229, 4
  %v1232 = vshll.u32 %v1059, 16
  %v1234 = vrot.slane %v1232, 5
  %v1235 = vsel %vm584, %v1230, %v1234
  %v1237 = vshrl.u32 %v1060, 16
  %v1239 = vrot.slane %v1237, 4
  %v1240 = vshll.u32 %v1060, 16
  %v1242 = vrot.slane %v1240, 5
  %v1243 = vor.u32 %v1239, %v1242
  %v1244 = vrot.slane %v1243, 4
  %v1246 = vshll.u32 %v1061, 16
  %v1248 = vrot.slane %v1246, 5
  %v1249 = vsel %vm584, %v1244, %v1248
  %v1251 = vshrl.u32 %v1062, 16
  %v1253 = vrot.slane %v1251, 4
  %v1254 = vshll.u32 %v1062, 16
  %v1256 = vrot.slane %v1254, 5
  %v1257 = vor.u32 %v1253, %v1256
  %v1258 = vrot.slane %v1257, 4
  %v1260 = vshll.u32 %v1063, 16
  %v1262 = vrot.slane %v1260, 5
  %v1263 = vsel %vm584, %v1258, %v1262
  %v1265 = vshrl.u32 %v1064, 16
  %v1267 = vrot.slane %v1265, 4
  %v1268 = vshll.u32 %v1064, 16
  %v1270 = vrot.slane %v1268, 5
  %v1271 = vor.u32 %v1267, %v1270
  %v1272 = vrot.slane %v1271, 4
  %v1274 = vshll.u32 %v1065, 16
  %v1276 = vrot.slane %v1274, 5
  %v1277 = vsel %vm584, %v1272, %v1276
  %v1279 = vshrl.u32 %v1066, 16
  %v1281 = vrot.slane %v1279, 4
  %v1282 = vshll.u32 %v1066, 16
  %v1284 = vrot.slane %v1282, 5
  %v1285 = vor.u32 %v1281, %v1284
  %v1286 = vrot.slane %v1285, 4
  %v1288 = vshll.u32 %v1067, 16
  %v1290 = vrot.slane %v1288, 5
  %v1291 = vsel %vm584, %v1286, %v1290
  %1308 = vst [vmem:[#allocation3 + $0x10] sm:$0xf] %v1081
  %1309 = vst [vmem:[#allocation3 + $0x34] sm:$0xf] %v1095
  %1310 = vst [vmem:[#allocation3 + $0x58] sm:$0xf] %v1109
  %1311 = vst [vmem:[#allocation3 + $0x7c] sm:$0xf] %v1123
  %1312 = vst [vmem:[#allocation3 + $0xa0] sm:$0xf] %v1137
  %1313 = vst [vmem:[#allocation3 + $0xc4] sm:$0xf] %v1151
  %1314 = vst [vmem:[#allocation3 + $0xe8] sm:$0xf] %v1165
  %1315 = vst [vmem:[#allocation3 + $0x10c] sm:$0xf] %v1179
  %1316 = vst [vmem:[#allocation3 + $0x130] sm:$0xf] %v1193
  %1317 = vst [vmem:[#allocation3 + $0x154] sm:$0xf] %v1207
  %1318 = vst [vmem:[#allocation3 + $0x178] sm:$0xf] %v1221
  %1319 = vst [vmem:[#allocation3 + $0x19c] sm:$0xf] %v1235
  %1320 = vst [vmem:[#allocation3 + $0x1c0] sm:$0xf] %v1249
  %1321 = vst [vmem:[#allocation3 + $0x1e4] sm:$0xf] %v1263
  %1322 = vst [vmem:[#allocation3 + $0x208] sm:$0xf] %v1277
  %1323 = vst [vmem:[#allocation3 + $0x22c] sm:$0xf] %v1291
  %v1324 = vld [vmem:[%s158] sm:$0xe]
  %v1325 = vld [vmem:[%s158 + $0x4] sm:$0x1]
  %v1326 = vld [vmem:[%s158 + $0x8] sm:$0xe]
  %v1327 = vld [vmem:[%s158 + $0xc] sm:$0x1]
  %v1328 = vld [vmem:[%s158 + $0x10] sm:$0xe]
  %v1329 = vld [vmem:[%s158 + $0x14] sm:$0x1]
  %v1330 = vld [vmem:[%s158 + $0x18] sm:$0xe]
  %v1331 = vld [vmem:[%s158 + $0x1c] sm:$0x1]
  %v1332 = vld [vmem:[%s158 + $0x20] sm:$0xe]
  %v1333 = vld [vmem:[%s158 + $0x24] sm:$0x1]
  %v1334 = vld [vmem:[%s158 + $0x28] sm:$0xe]
  %v1335 = vld [vmem:[%s158 + $0x2c] sm:$0x1]
  %v1336 = vld [vmem:[%s158 + $0x30] sm:$0xe]
  %v1337 = vld [vmem:[%s158 + $0x34] sm:$0x1]
  %v1338 = vld [vmem:[%s158 + $0x38] sm:$0xe]
  %v1339 = vld [vmem:[%s158 + $0x3c] sm:$0x1]
  %v1340 = vld [vmem:[%s158 + $0x50] sm:$0xe]
  %v1341 = vld [vmem:[%s158 + $0x54] sm:$0x1]
  %v1342 = vld [vmem:[%s158 + $0x58] sm:$0xe]
  %v1343 = vld [vmem:[%s158 + $0x5c] sm:$0x1]
  %v1344 = vld [vmem:[%s158 + $0x60] sm:$0xe]
  %v1345 = vld [vmem:[%s158 + $0x64] sm:$0x1]
  %v1346 = vld [vmem:[%s158 + $0x68] sm:$0xe]
  %v1347 = vld [vmem:[%s158 + $0x6c] sm:$0x1]
  %v1348 = vld [vmem:[%s158 + $0x70] sm:$0xe]
  %v1349 = vld [vmem:[%s158 + $0x74] sm:$0x1]
  %v1350 = vld [vmem:[%s158 + $0x78] sm:$0xe]
  %v1351 = vld [vmem:[%s158 + $0x7c] sm:$0x1]
  %v1352 = vld [vmem:[%s158 + $0x80] sm:$0xe]
  %v1353 = vld [vmem:[%s158 + $0x84] sm:$0x1]
  %v1354 = vld [vmem:[%s158 + $0x88] sm:$0xe]
  %v1355 = vld [vmem:[%s158 + $0x8c] sm:$0x1]
  %v1388 = vrot.slane %v1324, 5
  %v1389 = vrot.slane %v1388, 4
  %v1390 = vrot.slane %v1325, 5
  %v1391 = vsel %vm907, %v1389, %v1390
  %v1392 = vrot.slane %v1326, 5
  %v1393 = vrot.slane %v1392, 4
  %v1394 = vrot.slane %v1327, 5
  %v1395 = vsel %vm907, %v1393, %v1394
  %v1396 = vrot.slane %v1328, 5
  %v1397 = vrot.slane %v1396, 4
  %v1398 = vrot.slane %v1329, 5
  %v1399 = vsel %vm907, %v1397, %v1398
  %v1400 = vrot.slane %v1330, 5
  %v1401 = vrot.slane %v1400, 4
  %v1402 = vrot.slane %v1331, 5
  %v1403 = vsel %vm907, %v1401, %v1402
  %v1404 = vrot.slane %v1332, 5
  %v1405 = vrot.slane %v1404, 4
  %v1406 = vrot.slane %v1333, 5
  %v1407 = vsel %vm907, %v1405, %v1406
  %v1408 = vrot.slane %v1334, 5
  %v1409 = vrot.slane %v1408, 4
  %v1410 = vrot.slane %v1335, 5
  %v1411 = vsel %vm907, %v1409, %v1410
  %v1412 = vrot.slane %v1336, 5
  %v1413 = vrot.slane %v1412, 4
  %v1414 = vrot.slane %v1337, 5
  %v1415 = vsel %vm907, %v1413, %v1414
  %v1416 = vrot.slane %v1338, 5
  %v1417 = vrot.slane %v1416, 4
  %v1418 = vrot.slane %v1339, 5
  %v1419 = vsel %vm907, %v1417, %v1418
  %v1420 = vrot.slane %v1340, 5
  %v1421 = vrot.slane %v1420, 4
  %v1422 = vrot.slane %v1341, 5
  %v1423 = vsel %vm907, %v1421, %v1422
  %v1424 = vrot.slane %v1342, 5
  %v1425 = vrot.slane %v1424, 4
  %v1426 = vrot.slane %v1343, 5
  %v1427 = vsel %vm907, %v1425, %v1426
  %v1428 = vrot.slane %v1344, 5
  %v1429 = vrot.slane %v1428, 4
  %v1430 = vrot.slane %v1345, 5
  %v1431 = vsel %vm907, %v1429, %v1430
  %v1432 = vrot.slane %v1346, 5
  %v1433 = vrot.slane %v1432, 4
  %v1434 = vrot.slane %v1347, 5
  %v1435 = vsel %vm907, %v1433, %v1434
  %v1436 = vrot.slane %v1348, 5
  %v1437 = vrot.slane %v1436, 4
  %v1438 = vrot.slane %v1349, 5
  %v1439 = vsel %vm907, %v1437, %v1438
  %v1440 = vrot.slane %v1350, 5
  %v1441 = vrot.slane %v1440, 4
  %v1442 = vrot.slane %v1351, 5
  %v1443 = vsel %vm907, %v1441, %v1442
  %v1444 = vrot.slane %v1352, 5
  %v1445 = vrot.slane %v1444, 4
  %v1446 = vrot.slane %v1353, 5
  %v1447 = vsel %vm907, %v1445, %v1446
  %v1448 = vrot.slane %v1354, 5
  %v1449 = vrot.slane %v1448, 4
  %v1450 = vrot.slane %v1355, 5
  %v1451 = vsel %vm907, %v1449, %v1450
  %1468 = vst [vmem:[#allocation3 + $0x14] sm:$0xf] %v1391
  %1469 = vst [vmem:[#allocation3 + $0x38] sm:$0xf] %v1395
  %1470 = vst [vmem:[#allocation3 + $0x5c] sm:$0xf] %v1399
  %1471 = vst [vmem:[#allocation3 + $0x80] sm:$0xf] %v1403
  %1472 = vst [vmem:[#allocation3 + $0xa4] sm:$0xf] %v1407
  %1473 = vst [vmem:[#allocation3 + $0xc8] sm:$0xf] %v1411
  %1474 = vst [vmem:[#allocation3 + $0xec] sm:$0xf] %v1415
  %1475 = vst [vmem:[#allocation3 + $0x110] sm:$0xf] %v1419
  %1476 = vst [vmem:[#allocation3 + $0x134] sm:$0xf] %v1423
  %1477 = vst [vmem:[#allocation3 + $0x158] sm:$0xf] %v1427
  %1478 = vst [vmem:[#allocation3 + $0x17c] sm:$0xf] %v1431
  %1479 = vst [vmem:[#allocation3 + $0x1a0] sm:$0xf] %v1435
  %1480 = vst [vmem:[#allocation3 + $0x1c4] sm:$0xf] %v1439
  %1481 = vst [vmem:[#allocation3 + $0x1e8] sm:$0xf] %v1443
  %1482 = vst [vmem:[#allocation3 + $0x20c] sm:$0xf] %v1447
  %1483 = vst [vmem:[#allocation3 + $0x230] sm:$0xf] %v1451
  %s1484 = scalar_lea.vmem [#allocation2], 16
  %v1485 = vld [vmem:[%s1484] sm:$0xf]
  %v1486 = vld [vmem:[%s1484 + $0x8] sm:$0xf]
  %v1487 = vld [vmem:[%s1484 + $0x10] sm:$0xf]
  %v1488 = vld [vmem:[%s1484 + $0x18] sm:$0xf]
  %v1489 = vld [vmem:[%s1484 + $0x20] sm:$0xf]
  %v1490 = vld [vmem:[%s1484 + $0x28] sm:$0xf]
  %v1491 = vld [vmem:[%s1484 + $0x30] sm:$0xf]
  %v1492 = vld [vmem:[%s1484 + $0x38] sm:$0xf]
  %v1493 = vld [vmem:[%s1484 + $0x50] sm:$0xf]
  %v1494 = vld [vmem:[%s1484 + $0x58] sm:$0xf]
  %v1495 = vld [vmem:[%s1484 + $0x60] sm:$0xf]
  %v1496 = vld [vmem:[%s1484 + $0x68] sm:$0xf]
  %v1497 = vld [vmem:[%s1484 + $0x70] sm:$0xf]
  %v1498 = vld [vmem:[%s1484 + $0x78] sm:$0xf]
  %v1499 = vld [vmem:[%s1484 + $0x80] sm:$0xf]
  %v1500 = vld [vmem:[%s1484 + $0x88] sm:$0xf]
  %1501 = vst [vmem:[#allocation3 + $0x18] sm:$0xf] %v1485
  %1502 = vst [vmem:[#allocation3 + $0x3c] sm:$0xf] %v1486
  %1503 = vst [vmem:[#allocation3 + $0x60] sm:$0xf] %v1487
  %1504 = vst [vmem:[#allocation3 + $0x84] sm:$0xf] %v1488
  %1505 = vst [vmem:[#allocation3 + $0xa8] sm:$0xf] %v1489
  %1506 = vst [vmem:[#allocation3 + $0xcc] sm:$0xf] %v1490
  %1507 = vst [vmem:[#allocation3 + $0xf0] sm:$0xf] %v1491
  %1508 = vst [vmem:[#allocation3 + $0x114] sm:$0xf] %v1492
  %1509 = vst [vmem:[#allocation3 + $0x138] sm:$0xf] %v1493
  %1510 = vst [vmem:[#allocation3 + $0x15c] sm:$0xf] %v1494
  %1511 = vst [vmem:[#allocation3 + $0x180] sm:$0xf] %v1495
  %1512 = vst [vmem:[#allocation3 + $0x1a4] sm:$0xf] %v1496
  %1513 = vst [vmem:[#allocation3 + $0x1c8] sm:$0xf] %v1497
  %1514 = vst [vmem:[#allocation3 + $0x1ec] sm:$0xf] %v1498
  %1515 = vst [vmem:[#allocation3 + $0x210] sm:$0xf] %v1499
  %1516 = vst [vmem:[#allocation3 + $0x234] sm:$0xf] %v1500
  %v1517 = vld [vmem:[%s1484] sm:$0xf]
  %v1518 = vld [vmem:[%s1484 + $0x4] sm:$0x1]
  %v1519 = vld [vmem:[%s1484 + $0x8] sm:$0xf]
  %v1520 = vld [vmem:[%s1484 + $0xc] sm:$0x1]
  %v1521 = vld [vmem:[%s1484 + $0x10] sm:$0xf]
  %v1522 = vld [vmem:[%s1484 + $0x14] sm:$0x1]
  %v1523 = vld [vmem:[%s1484 + $0x18] sm:$0xf]
  %v1524 = vld [vmem:[%s1484 + $0x1c] sm:$0x1]
  %v1525 = vld [vmem:[%s1484 + $0x20] sm:$0xf]
  %v1526 = vld [vmem:[%s1484 + $0x24] sm:$0x1]
  %v1527 = vld [vmem:[%s1484 + $0x28] sm:$0xf]
  %v1528 = vld [vmem:[%s1484 + $0x2c] sm:$0x1]
  %v1529 = vld [vmem:[%s1484 + $0x30] sm:$0xf]
  %v1530 = vld [vmem:[%s1484 + $0x34] sm:$0x1]
  %v1531 = vld [vmem:[%s1484 + $0x38] sm:$0xf]
  %v1532 = vld [vmem:[%s1484 + $0x3c] sm:$0x1]
  %v1533 = vld [vmem:[%s1484 + $0x50] sm:$0xf]
  %v1534 = vld [vmem:[%s1484 + $0x54] sm:$0x1]
  %v1535 = vld [vmem:[%s1484 + $0x58] sm:$0xf]
  %v1536 = vld [vmem:[%s1484 + $0x5c] sm:$0x1]
  %v1537 = vld [vmem:[%s1484 + $0x60] sm:$0xf]
  %v1538 = vld [vmem:[%s1484 + $0x64] sm:$0x1]
  %v1539 = vld [vmem:[%s1484 + $0x68] sm:$0xf]
  %v1540 = vld [vmem:[%s1484 + $0x6c] sm:$0x1]
  %v1541 = vld [vmem:[%s1484 + $0x70] sm:$0xf]
  %v1542 = vld [vmem:[%s1484 + $0x74] sm:$0x1]
  %v1543 = vld [vmem:[%s1484 + $0x78] sm:$0xf]
  %v1544 = vld [vmem:[%s1484 + $0x7c] sm:$0x1]
  %v1545 = vld [vmem:[%s1484 + $0x80] sm:$0xf]
  %v1546 = vld [vmem:[%s1484 + $0x84] sm:$0x1]
  %v1547 = vld [vmem:[%s1484 + $0x88] sm:$0xf]
  %v1548 = vld [vmem:[%s1484 + $0x8c] sm:$0x1]
  %v1550 = vshrl.u32 %v1517, 16
  %v1552 = vrot.slane %v1550, 4
  %v1553 = vshll.u32 %v1517, 16
  %v1555 = vrot.slane %v1553, 5
  %v1556 = vor.u32 %v1552, %v1555
  %v1557 = vrot.slane %v1556, 4
  %v1559 = vshll.u32 %v1518, 16
  %v1561 = vrot.slane %v1559, 5
  %v1562 = vsel %vm584, %v1557, %v1561
  %v1564 = vshrl.u32 %v1519, 16
  %v1566 = vrot.slane %v1564, 4
  %v1567 = vshll.u32 %v1519, 16
  %v1569 = vrot.slane %v1567, 5
  %v1570 = vor.u32 %v1566, %v1569
  %v1571 = vrot.slane %v1570, 4
  %v1573 = vshll.u32 %v1520, 16
  %v1575 = vrot.slane %v1573, 5
  %v1576 = vsel %vm584, %v1571, %v1575
  %v1578 = vshrl.u32 %v1521, 16
  %v1580 = vrot.slane %v1578, 4
  %v1581 = vshll.u32 %v1521, 16
  %v1583 = vrot.slane %v1581, 5
  %v1584 = vor.u32 %v1580, %v1583
  %v1585 = vrot.slane %v1584, 4
  %v1587 = vshll.u32 %v1522, 16
  %v1589 = vrot.slane %v1587, 5
  %v1590 = vsel %vm584, %v1585, %v1589
  %v1592 = vshrl.u32 %v1523, 16
  %v1594 = vrot.slane %v1592, 4
  %v1595 = vshll.u32 %v1523, 16
  %v1597 = vrot.slane %v1595, 5
  %v1598 = vor.u32 %v1594, %v1597
  %v1599 = vrot.slane %v1598, 4
  %v1601 = vshll.u32 %v1524, 16
  %v1603 = vrot.slane %v1601, 5
  %v1604 = vsel %vm584, %v1599, %v1603
  %v1606 = vshrl.u32 %v1525, 16
  %v1608 = vrot.slane %v1606, 4
  %v1609 = vshll.u32 %v1525, 16
  %v1611 = vrot.slane %v1609, 5
  %v1612 = vor.u32 %v1608, %v1611
  %v1613 = vrot.slane %v1612, 4
  %v1615 = vshll.u32 %v1526, 16
  %v1617 = vrot.slane %v1615, 5
  %v1618 = vsel %vm584, %v1613, %v1617
  %v1620 = vshrl.u32 %v1527, 16
  %v1622 = vrot.slane %v1620, 4
  %v1623 = vshll.u32 %v1527, 16
  %v1625 = vrot.slane %v1623, 5
  %v1626 = vor.u32 %v1622, %v1625
  %v1627 = vrot.slane %v1626, 4
  %v1629 = vshll.u32 %v1528, 16
  %v1631 = vrot.slane %v1629, 5
  %v1632 = vsel %vm584, %v1627, %v1631
  %v1634 = vshrl.u32 %v1529, 16
  %v1636 = vrot.slane %v1634, 4
  %v1637 = vshll.u32 %v1529, 16
  %v1639 = vrot.slane %v1637, 5
  %v1640 = vor.u32 %v1636, %v1639
  %v1641 = vrot.slane %v1640, 4
  %v1643 = vshll.u32 %v1530, 16
  %v1645 = vrot.slane %v1643, 5
  %v1646 = vsel %vm584, %v1641, %v1645
  %v1648 = vshrl.u32 %v1531, 16
  %v1650 = vrot.slane %v1648, 4
  %v1651 = vshll.u32 %v1531, 16
  %v1653 = vrot.slane %v1651, 5
  %v1654 = vor.u32 %v1650, %v1653
  %v1655 = vrot.slane %v1654, 4
  %v1657 = vshll.u32 %v1532, 16
  %v1659 = vrot.slane %v1657, 5
  %v1660 = vsel %vm584, %v1655, %v1659
  %v1662 = vshrl.u32 %v1533, 16
  %v1664 = vrot.slane %v1662, 4
  %v1665 = vshll.u32 %v1533, 16
  %v1667 = vrot.slane %v1665, 5
  %v1668 = vor.u32 %v1664, %v1667
  %v1669 = vrot.slane %v1668, 4
  %v1671 = vshll.u32 %v1534, 16
  %v1673 = vrot.slane %v1671, 5
  %v1674 = vsel %vm584, %v1669, %v1673
  %v1676 = vshrl.u32 %v1535, 16
  %v1678 = vrot.slane %v1676, 4
  %v1679 = vshll.u32 %v1535, 16
  %v1681 = vrot.slane %v1679, 5
  %v1682 = vor.u32 %v1678, %v1681
  %v1683 = vrot.slane %v1682, 4
  %v1685 = vshll.u32 %v1536, 16
  %v1687 = vrot.slane %v1685, 5
  %v1688 = vsel %vm584, %v1683, %v1687
  %v1690 = vshrl.u32 %v1537, 16
  %v1692 = vrot.slane %v1690, 4
  %v1693 = vshll.u32 %v1537, 16
  %v1695 = vrot.slane %v1693, 5
  %v1696 = vor.u32 %v1692, %v1695
  %v1697 = vrot.slane %v1696, 4
  %v1699 = vshll.u32 %v1538, 16
  %v1701 = vrot.slane %v1699, 5
  %v1702 = vsel %vm584, %v1697, %v1701
  %v1704 = vshrl.u32 %v1539, 16
  %v1706 = vrot.slane %v1704, 4
  %v1707 = vshll.u32 %v1539, 16
  %v1709 = vrot.slane %v1707, 5
  %v1710 = vor.u32 %v1706, %v1709
  %v1711 = vrot.slane %v1710, 4
  %v1713 = vshll.u32 %v1540, 16
  %v1715 = vrot.slane %v1713, 5
  %v1716 = vsel %vm584, %v1711, %v1715
  %v1718 = vshrl.u32 %v1541, 16
  %v1720 = vrot.slane %v1718, 4
  %v1721 = vshll.u32 %v1541, 16
  %v1723 = vrot.slane %v1721, 5
  %v1724 = vor.u32 %v1720, %v1723
  %v1725 = vrot.slane %v1724, 4
  %v1727 = vshll.u32 %v1542, 16
  %v1729 = vrot.slane %v1727, 5
  %v1730 = vsel %vm584, %v1725, %v1729
  %v1732 = vshrl.u32 %v1543, 16
  %v1734 = vrot.slane %v1732, 4
  %v1735 = vshll.u32 %v1543, 16
  %v1737 = vrot.slane %v1735, 5
  %v1738 = vor.u32 %v1734, %v1737
  %v1739 = vrot.slane %v1738, 4
  %v1741 = vshll.u32 %v1544, 16
  %v1743 = vrot.slane %v1741, 5
  %v1744 = vsel %vm584, %v1739, %v1743
  %v1746 = vshrl.u32 %v1545, 16
  %v1748 = vrot.slane %v1746, 4
  %v1749 = vshll.u32 %v1545, 16
  %v1751 = vrot.slane %v1749, 5
  %v1752 = vor.u32 %v1748, %v1751
  %v1753 = vrot.slane %v1752, 4
  %v1755 = vshll.u32 %v1546, 16
  %v1757 = vrot.slane %v1755, 5
  %v1758 = vsel %vm584, %v1753, %v1757
  %v1760 = vshrl.u32 %v1547, 16
  %v1762 = vrot.slane %v1760, 4
  %v1763 = vshll.u32 %v1547, 16
  %v1765 = vrot.slane %v1763, 5
  %v1766 = vor.u32 %v1762, %v1765
  %v1767 = vrot.slane %v1766, 4
  %v1769 = vshll.u32 %v1548, 16
  %v1771 = vrot.slane %v1769, 5
  %v1772 = vsel %vm584, %v1767, %v1771
  %1789 = vst [vmem:[#allocation3 + $0x1c] sm:$0xf] %v1562
  %1790 = vst [vmem:[#allocation3 + $0x40] sm:$0xf] %v1576
  %1791 = vst [vmem:[#allocation3 + $0x64] sm:$0xf] %v1590
  %1792 = vst [vmem:[#allocation3 + $0x88] sm:$0xf] %v1604
  %1793 = vst [vmem:[#allocation3 + $0xac] sm:$0xf] %v1618
  %1794 = vst [vmem:[#allocation3 + $0xd0] sm:$0xf] %v1632
  %1795 = vst [vmem:[#allocation3 + $0xf4] sm:$0xf] %v1646
  %1796 = vst [vmem:[#allocation3 + $0x118] sm:$0xf] %v1660
  %1797 = vst [vmem:[#allocation3 + $0x13c] sm:$0xf] %v1674
  %1798 = vst [vmem:[#allocation3 + $0x160] sm:$0xf] %v1688
  %1799 = vst [vmem:[#allocation3 + $0x184] sm:$0xf] %v1702
  %1800 = vst [vmem:[#allocation3 + $0x1a8] sm:$0xf] %v1716
  %1801 = vst [vmem:[#allocation3 + $0x1cc] sm:$0xf] %v1730
  %1802 = vst [vmem:[#allocation3 + $0x1f0] sm:$0xf] %v1744
  %1803 = vst [vmem:[#allocation3 + $0x214] sm:$0xf] %v1758
  %1804 = vst [vmem:[#allocation3 + $0x238] sm:$0xf] %v1772
  %v1805 = vld [vmem:[%s1484] sm:$0xe]
  %v1806 = vld [vmem:[%s1484 + $0x4] sm:$0x1]
  %v1807 = vld [vmem:[%s1484 + $0x8] sm:$0xe]
  %v1808 = vld [vmem:[%s1484 + $0xc] sm:$0x1]
  %v1809 = vld [vmem:[%s1484 + $0x10] sm:$0xe]
  %v1810 = vld [vmem:[%s1484 + $0x14] sm:$0x1]
  %v1811 = vld [vmem:[%s1484 + $0x18] sm:$0xe]
  %v1812 = vld [vmem:[%s1484 + $0x1c] sm:$0x1]
  %v1813 = vld [vmem:[%s1484 + $0x20] sm:$0xe]
  %v1814 = vld [vmem:[%s1484 + $0x24] sm:$0x1]
  %v1815 = vld [vmem:[%s1484 + $0x28] sm:$0xe]
  %v1816 = vld [vmem:[%s1484 + $0x2c] sm:$0x1]
  %v1817 = vld [vmem:[%s1484 + $0x30] sm:$0xe]
  %v1818 = vld [vmem:[%s1484 + $0x34] sm:$0x1]
  %v1819 = vld [vmem:[%s1484 + $0x38] sm:$0xe]
  %v1820 = vld [vmem:[%s1484 + $0x3c] sm:$0x1]
  %v1821 = vld [vmem:[%s1484 + $0x50] sm:$0xe]
  %v1822 = vld [vmem:[%s1484 + $0x54] sm:$0x1]
  %v1823 = vld [vmem:[%s1484 + $0x58] sm:$0xe]
  %v1824 = vld [vmem:[%s1484 + $0x5c] sm:$0x1]
  %v1825 = vld [vmem:[%s1484 + $0x60] sm:$0xe]
  %v1826 = vld [vmem:[%s1484 + $0x64] sm:$0x1]
  %v1827 = vld [vmem:[%s1484 + $0x68] sm:$0xe]
  %v1828 = vld [vmem:[%s1484 + $0x6c] sm:$0x1]
  %v1829 = vld [vmem:[%s1484 + $0x70] sm:$0xe]
  %v1830 = vld [vmem:[%s1484 + $0x74] sm:$0x1]
  %v1831 = vld [vmem:[%s1484 + $0x78] sm:$0xe]
  %v1832 = vld [vmem:[%s1484 + $0x7c] sm:$0x1]
  %v1833 = vld [vmem:[%s1484 + $0x80] sm:$0xe]
  %v1834 = vld [vmem:[%s1484 + $0x84] sm:$0x1]
  %v1835 = vld [vmem:[%s1484 + $0x88] sm:$0xe]
  %v1836 = vld [vmem:[%s1484 + $0x8c] sm:$0x1]
  %v1869 = vrot.slane %v1805, 5
  %v1870 = vrot.slane %v1869, 4
  %v1871 = vrot.slane %v1806, 5
  %v1872 = vsel %vm907, %v1870, %v1871
  %v1873 = vrot.slane %v1807, 5
  %v1874 = vrot.slane %v1873, 4
  %v1875 = vrot.slane %v1808, 5
  %v1876 = vsel %vm907, %v1874, %v1875
  %v1877 = vrot.slane %v1809, 5
  %v1878 = vrot.slane %v1877, 4
  %v1879 = vrot.slane %v1810, 5
  %v1880 = vsel %vm907, %v1878, %v1879
  %v1881 = vrot.slane %v1811, 5
  %v1882 = vrot.slane %v1881, 4
  %v1883 = vrot.slane %v1812, 5
  %v1884 = vsel %vm907, %v1882, %v1883
  %v1885 = vrot.slane %v1813, 5
  %v1886 = vrot.slane %v1885, 4
  %v1887 = vrot.slane %v1814, 5
  %v1888 = vsel %vm907, %v1886, %v1887
  %v1889 = vrot.slane %v1815, 5
  %v1890 = vrot.slane %v1889, 4
  %v1891 = vrot.slane %v1816, 5
  %v1892 = vsel %vm907, %v1890, %v1891
  %v1893 = vrot.slane %v1817, 5
  %v1894 = vrot.slane %v1893, 4
  %v1895 = vrot.slane %v1818, 5
  %v1896 = vsel %vm907, %v1894, %v1895
  %v1897 = vrot.slane %v1819, 5
  %v1898 = vrot.slane %v1897, 4
  %v1899 = vrot.slane %v1820, 5
  %v1900 = vsel %vm907, %v1898, %v1899
  %v1901 = vrot.slane %v1821, 5
  %v1902 = vrot.slane %v1901, 4
  %v1903 = vrot.slane %v1822, 5
  %v1904 = vsel %vm907, %v1902, %v1903
  %v1905 = vrot.slane %v1823, 5
  %v1906 = vrot.slane %v1905, 4
  %v1907 = vrot.slane %v1824, 5
  %v1908 = vsel %vm907, %v1906, %v1907
  %v1909 = vrot.slane %v1825, 5
  %v1910 = vrot.slane %v1909, 4
  %v1911 = vrot.slane %v1826, 5
  %v1912 = vsel %vm907, %v1910, %v1911
  %v1913 = vrot.slane %v1827, 5
  %v1914 = vrot.slane %v1913, 4
  %v1915 = vrot.slane %v1828, 5
  %v1916 = vsel %vm907, %v1914, %v1915
  %v1917 = vrot.slane %v1829, 5
  %v1918 = vrot.slane %v1917, 4
  %v1919 = vrot.slane %v1830, 5
  %v1920 = vsel %vm907, %v1918, %v1919
  %v1921 = vrot.slane %v1831, 5
  %v1922 = vrot.slane %v1921, 4
  %v1923 = vrot.slane %v1832, 5
  %v1924 = vsel %vm907, %v1922, %v1923
  %v1925 = vrot.slane %v1833, 5
  %v1926 = vrot.slane %v1925, 4
  %v1927 = vrot.slane %v1834, 5
  %v1928 = vsel %vm907, %v1926, %v1927
  %v1929 = vrot.slane %v1835, 5
  %v1930 = vrot.slane %v1929, 4
  %v1931 = vrot.slane %v1836, 5
  %v1932 = vsel %vm907, %v1930, %v1931
  %1949 = vst [vmem:[#allocation3 + $0x20] sm:$0xf] %v1872
  %1950 = vst [vmem:[#allocation3 + $0x44] sm:$0xf] %v1876
  %1951 = vst [vmem:[#allocation3 + $0x68] sm:$0xf] %v1880
  %1952 = vst [vmem:[#allocation3 + $0x8c] sm:$0xf] %v1884
  %1953 = vst [vmem:[#allocation3 + $0xb0] sm:$0xf] %v1888
  %1954 = vst [vmem:[#allocation3 + $0xd4] sm:$0xf] %v1892
  %1955 = vst [vmem:[#allocation3 + $0xf8] sm:$0xf] %v1896
  %1956 = vst [vmem:[#allocation3 + $0x11c] sm:$0xf] %v1900
  %1957 = vst [vmem:[#allocation3 + $0x140] sm:$0xf] %v1904
  %1958 = vst [vmem:[#allocation3 + $0x164] sm:$0xf] %v1908
  %1959 = vst [vmem:[#allocation3 + $0x188] sm:$0xf] %v1912
  %1960 = vst [vmem:[#allocation3 + $0x1ac] sm:$0xf] %v1916
  %1961 = vst [vmem:[#allocation3 + $0x1d0] sm:$0xf] %v1920
  %1962 = vst [vmem:[#allocation3 + $0x1f4] sm:$0xf] %v1924
  %1963 = vst [vmem:[#allocation3 + $0x218] sm:$0xf] %v1928
  %1964 = vst [vmem:[#allocation3 + $0x23c] sm:$0xf] %v1932
  %v1965 = vld [vmem:[#allocation3] sm:$0xff]
  %v1966 = vld [vmem:[#allocation3 + $0x8] sm:$0xff]
  %v1967 = vld [vmem:[#allocation3 + $0x10] sm:$0xff]
  %v1968 = vld [vmem:[#allocation3 + $0x18] sm:$0xff]
  %v1969 = vld [vmem:[#allocation3 + $0x20] sm:$0xf]
  %v1970 = vld [vmem:[#allocation3 + $0x24] sm:$0xff]
  %v1971 = vld [vmem:[#allocation3 + $0x2c] sm:$0xff]
  %v1972 = vld [vmem:[#allocation3 + $0x34] sm:$0xff]
  %v1973 = vld [vmem:[#allocation3 + $0x3c] sm:$0xff]
  %v1974 = vld [vmem:[#allocation3 + $0x44] sm:$0xf]
  %v1975 = vld [vmem:[#allocation3 + $0x48] sm:$0xff]
  %v1976 = vld [vmem:[#allocation3 + $0x50] sm:$0xff]
  %v1977 = vld [vmem:[#allocation3 + $0x58] sm:$0xff]
  %v1978 = vld [vmem:[#allocation3 + $0x60] sm:$0xff]
  %v1979 = vld [vmem:[#allocation3 + $0x68] sm:$0xf]
  %v1980 = vld [vmem:[#allocation3 + $0x6c] sm:$0xff]
  %v1981 = vld [vmem:[#allocation3 + $0x74] sm:$0xff]
  %v1982 = vld [vmem:[#allocation3 + $0x7c] sm:$0xff]
  %v1983 = vld [vmem:[#allocation3 + $0x84] sm:$0xff]
  %v1984 = vld [vmem:[#allocation3 + $0x8c] sm:$0xf]
  %v1985 = vld [vmem:[#allocation3 + $0x90] sm:$0xff]
  %v1986 = vld [vmem:[#allocation3 + $0x98] sm:$0xff]
  %v1987 = vld [vmem:[#allocation3 + $0xa0] sm:$0xff]
  %v1988 = vld [vmem:[#allocation3 + $0xa8] sm:$0xff]
  %v1989 = vld [vmem:[#allocation3 + $0xb0] sm:$0xf]
  %v1990 = vld [vmem:[#allocation3 + $0xb4] sm:$0xff]
  %v1991 = vld [vmem:[#allocation3 + $0xbc] sm:$0xff]
  %v1992 = vld [vmem:[#allocation3 + $0xc4] sm:$0xff]
  %v1993 = vld [vmem:[#allocation3 + $0xcc] sm:$0xff]
  %v1994 = vld [vmem:[#allocation3 + $0xd4] sm:$0xf]
  %v1995 = vld [vmem:[#allocation3 + $0xd8] sm:$0xff]
  %v1996 = vld [vmem:[#allocation3 + $0xe0] sm:$0xff]
  %v1997 = vld [vmem:[#allocation3 + $0xe8] sm:$0xff]
  %v1998 = vld [vmem:[#allocation3 + $0xf0] sm:$0xff]
  %v1999 = vld [vmem:[#allocation3 + $0xf8] sm:$0xf]
  %v2000 = vld [vmem:[#allocation3 + $0xfc] sm:$0xff]
  %v2001 = vld [vmem:[#allocation3 + $0x104] sm:$0xff]
  %v2002 = vld [vmem:[#allocation3 + $0x10c] sm:$0xff]
  %v2003 = vld [vmem:[#allocation3 + $0x114] sm:$0xff]
  %v2004 = vld [vmem:[#allocation3 + $0x11c] sm:$0xf]
  %v2005 = vld [vmem:[#allocation3 + $0x120] sm:$0xff]
  %v2006 = vld [vmem:[#allocation3 + $0x128] sm:$0xff]
  %v2007 = vld [vmem:[#allocation3 + $0x130] sm:$0xff]
  %v2008 = vld [vmem:[#allocation3 + $0x138] sm:$0xff]
  %v2009 = vld [vmem:[#allocation3 + $0x140] sm:$0xf]
  %v2010 = vld [vmem:[#allocation3 + $0x144] sm:$0xff]
  %v2011 = vld [vmem:[#allocation3 + $0x14c] sm:$0xff]
  %v2012 = vld [vmem:[#allocation3 + $0x154] sm:$0xff]
  %v2013 = vld [vmem:[#allocation3 + $0x15c] sm:$0xff]
  %v2014 = vld [vmem:[#allocation3 + $0x164] sm:$0xf]
  %v2015 = vld [vmem:[#allocation3 + $0x168] sm:$0xff]
  %v2016 = vld [vmem:[#allocation3 + $0x170] sm:$0xff]
  %v2017 = vld [vmem:[#allocation3 + $0x178] sm:$0xff]
  %v2018 = vld [vmem:[#allocation3 + $0x180] sm:$0xff]
  %v2019 = vld [vmem:[#allocation3 + $0x188] sm:$0xf]
  %v2020 = vld [vmem:[#allocation3 + $0x18c] sm:$0xff]
  %v2021 = vld [vmem:[#allocation3 + $0x194] sm:$0xff]
  %v2022 = vld [vmem:[#allocation3 + $0x19c] sm:$0xff]
  %v2023 = vld [vmem:[#allocation3 + $0x1a4] sm:$0xff]
  %v2024 = vld [vmem:[#allocation3 + $0x1ac] sm:$0xf]
  %v2025 = vld [vmem:[#allocation3 + $0x1b0] sm:$0xff]
  %v2026 = vld [vmem:[#allocation3 + $0x1b8] sm:$0xff]
  %v2027 = vld [vmem:[#allocation3 + $0x1c0] sm:$0xff]
  %v2028 = vld [vmem:[#allocation3 + $0x1c8] sm:$0xff]
  %v2029 = vld [vmem:[#allocation3 + $0x1d0] sm:$0xf]
  %v2030 = vld [vmem:[#allocation3 + $0x1d4] sm:$0xff]
  %v2031 = vld [vmem:[#allocation3 + $0x1dc] sm:$0xff]
  %v2032 = vld [vmem:[#allocation3 + $0x1e4] sm:$0xff]
  %v2033 = vld [vmem:[#allocation3 + $0x1ec] sm:$0xff]
  %v2034 = vld [vmem:[#allocation3 + $0x1f4] sm:$0xf]
  %v2035 = vld [vmem:[#allocation3 + $0x1f8] sm:$0xff]
  %v2036 = vld [vmem:[#allocation3 + $0x200] sm:$0xff]
  %v2037 = vld [vmem:[#allocation3 + $0x208] sm:$0xff]
  %v2038 = vld [vmem:[#allocation3 + $0x210] sm:$0xff]
  %v2039 = vld [vmem:[#allocation3 + $0x218] sm:$0xf]
  %v2040 = vld [vmem:[#allocation3 + $0x21c] sm:$0xff]
  %v2041 = vld [vmem:[#allocation3 + $0x224] sm:$0xff]
  %v2042 = vld [vmem:[#allocation3 + $0x22c] sm:$0xff]
  %v2043 = vld [vmem:[#allocation3 + $0x234] sm:$0xff]
  %v2044 = vld [vmem:[#allocation3 + $0x23c] sm:$0xf]
  %v2045 = vld [vmem:[%s1] sm:$0xf]
  %v2046 = vld [vmem:[%s1 + $0x4] sm:$0xf]
  %v2047 = vld [vmem:[%s1 + $0x8] sm:$0xf]
  %v2048 = vld [vmem:[%s1 + $0xc] sm:$0xf]
  %v2049 = vld [vmem:[%s1 + $0x10] sm:$0xf]
  %v2050 = vld [vmem:[%s1 + $0x14] sm:$0xf]
  %v2051 = vld [vmem:[%s1 + $0x18] sm:$0xf]
  %v2052 = vld [vmem:[%s1 + $0x1c] sm:$0xf]
  %v2053 = vld [vmem:[%s1 + $0x20] sm:$0xf]
  %v2054 = vld [vmem:[%s1 + $0x24] sm:$0xf]
  %v2055 = vld [vmem:[%s1 + $0x28] sm:$0xf]
  %v2056 = vld [vmem:[%s1 + $0x2c] sm:$0xf]
  %v2057 = vld [vmem:[%s1 + $0x30] sm:$0xf]
  %v2058 = vld [vmem:[%s1 + $0x34] sm:$0xf]
  %v2059 = vld [vmem:[%s1 + $0x38] sm:$0xf]
  %v2060 = vld [vmem:[%s1 + $0x3c] sm:$0xf]
  %v2061 = vld [vmem:[%s1 + $0x40] sm:$0xf]
  %v2062 = vld [vmem:[%s1 + $0x44] sm:$0xf]
  %v2063 = vld [vmem:[%s1 + $0x48] sm:$0xf]
  %v2064 = vld [vmem:[%s1 + $0x4c] sm:$0xf]
  %v2065 = vld [vmem:[%s1 + $0x50] sm:$0xf]
  %v2066 = vld [vmem:[%s1 + $0x54] sm:$0xf]
  %v2067 = vld [vmem:[%s1 + $0x58] sm:$0xf]
  %v2068 = vld [vmem:[%s1 + $0x5c] sm:$0xf]
  %v2069 = vld [vmem:[%s1 + $0x60] sm:$0xf]
  %v2070 = vld [vmem:[%s1 + $0x64] sm:$0xf]
  %v2071 = vld [vmem:[%s1 + $0x68] sm:$0xf]
  %v2072 = vld [vmem:[%s1 + $0x6c] sm:$0xf]
  %v2073 = vld [vmem:[%s1 + $0x70] sm:$0xf]
  %v2074 = vld [vmem:[%s1 + $0x74] sm:$0xf]
  %v2075 = vld [vmem:[%s1 + $0x78] sm:$0xf]
  %v2076 = vld [vmem:[%s1 + $0x7c] sm:$0xf]
  %v2077 = vld [vmem:[%s1 + $0x80] sm:$0xf]
  %v2078 = vld [vmem:[%s1 + $0x84] sm:$0xf]
  %v2079 = vld [vmem:[%s1 + $0x88] sm:$0xf]
  %v2080 = vld [vmem:[%s1 + $0x8c] sm:$0xf]
  %v2081 = vld [vmem:[%s1 + $0x90] sm:$0xf]
  %v2082 = vld [vmem:[%s1 + $0x94] sm:$0xf]
  %v2083 = vld [vmem:[%s1 + $0x98] sm:$0xf]
  %v2084 = vld [vmem:[%s1 + $0x9c] sm:$0xf]
  %v2085 = vld [vmem:[%s1 + $0xa0] sm:$0xf]
  %v2086 = vld [vmem:[%s1 + $0xa4] sm:$0xf]
  %v2087 = vld [vmem:[%s1 + $0xa8] sm:$0xf]
  %v2088 = vld [vmem:[%s1 + $0xac] sm:$0xf]
  %v2089 = vld [vmem:[%s1 + $0xb0] sm:$0xf]
  %v2090 = vld [vmem:[%s1 + $0xb4] sm:$0xf]
  %v2091 = vld [vmem:[%s1 + $0xb8] sm:$0xf]
  %v2092 = vld [vmem:[%s1 + $0xbc] sm:$0xf]
  %v2093 = vld [vmem:[%s1 + $0xc0] sm:$0xf]
  %v2094 = vld [vmem:[%s1 + $0xc4] sm:$0xf]
  %v2095 = vld [vmem:[%s1 + $0xc8] sm:$0xf]
  %v2096 = vld [vmem:[%s1 + $0xcc] sm:$0xf]
  %v2097 = vld [vmem:[%s1 + $0xd0] sm:$0xf]
  %v2098 = vld [vmem:[%s1 + $0xd4] sm:$0xf]
  %v2099 = vld [vmem:[%s1 + $0xd8] sm:$0xf]
  %v2100 = vld [vmem:[%s1 + $0xdc] sm:$0xf]
  %v2101 = vld [vmem:[%s1 + $0xe0] sm:$0xf]
  %v2102 = vld [vmem:[%s1 + $0xe4] sm:$0xf]
  %v2103 = vld [vmem:[%s1 + $0xe8] sm:$0xf]
  %v2104 = vld [vmem:[%s1 + $0xec] sm:$0xf]
  %v2105 = vld [vmem:[%s1 + $0xf0] sm:$0xf]
  %v2106 = vld [vmem:[%s1 + $0xf4] sm:$0xf]
  %v2107 = vld [vmem:[%s1 + $0xf8] sm:$0xf]
  %v2108 = vld [vmem:[%s1 + $0xfc] sm:$0xf]
  %v2109 = vld [vmem:[%s1 + $0x100] sm:$0xf]
  %v2110 = vld [vmem:[%s1 + $0x104] sm:$0xf]
  %v2111 = vld [vmem:[%s1 + $0x108] sm:$0xf]
  %v2112 = vld [vmem:[%s1 + $0x10c] sm:$0xf]
  %v2113 = vld [vmem:[%s1 + $0x110] sm:$0xf]
  %v2114 = vld [vmem:[%s1 + $0x114] sm:$0xf]
  %v2115 = vld [vmem:[%s1 + $0x118] sm:$0xf]
  %v2116 = vld [vmem:[%s1 + $0x11c] sm:$0xf]
  %v2117 = vld [vmem:[%s1 + $0x120] sm:$0xf]
  %v2118 = vld [vmem:[%s1 + $0x124] sm:$0xf]
  %v2119 = vld [vmem:[%s1 + $0x128] sm:$0xf]
  %v2120 = vld [vmem:[%s1 + $0x12c] sm:$0xf]
  %v2121 = vld [vmem:[%s1 + $0x130] sm:$0xf]
  %v2122 = vld [vmem:[%s1 + $0x134] sm:$0xf]
  %v2123 = vld [vmem:[%s1 + $0x138] sm:$0xf]
  %v2124 = vld [vmem:[%s1 + $0x13c] sm:$0xf]
  %v2125 = vld [vmem:[%s1 + $0x140] sm:$0xf]
  %v2126 = vld [vmem:[%s1 + $0x144] sm:$0xf]
  %v2127 = vld [vmem:[%s1 + $0x148] sm:$0xf]
  %v2128 = vld [vmem:[%s1 + $0x14c] sm:$0xf]
  %v2129 = vld [vmem:[%s1 + $0x150] sm:$0xf]
  %v2130 = vld [vmem:[%s1 + $0x154] sm:$0xf]
  %v2131 = vld [vmem:[%s1 + $0x158] sm:$0xf]
  %v2132 = vld [vmem:[%s1 + $0x15c] sm:$0xf]
  %v2133 = vld [vmem:[%s1 + $0x160] sm:$0xf]
  %v2134 = vld [vmem:[%s1 + $0x164] sm:$0xf]
  %v2135 = vld [vmem:[%s1 + $0x168] sm:$0xf]
  %v2136 = vld [vmem:[%s1 + $0x16c] sm:$0xf]
  %v2137 = vld [vmem:[%s1 + $0x170] sm:$0xf]
  %v2138 = vld [vmem:[%s1 + $0x174] sm:$0xf]
  %v2139 = vld [vmem:[%s1 + $0x178] sm:$0xf]
  %v2140 = vld [vmem:[%s1 + $0x17c] sm:$0xf]
  %v2141 = vld [vmem:[%s1 + $0x180] sm:$0xf]
  %v2142 = vld [vmem:[%s1 + $0x184] sm:$0xf]
  %v2143 = vld [vmem:[%s1 + $0x188] sm:$0xf]
  %v2144 = vld [vmem:[%s1 + $0x18c] sm:$0xf]
  %v2145 = vld [vmem:[%s1 + $0x190] sm:$0xf]
  %v2146 = vld [vmem:[%s1 + $0x194] sm:$0xf]
  %v2147 = vld [vmem:[%s1 + $0x198] sm:$0xf]
  %v2148 = vld [vmem:[%s1 + $0x19c] sm:$0xf]
  %v2149 = vld [vmem:[%s1 + $0x1a0] sm:$0xf]
  %v2150 = vld [vmem:[%s1 + $0x1a4] sm:$0xf]
  %v2151 = vld [vmem:[%s1 + $0x1a8] sm:$0xf]
  %v2152 = vld [vmem:[%s1 + $0x1ac] sm:$0xf]
  %v2153 = vld [vmem:[%s1 + $0x1b0] sm:$0xf]
  %v2154 = vld [vmem:[%s1 + $0x1b4] sm:$0xf]
  %v2155 = vld [vmem:[%s1 + $0x1b8] sm:$0xf]
  %v2156 = vld [vmem:[%s1 + $0x1bc] sm:$0xf]
  %v2157 = vld [vmem:[%s1 + $0x1c0] sm:$0xf]
  %v2158 = vld [vmem:[%s1 + $0x1c4] sm:$0xf]
  %v2159 = vld [vmem:[%s1 + $0x1c8] sm:$0xf]
  %v2160 = vld [vmem:[%s1 + $0x1cc] sm:$0xf]
  %v2161 = vld [vmem:[%s1 + $0x1d0] sm:$0xf]
  %v2162 = vld [vmem:[%s1 + $0x1d4] sm:$0xf]
  %v2163 = vld [vmem:[%s1 + $0x1d8] sm:$0xf]
  %v2164 = vld [vmem:[%s1 + $0x1dc] sm:$0xf]
  %v2165 = vld [vmem:[%s1 + $0x1e0] sm:$0xf]
  %v2166 = vld [vmem:[%s1 + $0x1e4] sm:$0xf]
  %v2167 = vld [vmem:[%s1 + $0x1e8] sm:$0xf]
  %v2168 = vld [vmem:[%s1 + $0x1ec] sm:$0xf]
  %v2169 = vld [vmem:[%s1 + $0x1f0] sm:$0xf]
  %v2170 = vld [vmem:[%s1 + $0x1f4] sm:$0xf]
  %v2171 = vld [vmem:[%s1 + $0x1f8] sm:$0xf]
  %v2172 = vld [vmem:[%s1 + $0x1fc] sm:$0xf]
  %v2173 = vld [vmem:[%s1 + $0x200] sm:$0xf]
  %v2174 = vld [vmem:[%s1 + $0x204] sm:$0xf]
  %v2175 = vld [vmem:[%s1 + $0x208] sm:$0xf]
  %v2176 = vld [vmem:[%s1 + $0x20c] sm:$0xf]
  %v2177 = vld [vmem:[%s1 + $0x210] sm:$0xf]
  %v2178 = vld [vmem:[%s1 + $0x214] sm:$0xf]
  %v2179 = vld [vmem:[%s1 + $0x218] sm:$0xf]
  %v2180 = vld [vmem:[%s1 + $0x21c] sm:$0xf]
  %v2181 = vld [vmem:[%s1 + $0x220] sm:$0xf]
  %v2182 = vld [vmem:[%s1 + $0x224] sm:$0xf]
  %v2183 = vld [vmem:[%s1 + $0x228] sm:$0xf]
  %v2184 = vld [vmem:[%s1 + $0x22c] sm:$0xf]
  %v2185 = vld [vmem:[%s1 + $0x230] sm:$0xf]
  %v2186 = vld [vmem:[%s1 + $0x234] sm:$0xf]
  %v2187 = vld [vmem:[%s1 + $0x238] sm:$0xf]
  %v2188 = vld [vmem:[%s1 + $0x23c] sm:$0xf]
  %v2269 = vunpack.c.l.b16 %v1965
  %v2270 = vunpack.c.h.b16 %v1965
  %v2271 = vunpack.c.l.b16 %v1966
  %v2272 = vunpack.c.h.b16 %v1966
  %v2273 = vunpack.c.l.b16 %v1967
  %v2274 = vunpack.c.h.b16 %v1967
  %v2275 = vunpack.c.l.b16 %v1968
  %v2276 = vunpack.c.h.b16 %v1968
  %v2277 = vunpack.c.l.b16 %v1969
  %v2278 = vunpack.c.l.b16 %v1970
  %v2279 = vunpack.c.h.b16 %v1970
  %v2280 = vunpack.c.l.b16 %v1971
  %v2281 = vunpack.c.h.b16 %v1971
  %v2282 = vunpack.c.l.b16 %v1972
  %v2283 = vunpack.c.h.b16 %v1972
  %v2284 = vunpack.c.l.b16 %v1973
  %v2285 = vunpack.c.h.b16 %v1973
  %v2286 = vunpack.c.l.b16 %v1974
  %v2287 = vunpack.c.l.b16 %v1975
  %v2288 = vunpack.c.h.b16 %v1975
  %v2289 = vunpack.c.l.b16 %v1976
  %v2290 = vunpack.c.h.b16 %v1976
  %v2291 = vunpack.c.l.b16 %v1977
  %v2292 = vunpack.c.h.b16 %v1977
  %v2293 = vunpack.c.l.b16 %v1978
  %v2294 = vunpack.c.h.b16 %v1978
  %v2295 = vunpack.c.l.b16 %v1979
  %v2296 = vunpack.c.l.b16 %v1980
  %v2297 = vunpack.c.h.b16 %v1980
  %v2298 = vunpack.c.l.b16 %v1981
  %v2299 = vunpack.c.h.b16 %v1981
  %v2300 = vunpack.c.l.b16 %v1982
  %v2301 = vunpack.c.h.b16 %v1982
  %v2302 = vunpack.c.l.b16 %v1983
  %v2303 = vunpack.c.h.b16 %v1983
  %v2304 = vunpack.c.l.b16 %v1984
  %v2305 = vunpack.c.l.b16 %v1985
  %v2306 = vunpack.c.h.b16 %v1985
  %v2307 = vunpack.c.l.b16 %v1986
  %v2308 = vunpack.c.h.b16 %v1986
  %v2309 = vunpack.c.l.b16 %v1987
  %v2310 = vunpack.c.h.b16 %v1987
  %v2311 = vunpack.c.l.b16 %v1988
  %v2312 = vunpack.c.h.b16 %v1988
  %v2313 = vunpack.c.l.b16 %v1989
  %v2314 = vunpack.c.l.b16 %v1990
  %v2315 = vunpack.c.h.b16 %v1990
  %v2316 = vunpack.c.l.b16 %v1991
  %v2317 = vunpack.c.h.b16 %v1991
  %v2318 = vunpack.c.l.b16 %v1992
  %v2319 = vunpack.c.h.b16 %v1992
  %v2320 = vunpack.c.l.b16 %v1993
  %v2321 = vunpack.c.h.b16 %v1993
  %v2322 = vunpack.c.l.b16 %v1994
  %v2323 = vunpack.c.l.b16 %v1995
  %v2324 = vunpack.c.h.b16 %v1995
  %v2325 = vunpack.c.l.b16 %v1996
  %v2326 = vunpack.c.h.b16 %v1996
  %v2327 = vunpack.c.l.b16 %v1997
  %v2328 = vunpack.c.h.b16 %v1997
  %v2329 = vunpack.c.l.b16 %v1998
  %v2330 = vunpack.c.h.b16 %v1998
  %v2331 = vunpack.c.l.b16 %v1999
  %v2332 = vunpack.c.l.b16 %v2000
  %v2333 = vunpack.c.h.b16 %v2000
  %v2334 = vunpack.c.l.b16 %v2001
  %v2335 = vunpack.c.h.b16 %v2001
  %v2336 = vunpack.c.l.b16 %v2002
  %v2337 = vunpack.c.h.b16 %v2002
  %v2338 = vunpack.c.l.b16 %v2003
  %v2339 = vunpack.c.h.b16 %v2003
  %v2340 = vunpack.c.l.b16 %v2004
  %v2341 = vunpack.c.l.b16 %v2005
  %v2342 = vunpack.c.h.b16 %v2005
  %v2343 = vunpack.c.l.b16 %v2006
  %v2344 = vunpack.c.h.b16 %v2006
  %v2345 = vunpack.c.l.b16 %v2007
  %v2346 = vunpack.c.h.b16 %v2007
  %v2347 = vunpack.c.l.b16 %v2008
  %v2348 = vunpack.c.h.b16 %v2008
  %v2349 = vunpack.c.l.b16 %v2009
  %v2350 = vunpack.c.l.b16 %v2010
  %v2351 = vunpack.c.h.b16 %v2010
  %v2352 = vunpack.c.l.b16 %v2011
  %v2353 = vunpack.c.h.b16 %v2011
  %v2354 = vunpack.c.l.b16 %v2012
  %v2355 = vunpack.c.h.b16 %v2012
  %v2356 = vunpack.c.l.b16 %v2013
  %v2357 = vunpack.c.h.b16 %v2013
  %v2358 = vunpack.c.l.b16 %v2014
  %v2359 = vunpack.c.l.b16 %v2015
  %v2360 = vunpack.c.h.b16 %v2015
  %v2361 = vunpack.c.l.b16 %v2016
  %v2362 = vunpack.c.h.b16 %v2016
  %v2363 = vunpack.c.l.b16 %v2017
  %v2364 = vunpack.c.h.b16 %v2017
  %v2365 = vunpack.c.l.b16 %v2018
  %v2366 = vunpack.c.h.b16 %v2018
  %v2367 = vunpack.c.l.b16 %v2019
  %v2368 = vunpack.c.l.b16 %v2020
  %v2369 = vunpack.c.h.b16 %v2020
  %v2370 = vunpack.c.l.b16 %v2021
  %v2371 = vunpack.c.h.b16 %v2021
  %v2372 = vunpack.c.l.b16 %v2022
  %v2373 = vunpack.c.h.b16 %v2022
  %v2374 = vunpack.c.l.b16 %v2023
  %v2375 = vunpack.c.h.b16 %v2023
  %v2376 = vunpack.c.l.b16 %v2024
  %v2377 = vunpack.c.l.b16 %v2025
  %v2378 = vunpack.c.h.b16 %v2025
  %v2379 = vunpack.c.l.b16 %v2026
  %v2380 = vunpack.c.h.b16 %v2026
  %v2381 = vunpack.c.l.b16 %v2027
  %v2382 = vunpack.c.h.b16 %v2027
  %v2383 = vunpack.c.l.b16 %v2028
  %v2384 = vunpack.c.h.b16 %v2028
  %v2385 = vunpack.c.l.b16 %v2029
  %v2386 = vunpack.c.l.b16 %v2030
  %v2387 = vunpack.c.h.b16 %v2030
  %v2388 = vunpack.c.l.b16 %v2031
  %v2389 = vunpack.c.h.b16 %v2031
  %v2390 = vunpack.c.l.b16 %v2032
  %v2391 = vunpack.c.h.b16 %v2032
  %v2392 = vunpack.c.l.b16 %v2033
  %v2393 = vunpack.c.h.b16 %v2033
  %v2394 = vunpack.c.l.b16 %v2034
  %v2395 = vunpack.c.l.b16 %v2035
  %v2396 = vunpack.c.h.b16 %v2035
  %v2397 = vunpack.c.l.b16 %v2036
  %v2398 = vunpack.c.h.b16 %v2036
  %v2399 = vunpack.c.l.b16 %v2037
  %v2400 = vunpack.c.h.b16 %v2037
  %v2401 = vunpack.c.l.b16 %v2038
  %v2402 = vunpack.c.h.b16 %v2038
  %v2403 = vunpack.c.l.b16 %v2039
  %v2404 = vunpack.c.l.b16 %v2040
  %v2405 = vunpack.c.h.b16 %v2040
  %v2406 = vunpack.c.l.b16 %v2041
  %v2407 = vunpack.c.h.b16 %v2041
  %v2408 = vunpack.c.l.b16 %v2042
  %v2409 = vunpack.c.h.b16 %v2042
  %v2410 = vunpack.c.l.b16 %v2043
  %v2411 = vunpack.c.h.b16 %v2043
  %v2412 = vunpack.c.l.b16 %v2044
  %v2413 = vpack.c.b16 %v2278, %v2269
  %v2414 = vpack.c.b16 %v2279, %v2270
  %v2415 = vpack.c.b16 %v2280, %v2271
  %v2416 = vpack.c.b16 %v2281, %v2272
  %v2417 = vpack.c.b16 %v2282, %v2273
  %v2418 = vpack.c.b16 %v2283, %v2274
  %v2419 = vpack.c.b16 %v2284, %v2275
  %v2420 = vpack.c.b16 %v2285, %v2276
  %v2421 = vpack.c.b16 %v2286, %v2277
  %v2422 = vpack.c.b16 %v2296, %v2287
  %v2423 = vpack.c.b16 %v2297, %v2288
  %v2424 = vpack.c.b16 %v2298, %v2289
  %v2425 = vpack.c.b16 %v2299, %v2290
  %v2426 = vpack.c.b16 %v2300, %v2291
  %v2427 = vpack.c.b16 %v2301, %v2292
  %v2428 = vpack.c.b16 %v2302, %v2293
  %v2429 = vpack.c.b16 %v2303, %v2294
  %v2430 = vpack.c.b16 %v2304, %v2295
  %v2431 = vpack.c.b16 %v2314, %v2305
  %v2432 = vpack.c.b16 %v2315, %v2306
  %v2433 = vpack.c.b16 %v2316, %v2307
  %v2434 = vpack.c.b16 %v2317, %v2308
  %v2435 = vpack.c.b16 %v2318, %v2309
  %v2436 = vpack.c.b16 %v2319, %v2310
  %v2437 = vpack.c.b16 %v2320, %v2311
  %v2438 = vpack.c.b16 %v2321, %v2312
  %v2439 = vpack.c.b16 %v2322, %v2313
  %v2440 = vpack.c.b16 %v2332, %v2323
  %v2441 = vpack.c.b16 %v2333, %v2324
  %v2442 = vpack.c.b16 %v2334, %v2325
  %v2443 = vpack.c.b16 %v2335, %v2326
  %v2444 = vpack.c.b16 %v2336, %v2327
  %v2445 = vpack.c.b16 %v2337, %v2328
  %v2446 = vpack.c.b16 %v2338, %v2329
  %v2447 = vpack.c.b16 %v2339, %v2330
  %v2448 = vpack.c.b16 %v2340, %v2331
  %v2449 = vpack.c.b16 %v2350, %v2341
  %v2450 = vpack.c.b16 %v2351, %v2342
  %v2451 = vpack.c.b16 %v2352, %v2343
  %v2452 = vpack.c.b16 %v2353, %v2344
  %v2453 = vpack.c.b16 %v2354, %v2345
  %v2454 = vpack.c.b16 %v2355, %v2346
  %v2455 = vpack.c.b16 %v2356, %v2347
  %v2456 = vpack.c.b16 %v2357, %v2348
  %v2457 = vpack.c.b16 %v2358, %v2349
  %v2458 = vpack.c.b16 %v2368, %v2359
  %v2459 = vpack.c.b16 %v2369, %v2360
  %v2460 = vpack.c.b16 %v2370, %v2361
  %v2461 = vpack.c.b16 %v2371, %v2362
  %v2462 = vpack.c.b16 %v2372, %v2363
  %v2463 = vpack.c.b16 %v2373, %v2364
  %v2464 = vpack.c.b16 %v2374, %v2365
  %v2465 = vpack.c.b16 %v2375, %v2366
  %v2466 = vpack.c.b16 %v2376, %v2367
  %v2467 = vpack.c.b16 %v2386, %v2377
  %v2468 = vpack.c.b16 %v2387, %v2378
  %v2469 = vpack.c.b16 %v2388, %v2379
  %v2470 = vpack.c.b16 %v2389, %v2380
  %v2471 = vpack.c.b16 %v2390, %v2381
  %v2472 = vpack.c.b16 %v2391, %v2382
  %v2473 = vpack.c.b16 %v2392, %v2383
  %v2474 = vpack.c.b16 %v2393, %v2384
  %v2475 = vpack.c.b16 %v2394, %v2385
  %v2476 = vpack.c.b16 %v2404, %v2395
  %v2477 = vpack.c.b16 %v2405, %v2396
  %v2478 = vpack.c.b16 %v2406, %v2397
  %v2479 = vpack.c.b16 %v2407, %v2398
  %v2480 = vpack.c.b16 %v2408, %v2399
  %v2481 = vpack.c.b16 %v2409, %v2400
  %v2482 = vpack.c.b16 %v2410, %v2401
  %v2483 = vpack.c.b16 %v2411, %v2402
  %v2484 = vpack.c.b16 %v2412, %v2403
  %v2701 = vunpack.c.l.b16 %v2045
  %v2702 = vunpack.c.l.b16 %v2046
  %v2703 = vunpack.c.l.b16 %v2047
  %v2704 = vunpack.c.l.b16 %v2048
  %v2705 = vunpack.c.l.b16 %v2049
  %v2706 = vunpack.c.l.b16 %v2050
  %v2707 = vunpack.c.l.b16 %v2051
  %v2708 = vunpack.c.l.b16 %v2052
  %v2709 = vunpack.c.l.b16 %v2053
  %v2710 = vunpack.c.l.b16 %v2054
  %v2711 = vunpack.c.l.b16 %v2055
  %v2712 = vunpack.c.l.b16 %v2056
  %v2713 = vunpack.c.l.b16 %v2057
  %v2714 = vunpack.c.l.b16 %v2058
  %v2715 = vunpack.c.l.b16 %v2059
  %v2716 = vunpack.c.l.b16 %v2060
  %v2717 = vunpack.c.l.b16 %v2061
  %v2718 = vunpack.c.l.b16 %v2062
  %v2719 = vunpack.c.l.b16 %v2063
  %v2720 = vunpack.c.l.b16 %v2064
  %v2721 = vunpack.c.l.b16 %v2065
  %v2722 = vunpack.c.l.b16 %v2066
  %v2723 = vunpack.c.l.b16 %v2067
  %v2724 = vunpack.c.l.b16 %v2068
  %v2725 = vunpack.c.l.b16 %v2069
  %v2726 = vunpack.c.l.b16 %v2070
  %v2727 = vunpack.c.l.b16 %v2071
  %v2728 = vunpack.c.l.b16 %v2072
  %v2729 = vunpack.c.l.b16 %v2073
  %v2730 = vunpack.c.l.b16 %v2074
  %v2731 = vunpack.c.l.b16 %v2075
  %v2732 = vunpack.c.l.b16 %v2076
  %v2733 = vunpack.c.l.b16 %v2077
  %v2734 = vunpack.c.l.b16 %v2078
  %v2735 = vunpack.c.l.b16 %v2079
  %v2736 = vunpack.c.l.b16 %v2080
  %v2737 = vunpack.c.l.b16 %v2081
  %v2738 = vunpack.c.l.b16 %v2082
  %v2739 = vunpack.c.l.b16 %v2083
  %v2740 = vunpack.c.l.b16 %v2084
  %v2741 = vunpack.c.l.b16 %v2085
  %v2742 = vunpack.c.l.b16 %v2086
  %v2743 = vunpack.c.l.b16 %v2087
  %v2744 = vunpack.c.l.b16 %v2088
  %v2745 = vunpack.c.l.b16 %v2089
  %v2746 = vunpack.c.l.b16 %v2090
  %v2747 = vunpack.c.l.b16 %v2091
  %v2748 = vunpack.c.l.b16 %v2092
  %v2749 = vunpack.c.l.b16 %v2093
  %v2750 = vunpack.c.l.b16 %v2094
  %v2751 = vunpack.c.l.b16 %v2095
  %v2752 = vunpack.c.l.b16 %v2096
  %v2753 = vunpack.c.l.b16 %v2097
  %v2754 = vunpack.c.l.b16 %v2098
  %v2755 = vunpack.c.l.b16 %v2099
  %v2756 = vunpack.c.l.b16 %v2100
  %v2757 = vunpack.c.l.b16 %v2101
  %v2758 = vunpack.c.l.b16 %v2102
  %v2759 = vunpack.c.l.b16 %v2103
  %v2760 = vunpack.c.l.b16 %v2104
  %v2761 = vunpack.c.l.b16 %v2105
  %v2762 = vunpack.c.l.b16 %v2106
  %v2763 = vunpack.c.l.b16 %v2107
  %v2764 = vunpack.c.l.b16 %v2108
  %v2765 = vunpack.c.l.b16 %v2109
  %v2766 = vunpack.c.l.b16 %v2110
  %v2767 = vunpack.c.l.b16 %v2111
  %v2768 = vunpack.c.l.b16 %v2112
  %v2769 = vunpack.c.l.b16 %v2113
  %v2770 = vunpack.c.l.b16 %v2114
  %v2771 = vunpack.c.l.b16 %v2115
  %v2772 = vunpack.c.l.b16 %v2116
  %v2773 = vunpack.c.l.b16 %v2117
  %v2774 = vunpack.c.l.b16 %v2118
  %v2775 = vunpack.c.l.b16 %v2119
  %v2776 = vunpack.c.l.b16 %v2120
  %v2777 = vunpack.c.l.b16 %v2121
  %v2778 = vunpack.c.l.b16 %v2122
  %v2779 = vunpack.c.l.b16 %v2123
  %v2780 = vunpack.c.l.b16 %v2124
  %v2781 = vunpack.c.l.b16 %v2125
  %v2782 = vunpack.c.l.b16 %v2126
  %v2783 = vunpack.c.l.b16 %v2127
  %v2784 = vunpack.c.l.b16 %v2128
  %v2785 = vunpack.c.l.b16 %v2129
  %v2786 = vunpack.c.l.b16 %v2130
  %v2787 = vunpack.c.l.b16 %v2131
  %v2788 = vunpack.c.l.b16 %v2132
  %v2789 = vunpack.c.l.b16 %v2133
  %v2790 = vunpack.c.l.b16 %v2134
  %v2791 = vunpack.c.l.b16 %v2135
  %v2792 = vunpack.c.l.b16 %v2136
  %v2793 = vunpack.c.l.b16 %v2137
  %v2794 = vunpack.c.l.b16 %v2138
  %v2795 = vunpack.c.l.b16 %v2139
  %v2796 = vunpack.c.l.b16 %v2140
  %v2797 = vunpack.c.l.b16 %v2141
  %v2798 = vunpack.c.l.b16 %v2142
  %v2799 = vunpack.c.l.b16 %v2143
  %v2800 = vunpack.c.l.b16 %v2144
  %v2801 = vunpack.c.l.b16 %v2145
  %v2802 = vunpack.c.l.b16 %v2146
  %v2803 = vunpack.c.l.b16 %v2147
  %v2804 = vunpack.c.l.b16 %v2148
  %v2805 = vunpack.c.l.b16 %v2149
  %v2806 = vunpack.c.l.b16 %v2150
  %v2807 = vunpack.c.l.b16 %v2151
  %v2808 = vunpack.c.l.b16 %v2152
  %v2809 = vunpack.c.l.b16 %v2153
  %v2810 = vunpack.c.l.b16 %v2154
  %v2811 = vunpack.c.l.b16 %v2155
  %v2812 = vunpack.c.l.b16 %v2156
  %v2813 = vunpack.c.l.b16 %v2157
  %v2814 = vunpack.c.l.b16 %v2158
  %v2815 = vunpack.c.l.b16 %v2159
  %v2816 = vunpack.c.l.b16 %v2160
  %v2817 = vunpack.c.l.b16 %v2161
  %v2818 = vunpack.c.l.b16 %v2162
  %v2819 = vunpack.c.l.b16 %v2163
  %v2820 = vunpack.c.l.b16 %v2164
  %v2821 = vunpack.c.l.b16 %v2165
  %v2822 = vunpack.c.l.b16 %v2166
  %v2823 = vunpack.c.l.b16 %v2167
  %v2824 = vunpack.c.l.b16 %v2168
  %v2825 = vunpack.c.l.b16 %v2169
  %v2826 = vunpack.c.l.b16 %v2170
  %v2827 = vunpack.c.l.b16 %v2171
  %v2828 = vunpack.c.l.b16 %v2172
  %v2829 = vunpack.c.l.b16 %v2173
  %v2830 = vunpack.c.l.b16 %v2174
  %v2831 = vunpack.c.l.b16 %v2175
  %v2832 = vunpack.c.l.b16 %v2176
  %v2833 = vunpack.c.l.b16 %v2177
  %v2834 = vunpack.c.l.b16 %v2178
  %v2835 = vunpack.c.l.b16 %v2179
  %v2836 = vunpack.c.l.b16 %v2180
  %v2837 = vunpack.c.l.b16 %v2181
  %v2838 = vunpack.c.l.b16 %v2182
  %v2839 = vunpack.c.l.b16 %v2183
  %v2840 = vunpack.c.l.b16 %v2184
  %v2841 = vunpack.c.l.b16 %v2185
  %v2842 = vunpack.c.l.b16 %v2186
  %v2843 = vunpack.c.l.b16 %v2187
  %v2844 = vunpack.c.l.b16 %v2188
  %v2845 = vpack.c.b16 %v2702, %v2701
  %v2846 = vpack.c.b16 %v2704, %v2703
  %v2847 = vpack.c.b16 %v2706, %v2705
  %v2848 = vpack.c.b16 %v2708, %v2707
  %v2849 = vpack.c.b16 %v2710, %v2709
  %v2850 = vpack.c.b16 %v2712, %v2711
  %v2851 = vpack.c.b16 %v2714, %v2713
  %v2852 = vpack.c.b16 %v2716, %v2715
  %v2853 = vpack.c.b16 %v2718, %v2717
  %v2854 = vpack.c.b16 %v2720, %v2719
  %v2855 = vpack.c.b16 %v2722, %v2721
  %v2856 = vpack.c.b16 %v2724, %v2723
  %v2857 = vpack.c.b16 %v2726, %v2725
  %v2858 = vpack.c.b16 %v2728, %v2727
  %v2859 = vpack.c.b16 %v2730, %v2729
  %v2860 = vpack.c.b16 %v2732, %v2731
  %v2861 = vpack.c.b16 %v2734, %v2733
  %v2862 = vpack.c.b16 %v2736, %v2735
  %v2863 = vpack.c.b16 %v2738, %v2737
  %v2864 = vpack.c.b16 %v2740, %v2739
  %v2865 = vpack.c.b16 %v2742, %v2741
  %v2866 = vpack.c.b16 %v2744, %v2743
  %v2867 = vpack.c.b16 %v2746, %v2745
  %v2868 = vpack.c.b16 %v2748, %v2747
  %v2869 = vpack.c.b16 %v2750, %v2749
  %v2870 = vpack.c.b16 %v2752, %v2751
  %v2871 = vpack.c.b16 %v2754, %v2753
  %v2872 = vpack.c.b16 %v2756, %v2755
  %v2873 = vpack.c.b16 %v2758, %v2757
  %v2874 = vpack.c.b16 %v2760, %v2759
  %v2875 = vpack.c.b16 %v2762, %v2761
  %v2876 = vpack.c.b16 %v2764, %v2763
  %v2877 = vpack.c.b16 %v2766, %v2765
  %v2878 = vpack.c.b16 %v2768, %v2767
  %v2879 = vpack.c.b16 %v2770, %v2769
  %v2880 = vpack.c.b16 %v2772, %v2771
  %v2881 = vpack.c.b16 %v2774, %v2773
  %v2882 = vpack.c.b16 %v2776, %v2775
  %v2883 = vpack.c.b16 %v2778, %v2777
  %v2884 = vpack.c.b16 %v2780, %v2779
  %v2885 = vpack.c.b16 %v2782, %v2781
  %v2886 = vpack.c.b16 %v2784, %v2783
  %v2887 = vpack.c.b16 %v2786, %v2785
  %v2888 = vpack.c.b16 %v2788, %v2787
  %v2889 = vpack.c.b16 %v2790, %v2789
  %v2890 = vpack.c.b16 %v2792, %v2791
  %v2891 = vpack.c.b16 %v2794, %v2793
  %v2892 = vpack.c.b16 %v2796, %v2795
  %v2893 = vpack.c.b16 %v2798, %v2797
  %v2894 = vpack.c.b16 %v2800, %v2799
  %v2895 = vpack.c.b16 %v2802, %v2801
  %v2896 = vpack.c.b16 %v2804, %v2803
  %v2897 = vpack.c.b16 %v2806, %v2805
  %v2898 = vpack.c.b16 %v2808, %v2807
  %v2899 = vpack.c.b16 %v2810, %v2809
  %v2900 = vpack.c.b16 %v2812, %v2811
  %v2901 = vpack.c.b16 %v2814, %v2813
  %v2902 = vpack.c.b16 %v2816, %v2815
  %v2903 = vpack.c.b16 %v2818, %v2817
  %v2904 = vpack.c.b16 %v2820, %v2819
  %v2905 = vpack.c.b16 %v2822, %v2821
  %v2906 = vpack.c.b16 %v2824, %v2823
  %v2907 = vpack.c.b16 %v2826, %v2825
  %v2908 = vpack.c.b16 %v2828, %v2827
  %v2909 = vpack.c.b16 %v2830, %v2829
  %v2910 = vpack.c.b16 %v2832, %v2831
  %v2911 = vpack.c.b16 %v2834, %v2833
  %v2912 = vpack.c.b16 %v2836, %v2835
  %v2913 = vpack.c.b16 %v2838, %v2837
  %v2914 = vpack.c.b16 %v2840, %v2839
  %v2915 = vpack.c.b16 %v2842, %v2841
  %v2916 = vpack.c.b16 %v2844, %v2843
  %2989 = vmatpush.bf16.msra.mxu0 %v2852
  %2990 = vmatpush.bf16.msra.mxu0 %v2851
  %2991 = vmatpush.bf16.msra.mxu0 %v2850
  %2992 = vmatpush.bf16.msra.mxu0 %v2849
  %2993 = vmatpush.bf16.msra.mxu0 %v2848
  %2994 = vmatpush.bf16.msra.mxu0 %v2847
  %2995 = vmatpush.bf16.msra.mxu0 %v2846
  %2996 = vmatpush.bf16.msra.mxu0 %v2845
  %2997 = vmatmul.bf16.gmra.mxu0 %v2413
  %v2998 = vpop.f32.mrf.mxu0
  %v2999 = vadd.f32 0.0, %v2998
  %v3000 = vpop.f32.mrf.mxu0
  %v3001 = vadd.f32 0.0, %v3000
  %3002 = vmatmul.bf16.gmra.mxu0 %v2422
  %v3003 = vpop.f32.mrf.mxu0
  %v3004 = vadd.f32 0.0, %v3003
  %v3005 = vpop.f32.mrf.mxu0
  %v3006 = vadd.f32 0.0, %v3005
  %3007 = vmatmul.bf16.gmra.mxu0 %v2431
  %v3008 = vpop.f32.mrf.mxu0
  %v3009 = vadd.f32 0.0, %v3008
  %v3010 = vpop.f32.mrf.mxu0
  %v3011 = vadd.f32 0.0, %v3010
  %3012 = vmatmul.bf16.gmra.mxu0 %v2440
  %v3013 = vpop.f32.mrf.mxu0
  %v3014 = vadd.f32 0.0, %v3013
  %v3015 = vpop.f32.mrf.mxu0
  %v3016 = vadd.f32 0.0, %v3015
  %3017 = vmatmul.bf16.gmra.mxu0 %v2449
  %v3018 = vpop.f32.mrf.mxu0
  %v3019 = vadd.f32 0.0, %v3018
  %v3020 = vpop.f32.mrf.mxu0
  %v3021 = vadd.f32 0.0, %v3020
  %3022 = vmatmul.bf16.gmra.mxu0 %v2458
  %v3023 = vpop.f32.mrf.mxu0
  %v3024 = vadd.f32 0.0, %v3023
  %v3025 = vpop.f32.mrf.mxu0
  %v3026 = vadd.f32 0.0, %v3025
  %3027 = vmatmul.bf16.gmra.mxu0 %v2467
  %v3028 = vpop.f32.mrf.mxu0
  %v3029 = vadd.f32 0.0, %v3028
  %v3030 = vpop.f32.mrf.mxu0
  %v3031 = vadd.f32 0.0, %v3030
  %3032 = vmatmul.bf16.gmra.mxu0 %v2476
  %v3033 = vpop.f32.mrf.mxu0
  %v3034 = vadd.f32 0.0, %v3033
  %v3035 = vpop.f32.mrf.mxu0
  %v3036 = vadd.f32 0.0, %v3035
  %3037 = vdwg.mxu0
  %3038 = vmatpush.bf16.msra.mxu0 %v2860
  %3039 = vmatpush.bf16.msra.mxu0 %v2859
  %3040 = vmatpush.bf16.msra.mxu0 %v2858
  %3041 = vmatpush.bf16.msra.mxu0 %v2857
  %3042 = vmatpush.bf16.msra.mxu0 %v2856
  %3043 = vmatpush.bf16.msra.mxu0 %v2855
  %3044 = vmatpush.bf16.msra.mxu0 %v2854
  %3045 = vmatpush.bf16.msra.mxu0 %v2853
  %3046 = vmatmul.bf16.gmra.mxu0 %v2414
  %v3047 = vpop.f32.mrf.mxu0
  %v3048 = vadd.f32 %v2999, %v3047
  %v3049 = vpop.f32.mrf.mxu0
  %v3050 = vadd.f32 %v3001, %v3049
  %3051 = vmatmul.bf16.gmra.mxu0 %v2423
  %v3052 = vpop.f32.mrf.mxu0
  %v3053 = vadd.f32 %v3004, %v3052
  %v3054 = vpop.f32.mrf.mxu0
  %v3055 = vadd.f32 %v3006, %v3054
  %3056 = vmatmul.bf16.gmra.mxu0 %v2432
  %v3057 = vpop.f32.mrf.mxu0
  %v3058 = vadd.f32 %v3009, %v3057
  %v3059 = vpop.f32.mrf.mxu0
  %v3060 = vadd.f32 %v3011, %v3059
  %3061 = vmatmul.bf16.gmra.mxu0 %v2441
  %v3062 = vpop.f32.mrf.mxu0
  %v3063 = vadd.f32 %v3014, %v3062
  %v3064 = vpop.f32.mrf.mxu0
  %v3065 = vadd.f32 %v3016, %v3064
  %3066 = vmatmul.bf16.gmra.mxu0 %v2450
  %v3067 = vpop.f32.mrf.mxu0
  %v3068 = vadd.f32 %v3019, %v3067
  %v3069 = vpop.f32.mrf.mxu0
  %v3070 = vadd.f32 %v3021, %v3069
  %3071 = vmatmul.bf16.gmra.mxu0 %v2459
  %v3072 = vpop.f32.mrf.mxu0
  %v3073 = vadd.f32 %v3024, %v3072
  %v3074 = vpop.f32.mrf.mxu0
  %v3075 = vadd.f32 %v3026, %v3074
  %3076 = vmatmul.bf16.gmra.mxu0 %v2468
  %v3077 = vpop.f32.mrf.mxu0
  %v3078 = vadd.f32 %v3029, %v3077
  %v3079 = vpop.f32.mrf.mxu0
  %v3080 = vadd.f32 %v3031, %v3079
  %3081 = vmatmul.bf16.gmra.mxu0 %v2477
  %v3082 = vpop.f32.mrf.mxu0
  %v3083 = vadd.f32 %v3034, %v3082
  %v3084 = vpop.f32.mrf.mxu0
  %v3085 = vadd.f32 %v3036, %v3084
  %3086 = vdwg.mxu0
  %3087 = vmatpush.bf16.msra.mxu0 %v2868
  %3088 = vmatpush.bf16.msra.mxu0 %v2867
  %3089 = vmatpush.bf16.msra.mxu0 %v2866
  %3090 = vmatpush.bf16.msra.mxu0 %v2865
  %3091 = vmatpush.bf16.msra.mxu0 %v2864
  %3092 = vmatpush.bf16.msra.mxu0 %v2863
  %3093 = vmatpush.bf16.msra.mxu0 %v2862
  %3094 = vmatpush.bf16.msra.mxu0 %v2861
  %3095 = vmatmul.bf16.gmra.mxu0 %v2415
  %v3096 = vpop.f32.mrf.mxu0
  %v3097 = vadd.f32 %v3048, %v3096
  %v3098 = vpop.f32.mrf.mxu0
  %v3099 = vadd.f32 %v3050, %v3098
  %3100 = vmatmul.bf16.gmra.mxu0 %v2424
  %v3101 = vpop.f32.mrf.mxu0
  %v3102 = vadd.f32 %v3053, %v3101
  %v3103 = vpop.f32.mrf.mxu0
  %v3104 = vadd.f32 %v3055, %v3103
  %3105 = vmatmul.bf16.gmra.mxu0 %v2433
  %v3106 = vpop.f32.mrf.mxu0
  %v3107 = vadd.f32 %v3058, %v3106
  %v3108 = vpop.f32.mrf.mxu0
  %v3109 = vadd.f32 %v3060, %v3108
  %3110 = vmatmul.bf16.gmra.mxu0 %v2442
  %v3111 = vpop.f32.mrf.mxu0
  %v3112 = vadd.f32 %v3063, %v3111
  %v3113 = vpop.f32.mrf.mxu0
  %v3114 = vadd.f32 %v3065, %v3113
  %3115 = vmatmul.bf16.gmra.mxu0 %v2451
  %v3116 = vpop.f32.mrf.mxu0
  %v3117 = vadd.f32 %v3068, %v3116
  %v3118 = vpop.f32.mrf.mxu0
  %v3119 = vadd.f32 %v3070, %v3118
  %3120 = vmatmul.bf16.gmra.mxu0 %v2460
  %v3121 = vpop.f32.mrf.mxu0
  %v3122 = vadd.f32 %v3073, %v3121
  %v3123 = vpop.f32.mrf.mxu0
  %v3124 = vadd.f32 %v3075, %v3123
  %3125 = vmatmul.bf16.gmra.mxu0 %v2469
  %v3126 = vpop.f32.mrf.mxu0
  %v3127 = vadd.f32 %v3078, %v3126
  %v3128 = vpop.f32.mrf.mxu0
  %v3129 = vadd.f32 %v3080, %v3128
  %3130 = vmatmul.bf16.gmra.mxu0 %v2478
  %v3131 = vpop.f32.mrf.mxu0
  %v3132 = vadd.f32 %v3083, %v3131
  %v3133 = vpop.f32.mrf.mxu0
  %v3134 = vadd.f32 %v3085, %v3133
  %3135 = vdwg.mxu0
  %3136 = vmatpush.bf16.msra.mxu0 %v2876
  %3137 = vmatpush.bf16.msra.mxu0 %v2875
  %3138 = vmatpush.bf16.msra.mxu0 %v2874
  %3139 = vmatpush.bf16.msra.mxu0 %v2873
  %3140 = vmatpush.bf16.msra.mxu0 %v2872
  %3141 = vmatpush.bf16.msra.mxu0 %v2871
  %3142 = vmatpush.bf16.msra.mxu0 %v2870
  %3143 = vmatpush.bf16.msra.mxu0 %v2869
  %3144 = vmatmul.bf16.gmra.mxu0 %v2416
  %v3145 = vpop.f32.mrf.mxu0
  %v3146 = vadd.f32 %v3097, %v3145
  %v3147 = vpop.f32.mrf.mxu0
  %v3148 = vadd.f32 %v3099, %v3147
  %3149 = vmatmul.bf16.gmra.mxu0 %v2425
  %v3150 = vpop.f32.mrf.mxu0
  %v3151 = vadd.f32 %v3102, %v3150
  %v3152 = vpop.f32.mrf.mxu0
  %v3153 = vadd.f32 %v3104, %v3152
  %3154 = vmatmul.bf16.gmra.mxu0 %v2434
  %v3155 = vpop.f32.mrf.mxu0
  %v3156 = vadd.f32 %v3107, %v3155
  %v3157 = vpop.f32.mrf.mxu0
  %v3158 = vadd.f32 %v3109, %v3157
  %3159 = vmatmul.bf16.gmra.mxu0 %v2443
  %v3160 = vpop.f32.mrf.mxu0
  %v3161 = vadd.f32 %v3112, %v3160
  %v3162 = vpop.f32.mrf.mxu0
  %v3163 = vadd.f32 %v3114, %v3162
  %3164 = vmatmul.bf16.gmra.mxu0 %v2452
  %v3165 = vpop.f32.mrf.mxu0
  %v3166 = vadd.f32 %v3117, %v3165
  %v3167 = vpop.f32.mrf.mxu0
  %v3168 = vadd.f32 %v3119, %v3167
  %3169 = vmatmul.bf16.gmra.mxu0 %v2461
  %v3170 = vpop.f32.mrf.mxu0
  %v3171 = vadd.f32 %v3122, %v3170
  %v3172 = vpop.f32.mrf.mxu0
  %v3173 = vadd.f32 %v3124, %v3172
  %3174 = vmatmul.bf16.gmra.mxu0 %v2470
  %v3175 = vpop.f32.mrf.mxu0
  %v3176 = vadd.f32 %v3127, %v3175
  %v3177 = vpop.f32.mrf.mxu0
  %v3178 = vadd.f32 %v3129, %v3177
  %3179 = vmatmul.bf16.gmra.mxu0 %v2479
  %v3180 = vpop.f32.mrf.mxu0
  %v3181 = vadd.f32 %v3132, %v3180
  %v3182 = vpop.f32.mrf.mxu0
  %v3183 = vadd.f32 %v3134, %v3182
  %3184 = vdwg.mxu0
  %3185 = vmatpush.bf16.msra.mxu0 %v2884
  %3186 = vmatpush.bf16.msra.mxu0 %v2883
  %3187 = vmatpush.bf16.msra.mxu0 %v2882
  %3188 = vmatpush.bf16.msra.mxu0 %v2881
  %3189 = vmatpush.bf16.msra.mxu0 %v2880
  %3190 = vmatpush.bf16.msra.mxu0 %v2879
  %3191 = vmatpush.bf16.msra.mxu0 %v2878
  %3192 = vmatpush.bf16.msra.mxu0 %v2877
  %3193 = vmatmul.bf16.gmra.mxu0 %v2417
  %v3194 = vpop.f32.mrf.mxu0
  %v3195 = vadd.f32 %v3146, %v3194
  %v3196 = vpop.f32.mrf.mxu0
  %v3197 = vadd.f32 %v3148, %v3196
  %3198 = vmatmul.bf16.gmra.mxu0 %v2426
  %v3199 = vpop.f32.mrf.mxu0
  %v3200 = vadd.f32 %v3151, %v3199
  %v3201 = vpop.f32.mrf.mxu0
  %v3202 = vadd.f32 %v3153, %v3201
  %3203 = vmatmul.bf16.gmra.mxu0 %v2435
  %v3204 = vpop.f32.mrf.mxu0
  %v3205 = vadd.f32 %v3156, %v3204
  %v3206 = vpop.f32.mrf.mxu0
  %v3207 = vadd.f32 %v3158, %v3206
  %3208 = vmatmul.bf16.gmra.mxu0 %v2444
  %v3209 = vpop.f32.mrf.mxu0
  %v3210 = vadd.f32 %v3161, %v3209
  %v3211 = vpop.f32.mrf.mxu0
  %v3212 = vadd.f32 %v3163, %v3211
  %3213 = vmatmul.bf16.gmra.mxu0 %v2453
  %v3214 = vpop.f32.mrf.mxu0
  %v3215 = vadd.f32 %v3166, %v3214
  %v3216 = vpop.f32.mrf.mxu0
  %v3217 = vadd.f32 %v3168, %v3216
  %3218 = vmatmul.bf16.gmra.mxu0 %v2462
  %v3219 = vpop.f32.mrf.mxu0
  %v3220 = vadd.f32 %v3171, %v3219
  %v3221 = vpop.f32.mrf.mxu0
  %v3222 = vadd.f32 %v3173, %v3221
  %3223 = vmatmul.bf16.gmra.mxu0 %v2471
  %v3224 = vpop.f32.mrf.mxu0
  %v3225 = vadd.f32 %v3176, %v3224
  %v3226 = vpop.f32.mrf.mxu0
  %v3227 = vadd.f32 %v3178, %v3226
  %3228 = vmatmul.bf16.gmra.mxu0 %v2480
  %v3229 = vpop.f32.mrf.mxu0
  %v3230 = vadd.f32 %v3181, %v3229
  %v3231 = vpop.f32.mrf.mxu0
  %v3232 = vadd.f32 %v3183, %v3231
  %3233 = vdwg.mxu0
  %3234 = vmatpush.bf16.msra.mxu0 %v2892
  %3235 = vmatpush.bf16.msra.mxu0 %v2891
  %3236 = vmatpush.bf16.msra.mxu0 %v2890
  %3237 = vmatpush.bf16.msra.mxu0 %v2889
  %3238 = vmatpush.bf16.msra.mxu0 %v2888
  %3239 = vmatpush.bf16.msra.mxu0 %v2887
  %3240 = vmatpush.bf16.msra.mxu0 %v2886
  %3241 = vmatpush.bf16.msra.mxu0 %v2885
  %3242 = vmatmul.bf16.gmra.mxu0 %v2418
  %v3243 = vpop.f32.mrf.mxu0
  %v3244 = vadd.f32 %v3195, %v3243
  %v3245 = vpop.f32.mrf.mxu0
  %v3246 = vadd.f32 %v3197, %v3245
  %3247 = vmatmul.bf16.gmra.mxu0 %v2427
  %v3248 = vpop.f32.mrf.mxu0
  %v3249 = vadd.f32 %v3200, %v3248
  %v3250 = vpop.f32.mrf.mxu0
  %v3251 = vadd.f32 %v3202, %v3250
  %3252 = vmatmul.bf16.gmra.mxu0 %v2436
  %v3253 = vpop.f32.mrf.mxu0
  %v3254 = vadd.f32 %v3205, %v3253
  %v3255 = vpop.f32.mrf.mxu0
  %v3256 = vadd.f32 %v3207, %v3255
  %3257 = vmatmul.bf16.gmra.mxu0 %v2445
  %v3258 = vpop.f32.mrf.mxu0
  %v3259 = vadd.f32 %v3210, %v3258
  %v3260 = vpop.f32.mrf.mxu0
  %v3261 = vadd.f32 %v3212, %v3260
  %3262 = vmatmul.bf16.gmra.mxu0 %v2454
  %v3263 = vpop.f32.mrf.mxu0
  %v3264 = vadd.f32 %v3215, %v3263
  %v3265 = vpop.f32.mrf.mxu0
  %v3266 = vadd.f32 %v3217, %v3265
  %3267 = vmatmul.bf16.gmra.mxu0 %v2463
  %v3268 = vpop.f32.mrf.mxu0
  %v3269 = vadd.f32 %v3220, %v3268
  %v3270 = vpop.f32.mrf.mxu0
  %v3271 = vadd.f32 %v3222, %v3270
  %3272 = vmatmul.bf16.gmra.mxu0 %v2472
  %v3273 = vpop.f32.mrf.mxu0
  %v3274 = vadd.f32 %v3225, %v3273
  %v3275 = vpop.f32.mrf.mxu0
  %v3276 = vadd.f32 %v3227, %v3275
  %3277 = vmatmul.bf16.gmra.mxu0 %v2481
  %v3278 = vpop.f32.mrf.mxu0
  %v3279 = vadd.f32 %v3230, %v3278
  %v3280 = vpop.f32.mrf.mxu0
  %v3281 = vadd.f32 %v3232, %v3280
  %3282 = vdwg.mxu0
  %3283 = vmatpush.bf16.msra.mxu0 %v2900
  %3284 = vmatpush.bf16.msra.mxu0 %v2899
  %3285 = vmatpush.bf16.msra.mxu0 %v2898
  %3286 = vmatpush.bf16.msra.mxu0 %v2897
  %3287 = vmatpush.bf16.msra.mxu0 %v2896
  %3288 = vmatpush.bf16.msra.mxu0 %v2895
  %3289 = vmatpush.bf16.msra.mxu0 %v2894
  %3290 = vmatpush.bf16.msra.mxu0 %v2893
  %3291 = vmatmul.bf16.gmra.mxu0 %v2419
  %v3292 = vpop.f32.mrf.mxu0
  %v3293 = vadd.f32 %v3244, %v3292
  %v3294 = vpop.f32.mrf.mxu0
  %v3295 = vadd.f32 %v3246, %v3294
  %3296 = vmatmul.bf16.gmra.mxu0 %v2428
  %v3297 = vpop.f32.mrf.mxu0
  %v3298 = vadd.f32 %v3249, %v3297
  %v3299 = vpop.f32.mrf.mxu0
  %v3300 = vadd.f32 %v3251, %v3299
  %3301 = vmatmul.bf16.gmra.mxu0 %v2437
  %v3302 = vpop.f32.mrf.mxu0
  %v3303 = vadd.f32 %v3254, %v3302
  %v3304 = vpop.f32.mrf.mxu0
  %v3305 = vadd.f32 %v3256, %v3304
  %3306 = vmatmul.bf16.gmra.mxu0 %v2446
  %v3307 = vpop.f32.mrf.mxu0
  %v3308 = vadd.f32 %v3259, %v3307
  %v3309 = vpop.f32.mrf.mxu0
  %v3310 = vadd.f32 %v3261, %v3309
  %3311 = vmatmul.bf16.gmra.mxu0 %v2455
  %v3312 = vpop.f32.mrf.mxu0
  %v3313 = vadd.f32 %v3264, %v3312
  %v3314 = vpop.f32.mrf.mxu0
  %v3315 = vadd.f32 %v3266, %v3314
  %3316 = vmatmul.bf16.gmra.mxu0 %v2464
  %v3317 = vpop.f32.mrf.mxu0
  %v3318 = vadd.f32 %v3269, %v3317
  %v3319 = vpop.f32.mrf.mxu0
  %v3320 = vadd.f32 %v3271, %v3319
  %3321 = vmatmul.bf16.gmra.mxu0 %v2473
  %v3322 = vpop.f32.mrf.mxu0
  %v3323 = vadd.f32 %v3274, %v3322
  %v3324 = vpop.f32.mrf.mxu0
  %v3325 = vadd.f32 %v3276, %v3324
  %3326 = vmatmul.bf16.gmra.mxu0 %v2482
  %v3327 = vpop.f32.mrf.mxu0
  %v3328 = vadd.f32 %v3279, %v3327
  %v3329 = vpop.f32.mrf.mxu0
  %v3330 = vadd.f32 %v3281, %v3329
  %3331 = vdwg.mxu0
  %3332 = vmatpush.bf16.msra.mxu0 %v2908
  %3333 = vmatpush.bf16.msra.mxu0 %v2907
  %3334 = vmatpush.bf16.msra.mxu0 %v2906
  %3335 = vmatpush.bf16.msra.mxu0 %v2905
  %3336 = vmatpush.bf16.msra.mxu0 %v2904
  %3337 = vmatpush.bf16.msra.mxu0 %v2903
  %3338 = vmatpush.bf16.msra.mxu0 %v2902
  %3339 = vmatpush.bf16.msra.mxu0 %v2901
  %3340 = vmatmul.bf16.gmra.mxu0 %v2420
  %v3341 = vpop.f32.mrf.mxu0
  %v3342 = vadd.f32 %v3293, %v3341
  %v3343 = vpop.f32.mrf.mxu0
  %v3344 = vadd.f32 %v3295, %v3343
  %3345 = vmatmul.bf16.gmra.mxu0 %v2429
  %v3346 = vpop.f32.mrf.mxu0
  %v3347 = vadd.f32 %v3298, %v3346
  %v3348 = vpop.f32.mrf.mxu0
  %v3349 = vadd.f32 %v3300, %v3348
  %3350 = vmatmul.bf16.gmra.mxu0 %v2438
  %v3351 = vpop.f32.mrf.mxu0
  %v3352 = vadd.f32 %v3303, %v3351
  %v3353 = vpop.f32.mrf.mxu0
  %v3354 = vadd.f32 %v3305, %v3353
  %3355 = vmatmul.bf16.gmra.mxu0 %v2447
  %v3356 = vpop.f32.mrf.mxu0
  %v3357 = vadd.f32 %v3308, %v3356
  %v3358 = vpop.f32.mrf.mxu0
  %v3359 = vadd.f32 %v3310, %v3358
  %3360 = vmatmul.bf16.gmra.mxu0 %v2456
  %v3361 = vpop.f32.mrf.mxu0
  %v3362 = vadd.f32 %v3313, %v3361
  %v3363 = vpop.f32.mrf.mxu0
  %v3364 = vadd.f32 %v3315, %v3363
  %3365 = vmatmul.bf16.gmra.mxu0 %v2465
  %v3366 = vpop.f32.mrf.mxu0
  %v3367 = vadd.f32 %v3318, %v3366
  %v3368 = vpop.f32.mrf.mxu0
  %v3369 = vadd.f32 %v3320, %v3368
  %3370 = vmatmul.bf16.gmra.mxu0 %v2474
  %v3371 = vpop.f32.mrf.mxu0
  %v3372 = vadd.f32 %v3323, %v3371
  %v3373 = vpop.f32.mrf.mxu0
  %v3374 = vadd.f32 %v3325, %v3373
  %3375 = vmatmul.bf16.gmra.mxu0 %v2483
  %v3376 = vpop.f32.mrf.mxu0
  %v3377 = vadd.f32 %v3328, %v3376
  %v3378 = vpop.f32.mrf.mxu0
  %v3379 = vadd.f32 %v3330, %v3378
  %3380 = vdwg.mxu0
  %3381 = vmatpush.bf16.msra.mxu0 %v2916
  %3382 = vmatpush.bf16.msra.mxu0 %v2915
  %3383 = vmatpush.bf16.msra.mxu0 %v2914
  %3384 = vmatpush.bf16.msra.mxu0 %v2913
  %3385 = vmatpush.bf16.msra.mxu0 %v2912
  %3386 = vmatpush.bf16.msra.mxu0 %v2911
  %3387 = vmatpush.bf16.msra.mxu0 %v2910
  %3388 = vmatpush.bf16.msra.mxu0 %v2909
  %3389 = vmatmul.bf16.gmra.mxu0 %v2421
  %v3390 = vpop.f32.mrf.mxu0
  %v3391 = vadd.f32 %v3342, %v3390
  %v3392 = vpop.f32.mrf.mxu0
  %v3393 = vadd.f32 %v3344, %v3392
  %3394 = vmatmul.bf16.gmra.mxu0 %v2430
  %v3395 = vpop.f32.mrf.mxu0
  %v3396 = vadd.f32 %v3347, %v3395
  %v3397 = vpop.f32.mrf.mxu0
  %v3398 = vadd.f32 %v3349, %v3397
  %3399 = vmatmul.bf16.gmra.mxu0 %v2439
  %v3400 = vpop.f32.mrf.mxu0
  %v3401 = vadd.f32 %v3352, %v3400
  %v3402 = vpop.f32.mrf.mxu0
  %v3403 = vadd.f32 %v3354, %v3402
  %3404 = vmatmul.bf16.gmra.mxu0 %v2448
  %v3405 = vpop.f32.mrf.mxu0
  %v3406 = vadd.f32 %v3357, %v3405
  %v3407 = vpop.f32.mrf.mxu0
  %v3408 = vadd.f32 %v3359, %v3407
  %3409 = vmatmul.bf16.gmra.mxu0 %v2457
  %v3410 = vpop.f32.mrf.mxu0
  %v3411 = vadd.f32 %v3362, %v3410
  %v3412 = vpop.f32.mrf.mxu0
  %v3413 = vadd.f32 %v3364, %v3412
  %3414 = vmatmul.bf16.gmra.mxu0 %v2466
  %v3415 = vpop.f32.mrf.mxu0
  %v3416 = vadd.f32 %v3367, %v3415
  %v3417 = vpop.f32.mrf.mxu0
  %v3418 = vadd.f32 %v3369, %v3417
  %3419 = vmatmul.bf16.gmra.mxu0 %v2475
  %v3420 = vpop.f32.mrf.mxu0
  %v3421 = vadd.f32 %v3372, %v3420
  %v3422 = vpop.f32.mrf.mxu0
  %v3423 = vadd.f32 %v3374, %v3422
  %3424 = vmatmul.bf16.gmra.mxu0 %v2484
  %v3425 = vpop.f32.mrf.mxu0
  %v3426 = vadd.f32 %v3377, %v3425
  %v3427 = vpop.f32.mrf.mxu0
  %v3428 = vadd.f32 %v3379, %v3427
  %3429 = vdwg.mxu0
  %v3430 = vadd.f32 %v3391, %v3393
  %v3431 = vadd.f32 %v3430, %v3396
  %v3432 = vadd.f32 %v3431, %v3398
  %v3433 = vadd.f32 %v3432, %v3401
  %v3434 = vadd.f32 %v3433, %v3403
  %v3435 = vadd.f32 %v3434, %v3406
  %v3436 = vadd.f32 %v3435, %v3408
  %v3437 = vadd.f32 %v3436, %v3411
  %v3438 = vadd.f32 %v3437, %v3413
  %v3439 = vadd.f32 %v3438, %v3416
  %v3440 = vadd.f32 %v3439, %v3418
  %v3441 = vadd.f32 %v3440, %v3421
  %v3442 = vadd.f32 %v3441, %v3423
  %v3443 = vadd.f32 %v3442, %v3426
  %v3444 = vadd.f32 %v3443, %v3428
  %v3445 = vrot.slane %v3444, 4
  %v3446 = vadd.f32 %v3444, %v3445
  %v3447 = vrot.slane %v3446, 2
  %v3448 = vadd.f32 %v3446, %v3447
  %v3449 = vrot.slane %v3448, 1
  %v3450 = vadd.f32 %v3448, %v3449
  %v3451 = vmul.f32 %v3391, %v3391
  %v3452 = vmul.f32 %v3393, %v3393
  %v3453 = vmul.f32 %v3396, %v3396
  %v3454 = vmul.f32 %v3398, %v3398
  %v3455 = vmul.f32 %v3401, %v3401
  %v3456 = vmul.f32 %v3403, %v3403
  %v3457 = vmul.f32 %v3406, %v3406
  %v3458 = vmul.f32 %v3408, %v3408
  %v3459 = vmul.f32 %v3411, %v3411
  %v3460 = vmul.f32 %v3413, %v3413
  %v3461 = vmul.f32 %v3416, %v3416
  %v3462 = vmul.f32 %v3418, %v3418
  %v3463 = vmul.f32 %v3421, %v3421
  %v3464 = vmul.f32 %v3423, %v3423
  %v3465 = vmul.f32 %v3426, %v3426
  %v3466 = vmul.f32 %v3428, %v3428
  %v3467 = vadd.f32 %v3451, %v3452
  %v3468 = vadd.f32 %v3467, %v3453
  %v3469 = vadd.f32 %v3468, %v3454
  %v3470 = vadd.f32 %v3469, %v3455
  %v3471 = vadd.f32 %v3470, %v3456
  %v3472 = vadd.f32 %v3471, %v3457
  %v3473 = vadd.f32 %v3472, %v3458
  %v3474 = vadd.f32 %v3473, %v3459
  %v3475 = vadd.f32 %v3474, %v3460
  %v3476 = vadd.f32 %v3475, %v3461
  %v3477 = vadd.f32 %v3476, %v3462
  %v3478 = vadd.f32 %v3477, %v3463
  %v3479 = vadd.f32 %v3478, %v3464
  %v3480 = vadd.f32 %v3479, %v3465
  %v3481 = vadd.f32 %v3480, %v3466
  %v3482 = vrot.slane %v3481, 4
  %v3483 = vadd.f32 %v3481, %v3482
  %v3484 = vrot.slane %v3483, 2
  %v3485 = vadd.f32 %v3483, %v3484
  %v3486 = vrot.slane %v3485, 1
  %v3487 = vadd.f32 %v3485, %v3486
  %v3488 = vmul.f32 %v3450, 0.0078125
  %v3489 = vmul.f32 %v3487, 0.0078125
  %v3490 = vmul.f32 %v3488, %v3488
  %v3491 = vsub.f32 %v3489, %v3490
  %v3492 = vmax.f32 %v3491, 0.0
  %v3493 = vld [vmem:[%s2] sm:$0x1]
  %v3494 = vadd.f32 %v3492, 1e-05
  %v3495 = vrsqrt.pop %v3494
  %v3496 = vmul.f32 %v3495, %v3494
  %v3497 = vmul.f32 %v3496, %v3495
  %v3498 = vmul.f32 0.5, %v3497
  %v3499 = vsub.f32 1.5, %v3498
  %v3500 = vmul.f32 %v3495, %v3499
  %vm3501 = vweird.f32 %v3494
  %vm3502 = vweird.f32 %v3495
  %vm3503 = vmor %vm3501, %vm3502
  %v3504 = vsel %vm3503, %v3495, %v3500
  %v3505 = vmul.f32 %v3493, %v3504
  %v3506 = vsub.f32 %v3391, %v3488
  %v3507 = vsub.f32 %v3393, %v3488
  %v3508 = vsub.f32 %v3396, %v3488
  %v3509 = vsub.f32 %v3398, %v3488
  %v3510 = vsub.f32 %v3401, %v3488
  %v3511 = vsub.f32 %v3403, %v3488
  %v3512 = vsub.f32 %v3406, %v3488
  %v3513 = vsub.f32 %v3408, %v3488
  %v3514 = vsub.f32 %v3411, %v3488
  %v3515 = vsub.f32 %v3413, %v3488
  %v3516 = vsub.f32 %v3416, %v3488
  %v3517 = vsub.f32 %v3418, %v3488
  %v3518 = vsub.f32 %v3421, %v3488
  %v3519 = vsub.f32 %v3423, %v3488
  %v3520 = vsub.f32 %v3426, %v3488
  %v3521 = vsub.f32 %v3428, %v3488
  %v3523 = vperm.slane %v3505, 0
  %v3525 = vmul.f32 %v3506, %v3523
  %v3526 = vmul.f32 %v3507, %v3523
  %v3527 = vmul.f32 %v3508, %v3523
  %v3528 = vmul.f32 %v3509, %v3523
  %v3529 = vmul.f32 %v3510, %v3523
  %v3530 = vmul.f32 %v3511, %v3523
  %v3531 = vmul.f32 %v3512, %v3523
  %v3532 = vmul.f32 %v3513, %v3523
  %v3533 = vmul.f32 %v3514, %v3523
  %v3534 = vmul.f32 %v3515, %v3523
  %v3535 = vmul.f32 %v3516, %v3523
  %v3536 = vmul.f32 %v3517, %v3523
  %v3537 = vmul.f32 %v3518, %v3523
  %v3538 = vmul.f32 %v3519, %v3523
  %v3539 = vmul.f32 %v3520, %v3523
  %v3540 = vmul.f32 %v3521, %v3523
  %v3541 = vld [vmem:[%s3] sm:$0x1]
  %v3543 = vperm.slane %v3541, 0
  %v3545 = vadd.f32 %v3525, %v3543
  %v3546 = vadd.f32 %v3526, %v3543
  %v3547 = vadd.f32 %v3527, %v3543
  %v3548 = vadd.f32 %v3528, %v3543
  %v3549 = vadd.f32 %v3529, %v3543
  %v3550 = vadd.f32 %v3530, %v3543
  %v3551 = vadd.f32 %v3531, %v3543
  %v3552 = vadd.f32 %v3532, %v3543
  %v3553 = vadd.f32 %v3533, %v3543
  %v3554 = vadd.f32 %v3534, %v3543
  %v3555 = vadd.f32 %v3535, %v3543
  %v3556 = vadd.f32 %v3536, %v3543
  %v3557 = vadd.f32 %v3537, %v3543
  %v3558 = vadd.f32 %v3538, %v3543
  %v3559 = vadd.f32 %v3539, %v3543
  %v3560 = vadd.f32 %v3540, %v3543
  %v3561 = vmul.f32 %v3545, 0.01
  %v3562 = vmul.f32 %v3546, 0.01
  %v3563 = vmul.f32 %v3547, 0.01
  %v3564 = vmul.f32 %v3548, 0.01
  %v3565 = vmul.f32 %v3549, 0.01
  %v3566 = vmul.f32 %v3550, 0.01
  %v3567 = vmul.f32 %v3551, 0.01
  %v3568 = vmul.f32 %v3552, 0.01
  %v3569 = vmul.f32 %v3553, 0.01
  %v3570 = vmul.f32 %v3554, 0.01
  %v3571 = vmul.f32 %v3555, 0.01
  %v3572 = vmul.f32 %v3556, 0.01
  %v3573 = vmul.f32 %v3557, 0.01
  %v3574 = vmul.f32 %v3558, 0.01
  %v3575 = vmul.f32 %v3559, 0.01
  %v3576 = vmul.f32 %v3560, 0.01
  %v3577 = vmax.f32 %v3545, %v3561
  %v3578 = vmax.f32 %v3546, %v3562
  %v3579 = vmax.f32 %v3547, %v3563
  %v3580 = vmax.f32 %v3548, %v3564
  %v3581 = vmax.f32 %v3549, %v3565
  %v3582 = vmax.f32 %v3550, %v3566
  %v3583 = vmax.f32 %v3551, %v3567
  %v3584 = vmax.f32 %v3552, %v3568
  %v3585 = vmax.f32 %v3553, %v3569
  %v3586 = vmax.f32 %v3554, %v3570
  %v3587 = vmax.f32 %v3555, %v3571
  %v3588 = vmax.f32 %v3556, %v3572
  %v3589 = vmax.f32 %v3557, %v3573
  %v3590 = vmax.f32 %v3558, %v3574
  %v3591 = vmax.f32 %v3559, %v3575
  %v3592 = vmax.f32 %v3560, %v3576
  %v3593 = vpack.c.bf16 %v3577, %v3577
  %v3594 = vpack.c.bf16 %v3578, %v3578
  %v3595 = vpack.c.bf16 %v3579, %v3579
  %v3596 = vpack.c.bf16 %v3580, %v3580
  %v3597 = vpack.c.bf16 %v3581, %v3581
  %v3598 = vpack.c.bf16 %v3582, %v3582
  %v3599 = vpack.c.bf16 %v3583, %v3583
  %v3600 = vpack.c.bf16 %v3584, %v3584
  %v3601 = vpack.c.bf16 %v3585, %v3585
  %v3602 = vpack.c.bf16 %v3586, %v3586
  %v3603 = vpack.c.bf16 %v3587, %v3587
  %v3604 = vpack.c.bf16 %v3588, %v3588
  %v3605 = vpack.c.bf16 %v3589, %v3589
  %v3606 = vpack.c.bf16 %v3590, %v3590
  %v3607 = vpack.c.bf16 %v3591, %v3591
  %v3608 = vpack.c.bf16 %v3592, %v3592
  %3609 = vst [vmem:[%s4] sm:$0xf] %v3593
  %3610 = vst [vmem:[%s4 + $0x4] sm:$0xf] %v3594
  %3611 = vst [vmem:[%s4 + $0x8] sm:$0xf] %v3595
  %3612 = vst [vmem:[%s4 + $0xc] sm:$0xf] %v3596
  %3613 = vst [vmem:[%s4 + $0x10] sm:$0xf] %v3597
  %3614 = vst [vmem:[%s4 + $0x14] sm:$0xf] %v3598
  %3615 = vst [vmem:[%s4 + $0x18] sm:$0xf] %v3599
  %3616 = vst [vmem:[%s4 + $0x1c] sm:$0xf] %v3600
  %3617 = vst [vmem:[%s4 + $0x20] sm:$0xf] %v3601
  %3618 = vst [vmem:[%s4 + $0x24] sm:$0xf] %v3602
  %3619 = vst [vmem:[%s4 + $0x28] sm:$0xf] %v3603
  %3620 = vst [vmem:[%s4 + $0x2c] sm:$0xf] %v3604
  %3621 = vst [vmem:[%s4 + $0x30] sm:$0xf] %v3605
  %3622 = vst [vmem:[%s4 + $0x34] sm:$0xf] %v3606
  %3623 = vst [vmem:[%s4 + $0x38] sm:$0xf] %v3607
  %3624 = vst [vmem:[%s4 + $0x3c] sm:$0xf] %v3608
  // Predicated region
  $region18: #{down_forward.2} parent=0 // pred_check
    _
  $region19: #{down_forward.2} parent=0 // pred_check_branch
    %3626 = sbr.rel (0) target = $region21
  $region20: #{down_forward.2} parent=0 // pred_region
    _
  $region21: #{down_forward.2} parent=0 // pred_fallthru
    _
  // Predicated region
  $region22: #{down_forward.2} parent=0 // pred_check
    _
  $region23: #{down_forward.2} parent=0 // pred_check_branch
    %3628 = sbr.rel (0) target = $region25
  $region24: #{down_forward.2} parent=0 // pred_region
    _
  $region25: #{down_forward.2} parent=0 // pred_fallthru
    _

</llo_original>
